<compile_context>
chip_gen: v5e
topology: v5e:2x2
jax: 0.10.0
libtpu: 0.0.40
codegen_flags: <defaults>
</compile_context>

<pallas_src>
import functools

import jax
import jax.numpy as jnp
from jax.experimental import pallas as pl
from jax.experimental.pallas import tpu as pltpu


_LPAD = 128  # lane-aligned offset of the image inside the pad scratch buffer


# ---------------------------------------------------------------------------
# In-kernel helpers
# ---------------------------------------------------------------------------

def _leaky(x):
    return jnp.where(x > 0, x, 0.2 * x)          # module uses LeakyReLU(0.2)


def _apply_act(x, act):
    if act == "relu":
        return jnp.maximum(x, 0.0)
    if act == "leaky":
        return _leaky(x)
    return x


def _conv_cm(xf, w_mat, b, kh, kw, h, w, pad_ref, col_ref, act="none",
             edge_masks=None):
    """'same' conv in channel-major flat layout, as a single MXU matmul.

    xf        : (Cin, h*w) value
    w_mat     : (Cout, kh*kw*Cin) value;  w_mat[co, (dy*kw+dx)*Cin + ci]
                corresponds to torch weight[co, ci, dy, dx]
    b         : (Cout, 1) value or None
    pad_ref   : VMEM ref (Cin, _LPAD + h*w + pad); everything outside the
                center [ _LPAD : _LPAD+h*w ) stays zero (pre-memset)
    col_ref   : VMEM ref (kh*kw*Cin, h*w)  — im2col staging buffer
    edge_masks: {-1: (1,h*w), +1: (1,h*w)} f32 column-validity masks
                (kills the row-wrap of +-1 lane shifts; only needed when w>1)
    """
    cin, hw = xf.shape
    ph, pw = (kh - 1) // 2, (kw - 1) // 2
    pad = ph * w + pw
    if pad == 0:                                  # 1x1 conv: col == input
        col = xf
    else:
        assert pad_ref.shape == (cin, _LPAD + hw + pad), pad_ref.shape
        assert col_ref.shape == (kh * kw * cin, hw), col_ref.shape
        # write the image at a lane-aligned offset; halo stays zero
        pad_ref[:, _LPAD:_LPAD + hw] = xf
        for dy in range(kh):
            for dx in range(kw):
                oy, ox = dy - ph, dx - pw
                s = oy * w + ox
                t = pad_ref[:, _LPAD + s:_LPAD + s + hw]
                if edge_masks is not None and ox != 0 and w > 1:
                    t = t * edge_masks[ox]
                tap = dy * kw + dx
                col_ref[tap * cin:(tap + 1) * cin, :] = t
        col = col_ref[...]
    out = jnp.dot(w_mat, col, preferred_element_type=jnp.float32)
    if b is not None:
        out = out + b
    return _apply_act(out, act)


# ---------------------------------------------------------------------------
# Fused BCM_block kernel (one batch element per grid step)
# ---------------------------------------------------------------------------

def _bcm_kernel(
    # inputs
    x_ref,
    indh_ref, indv_ref, bch_ref, bcv_ref, mskl_ref, mskr_ref,
    w1a_ref, b1a_ref, w1b_ref, b1b_ref,
    wb1_ref, bb1_ref, wh_ref, wv_ref, wf_ref, bf_ref,
    wr_ref, br_ref,
    w2a_ref, b2a_ref, w2b_ref, b2b_ref,
    # outputs
    feat_ref, reblur_ref, blur_ref, conv_ref, sharp_ref,
    # scratch
    padf_ref, colf_ref, padh_ref, colh_ref, padv_ref, colv_ref,
    *, h, w,
):
    # zero the pad buffers (borders must be zero; centers get overwritten)
    padf_ref[...] = jnp.zeros_like(padf_ref)
    padh_ref[...] = jnp.zeros_like(padh_ref)
    padv_ref[...] = jnp.zeros_like(padv_ref)

    x = x_ref[0]                                              # (C, HW)
    masks = {-1: mskl_ref[...], +1: mskr_ref[...]}            # (1, HW) each

    conv3 = functools.partial(_conv_cm, kh=3, kw=3, h=h, w=w,
                              pad_ref=padf_ref, col_ref=colf_ref,
                              edge_masks=masks)

    # ---- conv3x3_lv1 (conv -> relu -> conv) + residual ----------------------
    t = conv3(x, w1a_ref[...], b1a_ref[...], act="relu")
    conv1 = conv3(t, w1b_ref[...], b1b_ref[...]) + x
    conv_ref[0] = conv1

    # ---- Blur_Capture_module ------------------------------------------------
    xb = _conv_cm(conv1, wb1_ref[...], bb1_ref[...], 1, 1, h, w,
                  pad_ref=None, col_ref=None)                 # 1x1 conv
    # strip pooling (means over H / over W) as indicator matmuls
    pooled_h = jnp.dot(xb, indh_ref[...],
                       preferred_element_type=jnp.float32)    # (C, W)
    pooled_v = jnp.dot(xb, indv_ref[...],
                       preferred_element_type=jnp.float32)    # (C, H)
    # conv_h: (1,3) no-bias on the horizontal strip; conv_v: (3,1) no-bias
    xh = _conv_cm(pooled_h, wh_ref[...], None, 1, 3, 1, w,
                  pad_ref=padh_ref, col_ref=colh_ref)         # (C, W)
    xv = _conv_cm(pooled_v, wv_ref[...], None, 3, 1, h, 1,
                  pad_ref=padv_ref, col_ref=colv_ref)         # (C, H)
    # bilinear interpolation (align_corners=True) from a size-1 axis is an
    # exact broadcast -> expressed as indicator matmuls back to (C, HW)
    xh_full = jnp.dot(xh, bch_ref[...], preferred_element_type=jnp.float32)
    xv_full = jnp.dot(xv, bcv_ref[...], preferred_element_type=jnp.float32)
    comb = _leaky(xb + xh_full + xv_full)
    blur2 = conv3(comb, wf_ref[...], bf_ref[...], act="leaky")
    blur_ref[0] = blur2

    # ---- reblur filter (conv1x1_lv2: 3x3 conv -> leaky) ---------------------
    reblur_ref[0] = conv3(blur2, wr_ref[...], br_ref[...], act="leaky")

    # ---- sharpen + conv3x3_lv2 + residual -----------------------------------
    sharpen2 = conv1 - blur2
    sharp_ref[0] = sharpen2
    t2 = conv3(sharpen2, w2a_ref[...], b2a_ref[...], act="relu")
    feat_ref[0] = conv3(t2, w2b_ref[...], b2b_ref[...]) + sharpen2


# ---------------------------------------------------------------------------
# Host-side constant tables (pooling / broadcast indicators, edge masks)
# ---------------------------------------------------------------------------

def _make_consts(h, w):
    hw = h * w
    p = jnp.arange(hw, dtype=jnp.int32)
    x_of_p = p % w
    y_of_p = p // w
    ind_h = (x_of_p[:, None] == jnp.arange(w, dtype=jnp.int32)[None, :]
             ).astype(jnp.float32) / h                       # (HW, W): mean over H
    ind_v = (y_of_p[:, None] == jnp.arange(h, dtype=jnp.int32)[None, :]
             ).astype(jnp.float32) / w                       # (HW, H): mean over W
    bc_h = (x_of_p[None, :] == jnp.arange(w, dtype=jnp.int32)[:, None]
            ).astype(jnp.float32)                            # (W, HW): bcast over H
    bc_v = (y_of_p[None, :] == jnp.arange(h, dtype=jnp.int32)[:, None]
            ).astype(jnp.float32)                            # (H, HW): bcast over W
    msk_l = (x_of_p >= 1).astype(jnp.float32).reshape(1, hw)      # valid for ox=-1
    msk_r = (x_of_p <= w - 2).astype(jnp.float32).reshape(1, hw)  # valid for ox=+1
    return ind_h, ind_v, bc_h, bc_v, msk_l, msk_r


# ---------------------------------------------------------------------------
# Public wrapper: NCHW in / NCHW out (no transposes, only free reshapes)
# ---------------------------------------------------------------------------

def bcm_block(x_nchw, params):
    n, c, h, w = x_nchw.shape
    hw = h * w
    x = x_nchw.reshape(n, c, hw).astype(jnp.float32)
    consts = _make_consts(h, w)
    p9 = params["wr"].shape[0]                                # per_pix_channel

    param_order = ["w1a", "b1a", "w1b", "b1b", "wb1", "bb1", "wh", "wv",
                   "wf", "bf", "wr", "br", "w2a", "b2a", "w2b", "b2b"]
    param_args = [params[k].astype(jnp.float32) for k in param_order]

    def full_spec(a):
        nd = a.ndim
        return pl.BlockSpec(a.shape, lambda i, _nd=nd: (0,) * _nd)

    batch_spec = lambda cc: pl.BlockSpec((1, cc, hw), lambda i: (i, 0, 0))

    in_specs = [batch_spec(c)]
    in_specs += [full_spec(a) for a in consts]
    in_specs += [full_spec(a) for a in param_args]

    out_shapes = (
        jax.ShapeDtypeStruct((n, c, hw), jnp.float32),   # encode_feature
        jax.ShapeDtypeStruct((n, p9, hw), jnp.float32),  # reblur_filter[0]
        jax.ShapeDtypeStruct((n, c, hw), jnp.float32),   # blur
        jax.ShapeDtypeStruct((n, c, hw), jnp.float32),   # conv
        jax.ShapeDtypeStruct((n, c, hw), jnp.float32),   # sharpen
    )
    out_specs = (batch_spec(c), batch_spec(p9), batch_spec(c),
                 batch_spec(c), batch_spec(c))

    scratch = [
        pltpu.VMEM((c, _LPAD + hw + (w + 1)), jnp.float32),  # pad buf (3x3 convs)
        pltpu.VMEM((9 * c, hw), jnp.float32),                # im2col (3x3 convs)
        pltpu.VMEM((c, _LPAD + w + 1), jnp.float32),         # pad buf conv_h
        pltpu.VMEM((3 * c, w), jnp.float32),                 # im2col conv_h
        pltpu.VMEM((c, _LPAD + h + 1), jnp.float32),         # pad buf conv_v
        pltpu.VMEM((3 * c, h), jnp.float32),                 # im2col conv_v
    ]

    kern = functools.partial(_bcm_kernel, h=h, w=w)
    feat, reblur, blur, conv1, sharp = pl.pallas_call(
        kern,
        out_shape=out_shapes,
        grid=(n,),
        in_specs=in_specs,
        out_specs=out_specs,
        scratch_shapes=scratch,
        compiler_params=pltpu.CompilerParams(
            dimension_semantics=("parallel",)),
    )(x, *consts, *param_args)

    rs = lambda a: a.reshape(n, a.shape[1], h, w)
    return {
        "encode_feature": rs(feat),
        "reblur_filter": [rs(reblur)],
        "blur": rs(blur),
        "conv": rs(conv1),
        "sharpen": rs(sharp),
    }


# ---------------------------------------------------------------------------
# Parameter init (synthetic; weights stored as (Cout, Kh*Kw*Cin), bias (Cout,1))
# ---------------------------------------------------------------------------

def init_params(key, c, per_pix_channel):
    ks = jax.random.split(key, 16)

    def wgt(k, cout, cin, kh, kw, scale=0.05):
        return scale * jax.random.normal(k, (cout, kh * kw * cin), jnp.float32)

    def bias(k, cout, scale=0.05):
        return scale * jax.random.normal(k, (cout, 1), jnp.float32)

    p = {}
    p["w1a"], p["b1a"] = wgt(ks[0], c, c, 3, 3), bias(ks[1], c)       # conv3x3_lv1
    p["w1b"], p["b1b"] = wgt(ks[2], c, c, 3, 3), bias(ks[3], c)
    p["wb1"], p["bb1"] = wgt(ks[4], c, c, 1, 1), bias(ks[5], c)       # BCM 1x1 conv
    p["wh"] = wgt(ks[6], c, c, 1, 3)                                  # conv_h (no bias)
    p["wv"] = wgt(ks[7], c, c, 3, 1)                                  # conv_v (no bias)
    p["wf"], p["bf"] = wgt(ks[8], c, c, 3, 3), bias(ks[9], c)         # conv_fusion
    p["wr"], p["br"] = wgt(ks[10], per_pix_channel, c, 3, 3), bias(ks[11], per_pix_channel)
    p["w2a"], p["b2a"] = wgt(ks[12], c, c, 3, 3), bias(ks[13], c)     # conv3x3_lv2
    p["w2b"], p["b2b"] = wgt(ks[14], c, c, 3, 3), bias(ks[15], c)
    return p


# ---------------------------------------------------------------------------
# Pure-JAX reference (for correctness check)
# ---------------------------------------------------------------------------

def _conv_ref(x, w_mat, b, kh, kw):
    cout = w_mat.shape[0]
    cin = x.shape[1]
    w4 = w_mat.reshape(cout, kh, kw, cin).transpose(0, 3, 1, 2)   # OIHW
    y = jax.lax.conv_general_dilated(
        x, w4, window_strides=(1, 1),
        padding=((kh // 2, kh // 2), (kw // 2, kw // 2)),
        dimension_numbers=("NCHW", "OIHW", "NCHW"),
        precision=jax.lax.Precision.HIGHEST)
    if b is not None:
        y = y + b.reshape(1, cout, 1, 1)
    return y


def bcm_ref(x, p):
    relu = lambda a: jnp.maximum(a, 0.0)
    leaky = lambda a: jnp.where(a > 0, a, 0.2 * a)
    conv1 = _conv_ref(relu(_conv_ref(x, p["w1a"], p["b1a"], 3, 3)),
                      p["w1b"], p["b1b"], 3, 3) + x
    xb = _conv_ref(conv1, p["wb1"], p["bb1"], 1, 1)
    xh = _conv_ref(jnp.mean(xb, axis=2, keepdims=True), p["wh"], None, 1, 3)
    xv = _conv_ref(jnp.mean(xb, axis=3, keepdims=True), p["wv"], None, 3, 1)
    comb = leaky(xb + xh + xv)      # broadcast == bilinear(align_corners) from size-1
    blur2 = leaky(_conv_ref(comb, p["wf"], p["bf"], 3, 3))
    reblur = leaky(_conv_ref(blur2, p["wr"], p["br"], 3, 3))
    sharpen2 = conv1 - blur2
    result = _conv_ref(relu(_conv_ref(sharpen2, p["w2a"], p["b2a"], 3, 3)),
                       p["w2b"], p["b2b"], 3, 3) + sharpen2
    return {"encode_feature": result, "reblur_filter": [reblur],
            "blur": blur2, "conv": conv1, "sharpen": sharpen2}


# ---------------------------------------------------------------------------
# Main
# ---------------------------------------------------------------------------

if __name__ == "__main__":
    key = jax.random.PRNGKey(0)
    kx, kp = jax.random.split(key)

    N, C, H, W = 2, 4, 16, 16
    per_pix_kernel = 3            # opt.per_pix_kernel -> per_pix_channel = 9

    x_nchw = jax.random.normal(kx, (N, C, H, W), jnp.float32)
    params = init_params(kp, C, per_pix_kernel ** 2)

    out = jax.jit(bcm_block)(x_nchw, params)
    out = jax.tree_util.tree_map(jax.block_until_ready, out)

    # shape checks (NCHW, as in the PyTorch module)
    assert out["encode_feature"].shape == (N, C, H, W)
    assert out["reblur_filter"][0].shape == (N, per_pix_kernel ** 2, H, W)
    assert out["blur"].shape == (N, C, H, W)
    assert out["conv"].shape == (N, C, H, W)
    assert out["sharpen"].shape == (N, C, H, W)

    # numerical check against a pure-JAX reference
    ref = bcm_ref(x_nchw, params)
    for k in ("encode_feature", "blur", "conv", "sharpen"):
        err = float(jnp.max(jnp.abs(out[k] - ref[k])))
        assert err < 1e-3, (k, err)
    err = float(jnp.max(jnp.abs(out["reblur_filter"][0] - ref["reblur_filter"][0])))
    assert err < 1e-3, ("reblur_filter", err)

    print("KERNEL_OK")
</pallas_src>

<mosaic_0001>
module attributes {stable_mosaic.version = 11 : i64} {
  func.func @_bcm_kernel(%arg0: i32, %arg1: memref<1x4x256xf32, #tpu.memory_space<vmem>>, %arg2: memref<256x16xf32, #tpu.memory_space<vmem>>, %arg3: memref<256x16xf32, #tpu.memory_space<vmem>>, %arg4: memref<16x256xf32, #tpu.memory_space<vmem>>, %arg5: memref<16x256xf32, #tpu.memory_space<vmem>>, %arg6: memref<1x256xf32, #tpu.memory_space<vmem>>, %arg7: memref<1x256xf32, #tpu.memory_space<vmem>>, %arg8: memref<4x36xf32, #tpu.memory_space<vmem>>, %arg9: memref<4x1xf32, #tpu.memory_space<vmem>>, %arg10: memref<4x36xf32, #tpu.memory_space<vmem>>, %arg11: memref<4x1xf32, #tpu.memory_space<vmem>>, %arg12: memref<4x4xf32, #tpu.memory_space<vmem>>, %arg13: memref<4x1xf32, #tpu.memory_space<vmem>>, %arg14: memref<4x12xf32, #tpu.memory_space<vmem>>, %arg15: memref<4x12xf32, #tpu.memory_space<vmem>>, %arg16: memref<4x36xf32, #tpu.memory_space<vmem>>, %arg17: memref<4x1xf32, #tpu.memory_space<vmem>>, %arg18: memref<9x36xf32, #tpu.memory_space<vmem>>, %arg19: memref<9x1xf32, #tpu.memory_space<vmem>>, %arg20: memref<4x36xf32, #tpu.memory_space<vmem>>, %arg21: memref<4x1xf32, #tpu.memory_space<vmem>>, %arg22: memref<4x36xf32, #tpu.memory_space<vmem>>, %arg23: memref<4x1xf32, #tpu.memory_space<vmem>>, %arg24: memref<1x4x256xf32, #tpu.memory_space<vmem>>, %arg25: memref<1x9x256xf32, #tpu.memory_space<vmem>>, %arg26: memref<1x4x256xf32, #tpu.memory_space<vmem>>, %arg27: memref<1x4x256xf32, #tpu.memory_space<vmem>>, %arg28: memref<1x4x256xf32, #tpu.memory_space<vmem>>, %arg29: memref<4x401xf32, #tpu.memory_space<vmem>>, %arg30: memref<36x256xf32, #tpu.memory_space<vmem>>, %arg31: memref<4x145xf32, #tpu.memory_space<vmem>>, %arg32: memref<12x16xf32, #tpu.memory_space<vmem>>, %arg33: memref<4x145xf32, #tpu.memory_space<vmem>>, %arg34: memref<12x16xf32, #tpu.memory_space<vmem>>) attributes {dimension_semantics = [#tpu.dimension_semantics<parallel>], iteration_bounds = array<i64: 2>, scalar_prefetch = 0 : i64, scratch_operands = 6 : i64, tpu.core_type = #tpu.core_type<tc>, window_params = [{transform_indices = @transform_0, window_bounds = array<i64: 1, 4, 256>}, {pipeline_mode = #tpu.pipeline_mode<synchronous>, transform_indices = @transform_1, window_bounds = array<i64: 256, 16>}, {pipeline_mode = #tpu.pipeline_mode<synchronous>, transform_indices = @transform_2, window_bounds = array<i64: 256, 16>}, {pipeline_mode = #tpu.pipeline_mode<synchronous>, transform_indices = @transform_3, window_bounds = array<i64: 16, 256>}, {pipeline_mode = #tpu.pipeline_mode<synchronous>, transform_indices = @transform_4, window_bounds = array<i64: 16, 256>}, {pipeline_mode = #tpu.pipeline_mode<synchronous>, transform_indices = @transform_5, window_bounds = array<i64: 1, 256>}, {pipeline_mode = #tpu.pipeline_mode<synchronous>, transform_indices = @transform_6, window_bounds = array<i64: 1, 256>}, {pipeline_mode = #tpu.pipeline_mode<synchronous>, transform_indices = @transform_7, window_bounds = array<i64: 4, 36>}, {pipeline_mode = #tpu.pipeline_mode<synchronous>, transform_indices = @transform_8, window_bounds = array<i64: 4, 1>}, {pipeline_mode = #tpu.pipeline_mode<synchronous>, transform_indices = @transform_9, window_bounds = array<i64: 4, 36>}, {pipeline_mode = #tpu.pipeline_mode<synchronous>, transform_indices = @transform_10, window_bounds = array<i64: 4, 1>}, {pipeline_mode = #tpu.pipeline_mode<synchronous>, transform_indices = @transform_11, window_bounds = array<i64: 4, 4>}, {pipeline_mode = #tpu.pipeline_mode<synchronous>, transform_indices = @transform_12, window_bounds = array<i64: 4, 1>}, {pipeline_mode = #tpu.pipeline_mode<synchronous>, transform_indices = @transform_13, window_bounds = array<i64: 4, 12>}, {pipeline_mode = #tpu.pipeline_mode<synchronous>, transform_indices = @transform_14, window_bounds = array<i64: 4, 12>}, {pipeline_mode = #tpu.pipeline_mode<synchronous>, transform_indices = @transform_15, window_bounds = array<i64: 4, 36>}, {pipeline_mode = #tpu.pipeline_mode<synchronous>, transform_indices = @transform_16, window_bounds = array<i64: 4, 1>}, {pipeline_mode = #tpu.pipeline_mode<synchronous>, transform_indices = @transform_17, window_bounds = array<i64: 9, 36>}, {pipeline_mode = #tpu.pipeline_mode<synchronous>, transform_indices = @transform_18, window_bounds = array<i64: 9, 1>}, {pipeline_mode = #tpu.pipeline_mode<synchronous>, transform_indices = @transform_19, window_bounds = array<i64: 4, 36>}, {pipeline_mode = #tpu.pipeline_mode<synchronous>, transform_indices = @transform_20, window_bounds = array<i64: 4, 1>}, {pipeline_mode = #tpu.pipeline_mode<synchronous>, transform_indices = @transform_21, window_bounds = array<i64: 4, 36>}, {pipeline_mode = #tpu.pipeline_mode<synchronous>, transform_indices = @transform_22, window_bounds = array<i64: 4, 1>}, {transform_indices = @transform_23, window_bounds = array<i64: 1, 4, 256>}, {transform_indices = @transform_24, window_bounds = array<i64: 1, 9, 256>}, {transform_indices = @transform_25, window_bounds = array<i64: 1, 4, 256>}, {transform_indices = @transform_26, window_bounds = array<i64: 1, 4, 256>}, {transform_indices = @transform_27, window_bounds = array<i64: 1, 4, 256>}]} {
    %cst = arith.constant 0.000000e+00 : f32
    %0 = vector.broadcast %cst : f32 to vector<4x401xf32>
    %c0 = arith.constant 0 : index
    %c0_0 = arith.constant 0 : index
    %1 = vector.load %arg29[%c0, %c0_0] : memref<4x401xf32, #tpu.memory_space<vmem>>, vector<4x401xf32>
    tpu.vector_store %arg29[%c0, %c0_0], %0 {strides = array<i32>} : memref<4x401xf32, #tpu.memory_space<vmem>>, vector<4x401xf32>,
    %cst_1 = arith.constant 0.000000e+00 : f32
    %2 = vector.broadcast %cst_1 : f32 to vector<4x145xf32>
    %c0_2 = arith.constant 0 : index
    %c0_3 = arith.constant 0 : index
    %3 = vector.load %arg31[%c0_2, %c0_3] : memref<4x145xf32, #tpu.memory_space<vmem>>, vector<4x145xf32>
    tpu.vector_store %arg31[%c0_2, %c0_3], %2 {strides = array<i32>} : memref<4x145xf32, #tpu.memory_space<vmem>>, vector<4x145xf32>,
    %cst_4 = arith.constant 0.000000e+00 : f32
    %4 = vector.broadcast %cst_4 : f32 to vector<4x145xf32>
    %c0_5 = arith.constant 0 : index
    %c0_6 = arith.constant 0 : index
    %5 = vector.load %arg33[%c0_5, %c0_6] : memref<4x145xf32, #tpu.memory_space<vmem>>, vector<4x145xf32>
    tpu.vector_store %arg33[%c0_5, %c0_6], %4 {strides = array<i32>} : memref<4x145xf32, #tpu.memory_space<vmem>>, vector<4x145xf32>,
    %c0_7 = arith.constant 0 : index
    %c0_8 = arith.constant 0 : index
    %c0_9 = arith.constant 0 : index
    %6 = vector.load %arg1[%c0_7, %c0_8, %c0_9] : memref<1x4x256xf32, #tpu.memory_space<vmem>>, vector<1x4x256xf32>
    %7 = vector.shape_cast %6 : vector<1x4x256xf32> to vector<4x256xf32>
    %c0_10 = arith.constant 0 : index
    %c0_11 = arith.constant 0 : index
    %8 = vector.load %arg6[%c0_10, %c0_11] : memref<1x256xf32, #tpu.memory_space<vmem>>, vector<1x256xf32>
    %c0_12 = arith.constant 0 : index
    %c0_13 = arith.constant 0 : index
    %9 = vector.load %arg7[%c0_12, %c0_13] : memref<1x256xf32, #tpu.memory_space<vmem>>, vector<1x256xf32>
    %c0_14 = arith.constant 0 : index
    %c0_15 = arith.constant 0 : index
    %10 = vector.load %arg8[%c0_14, %c0_15] : memref<4x36xf32, #tpu.memory_space<vmem>>, vector<4x36xf32>
    %c0_16 = arith.constant 0 : index
    %c0_17 = arith.constant 0 : index
    %11 = vector.load %arg9[%c0_16, %c0_17] : memref<4x1xf32, #tpu.memory_space<vmem>>, vector<4x1xf32>
    %c0_18 = arith.constant 0 : index
    %c128 = arith.constant 128 : index
    %12 = vector.load %arg29[%c0_18, %c128] : memref<4x401xf32, #tpu.memory_space<vmem>>, vector<4x256xf32>
    tpu.vector_store %arg29[%c0_18, %c128], %7 {strides = array<i32>} : memref<4x401xf32, #tpu.memory_space<vmem>>, vector<4x256xf32>,
    %c0_19 = arith.constant 0 : index
    %c111 = arith.constant 111 : index
    %13 = vector.load %arg29[%c0_19, %c111] : memref<4x401xf32, #tpu.memory_space<vmem>>, vector<4x256xf32>
    %14 = vector.broadcast %8 : vector<1x256xf32> to vector<4x256xf32>
    %15 = arith.mulf %13, %14 : vector<4x256xf32>
    %c0_20 = arith.constant 0 : index
    %c0_21 = arith.constant 0 : index
    %16 = vector.load %arg30[%c0_20, %c0_21] : memref<36x256xf32, #tpu.memory_space<vmem>>, vector<4x256xf32>
    tpu.vector_store %arg30[%c0_20, %c0_21], %15 {strides = array<i32>} : memref<36x256xf32, #tpu.memory_space<vmem>>, vector<4x256xf32>,
    %c0_22 = arith.constant 0 : index
    %c112 = arith.constant 112 : index
    %17 = vector.load %arg29[%c0_22, %c112] : memref<4x401xf32, #tpu.memory_space<vmem>>, vector<4x256xf32>
    %c4 = arith.constant 4 : index
    %c0_23 = arith.constant 0 : index
    %18 = vector.load %arg30[%c4, %c0_23] : memref<36x256xf32, #tpu.memory_space<vmem>>, vector<4x256xf32>
    tpu.vector_store %arg30[%c4, %c0_23], %17 {strides = array<i32>} : memref<36x256xf32, #tpu.memory_space<vmem>>, vector<4x256xf32>,
    %c0_24 = arith.constant 0 : index
    %c113 = arith.constant 113 : index
    %19 = vector.load %arg29[%c0_24, %c113] : memref<4x401xf32, #tpu.memory_space<vmem>>, vector<4x256xf32>
    %20 = vector.broadcast %9 : vector<1x256xf32> to vector<4x256xf32>
    %21 = arith.mulf %19, %20 : vector<4x256xf32>
    %c8 = arith.constant 8 : index
    %c0_25 = arith.constant 0 : index
    %22 = vector.load %arg30[%c8, %c0_25] : memref<36x256xf32, #tpu.memory_space<vmem>>, vector<4x256xf32>
    tpu.vector_store %arg30[%c8, %c0_25], %21 {strides = array<i32>} : memref<36x256xf32, #tpu.memory_space<vmem>>, vector<4x256xf32>,
    %c0_26 = arith.constant 0 : index
    %c127 = arith.constant 127 : index
    %23 = vector.load %arg29[%c0_26, %c127] : memref<4x401xf32, #tpu.memory_space<vmem>>, vector<4x256xf32>
    %24 = vector.broadcast %8 : vector<1x256xf32> to vector<4x256xf32>
    %25 = arith.mulf %23, %24 : vector<4x256xf32>
    %c12 = arith.constant 12 : index
    %c0_27 = arith.constant 0 : index
    %26 = vector.load %arg30[%c12, %c0_27] : memref<36x256xf32, #tpu.memory_space<vmem>>, vector<4x256xf32>
    tpu.vector_store %arg30[%c12, %c0_27], %25 {strides = array<i32>} : memref<36x256xf32, #tpu.memory_space<vmem>>, vector<4x256xf32>,
    %c0_28 = arith.constant 0 : index
    %c128_29 = arith.constant 128 : index
    %27 = vector.load %arg29[%c0_28, %c128_29] : memref<4x401xf32, #tpu.memory_space<vmem>>, vector<4x256xf32>
    %c16 = arith.constant 16 : index
    %c0_30 = arith.constant 0 : index
    %28 = vector.load %arg30[%c16, %c0_30] : memref<36x256xf32, #tpu.memory_space<vmem>>, vector<4x256xf32>
    tpu.vector_store %arg30[%c16, %c0_30], %27 {strides = array<i32>} : memref<36x256xf32, #tpu.memory_space<vmem>>, vector<4x256xf32>,
    %c0_31 = arith.constant 0 : index
    %c129 = arith.constant 129 : index
    %29 = vector.load %arg29[%c0_31, %c129] : memref<4x401xf32, #tpu.memory_space<vmem>>, vector<4x256xf32>
    %30 = vector.broadcast %9 : vector<1x256xf32> to vector<4x256xf32>
    %31 = arith.mulf %29, %30 : vector<4x256xf32>
    %c20 = arith.constant 20 : index
    %c0_32 = arith.constant 0 : index
    %32 = vector.load %arg30[%c20, %c0_32] : memref<36x256xf32, #tpu.memory_space<vmem>>, vector<4x256xf32>
    tpu.vector_store %arg30[%c20, %c0_32], %31 {strides = array<i32>} : memref<36x256xf32, #tpu.memory_space<vmem>>, vector<4x256xf32>,
    %c0_33 = arith.constant 0 : index
    %c143 = arith.constant 143 : index
    %33 = vector.load %arg29[%c0_33, %c143] : memref<4x401xf32, #tpu.memory_space<vmem>>, vector<4x256xf32>
    %34 = vector.broadcast %8 : vector<1x256xf32> to vector<4x256xf32>
    %35 = arith.mulf %33, %34 : vector<4x256xf32>
    %c24 = arith.constant 24 : index
    %c0_34 = arith.constant 0 : index
    %36 = vector.load %arg30[%c24, %c0_34] : memref<36x256xf32, #tpu.memory_space<vmem>>, vector<4x256xf32>
    tpu.vector_store %arg30[%c24, %c0_34], %35 {strides = array<i32>} : memref<36x256xf32, #tpu.memory_space<vmem>>, vector<4x256xf32>,
    %c0_35 = arith.constant 0 : index
    %c144 = arith.constant 144 : index
    %37 = vector.load %arg29[%c0_35, %c144] : memref<4x401xf32, #tpu.memory_space<vmem>>, vector<4x256xf32>
    %c28 = arith.constant 28 : index
    %c0_36 = arith.constant 0 : index
    %38 = vector.load %arg30[%c28, %c0_36] : memref<36x256xf32, #tpu.memory_space<vmem>>, vector<4x256xf32>
    tpu.vector_store %arg30[%c28, %c0_36], %37 {strides = array<i32>} : memref<36x256xf32, #tpu.memory_space<vmem>>, vector<4x256xf32>,
    %c0_37 = arith.constant 0 : index
    %c145 = arith.constant 145 : index
    %39 = vector.load %arg29[%c0_37, %c145] : memref<4x401xf32, #tpu.memory_space<vmem>>, vector<4x256xf32>
    %40 = vector.broadcast %9 : vector<1x256xf32> to vector<4x256xf32>
    %41 = arith.mulf %39, %40 : vector<4x256xf32>
    %c32 = arith.constant 32 : index
    %c0_38 = arith.constant 0 : index
    %42 = vector.load %arg30[%c32, %c0_38] : memref<36x256xf32, #tpu.memory_space<vmem>>, vector<4x256xf32>
    tpu.vector_store %arg30[%c32, %c0_38], %41 {strides = array<i32>} : memref<36x256xf32, #tpu.memory_space<vmem>>, vector<4x256xf32>,
    %c0_39 = arith.constant 0 : index
    %c0_40 = arith.constant 0 : index
    %43 = vector.load %arg30[%c0_39, %c0_40] : memref<36x256xf32, #tpu.memory_space<vmem>>, vector<36x256xf32>
    %cst_41 = arith.constant dense<0.000000e+00> : vector<4x256xf32>
    %44 = tpu.matmul %10, %43, %cst_41 {dimension_numbers = #tpu.dot_dimension_numbers<[1], [0], [0], [1], [0, 0, 1, 1], [], []>} : vector<4x36xf32>, vector<36x256xf32>, vector<4x256xf32> -> vector<4x256xf32>
    %45 = vector.broadcast %11 : vector<4x1xf32> to vector<4x256xf32>
    %46 = arith.addf %44, %45 : vector<4x256xf32>
    %cst_42 = arith.constant 0.000000e+00 : f32
    %47 = vector.broadcast %cst_42 : f32 to vector<4x256xf32>
    %48 = arith.maximumf %46, %47 : vector<4x256xf32>
    %c0_43 = arith.constant 0 : index
    %c0_44 = arith.constant 0 : index
    %49 = vector.load %arg10[%c0_43, %c0_44] : memref<4x36xf32, #tpu.memory_space<vmem>>, vector<4x36xf32>
    %c0_45 = arith.constant 0 : index
    %c0_46 = arith.constant 0 : index
    %50 = vector.load %arg11[%c0_45, %c0_46] : memref<4x1xf32, #tpu.memory_space<vmem>>, vector<4x1xf32>
    %c0_47 = arith.constant 0 : index
    %c128_48 = arith.constant 128 : index
    %51 = vector.load %arg29[%c0_47, %c128_48] : memref<4x401xf32, #tpu.memory_space<vmem>>, vector<4x256xf32>
    tpu.vector_store %arg29[%c0_47, %c128_48], %48 {strides = array<i32>} : memref<4x401xf32, #tpu.memory_space<vmem>>, vector<4x256xf32>,
    %c0_49 = arith.constant 0 : index
    %c111_50 = arith.constant 111 : index
    %52 = vector.load %arg29[%c0_49, %c111_50] : memref<4x401xf32, #tpu.memory_space<vmem>>, vector<4x256xf32>
    %53 = vector.broadcast %8 : vector<1x256xf32> to vector<4x256xf32>
    %54 = arith.mulf %52, %53 : vector<4x256xf32>
    %c0_51 = arith.constant 0 : index
    %c0_52 = arith.constant 0 : index
    %55 = vector.load %arg30[%c0_51, %c0_52] : memref<36x256xf32, #tpu.memory_space<vmem>>, vector<4x256xf32>
    tpu.vector_store %arg30[%c0_51, %c0_52], %54 {strides = array<i32>} : memref<36x256xf32, #tpu.memory_space<vmem>>, vector<4x256xf32>,
    %c0_53 = arith.constant 0 : index
    %c112_54 = arith.constant 112 : index
    %56 = vector.load %arg29[%c0_53, %c112_54] : memref<4x401xf32, #tpu.memory_space<vmem>>, vector<4x256xf32>
    %c4_55 = arith.constant 4 : index
    %c0_56 = arith.constant 0 : index
    %57 = vector.load %arg30[%c4_55, %c0_56] : memref<36x256xf32, #tpu.memory_space<vmem>>, vector<4x256xf32>
    tpu.vector_store %arg30[%c4_55, %c0_56], %56 {strides = array<i32>} : memref<36x256xf32, #tpu.memory_space<vmem>>, vector<4x256xf32>,
    %c0_57 = arith.constant 0 : index
    %c113_58 = arith.constant 113 : index
    %58 = vector.load %arg29[%c0_57, %c113_58] : memref<4x401xf32, #tpu.memory_space<vmem>>, vector<4x256xf32>
    %59 = vector.broadcast %9 : vector<1x256xf32> to vector<4x256xf32>
    %60 = arith.mulf %58, %59 : vector<4x256xf32>
    %c8_59 = arith.constant 8 : index
    %c0_60 = arith.constant 0 : index
    %61 = vector.load %arg30[%c8_59, %c0_60] : memref<36x256xf32, #tpu.memory_space<vmem>>, vector<4x256xf32>
    tpu.vector_store %arg30[%c8_59, %c0_60], %60 {strides = array<i32>} : memref<36x256xf32, #tpu.memory_space<vmem>>, vector<4x256xf32>,
    %c0_61 = arith.constant 0 : index
    %c127_62 = arith.constant 127 : index
    %62 = vector.load %arg29[%c0_61, %c127_62] : memref<4x401xf32, #tpu.memory_space<vmem>>, vector<4x256xf32>
    %63 = vector.broadcast %8 : vector<1x256xf32> to vector<4x256xf32>
    %64 = arith.mulf %62, %63 : vector<4x256xf32>
    %c12_63 = arith.constant 12 : index
    %c0_64 = arith.constant 0 : index
    %65 = vector.load %arg30[%c12_63, %c0_64] : memref<36x256xf32, #tpu.memory_space<vmem>>, vector<4x256xf32>
    tpu.vector_store %arg30[%c12_63, %c0_64], %64 {strides = array<i32>} : memref<36x256xf32, #tpu.memory_space<vmem>>, vector<4x256xf32>,
    %c0_65 = arith.constant 0 : index
    %c128_66 = arith.constant 128 : index
    %66 = vector.load %arg29[%c0_65, %c128_66] : memref<4x401xf32, #tpu.memory_space<vmem>>, vector<4x256xf32>
    %c16_67 = arith.constant 16 : index
    %c0_68 = arith.constant 0 : index
    %67 = vector.load %arg30[%c16_67, %c0_68] : memref<36x256xf32, #tpu.memory_space<vmem>>, vector<4x256xf32>
    tpu.vector_store %arg30[%c16_67, %c0_68], %66 {strides = array<i32>} : memref<36x256xf32, #tpu.memory_space<vmem>>, vector<4x256xf32>,
    %c0_69 = arith.constant 0 : index
    %c129_70 = arith.constant 129 : index
    %68 = vector.load %arg29[%c0_69, %c129_70] : memref<4x401xf32, #tpu.memory_space<vmem>>, vector<4x256xf32>
    %69 = vector.broadcast %9 : vector<1x256xf32> to vector<4x256xf32>
    %70 = arith.mulf %68, %69 : vector<4x256xf32>
    %c20_71 = arith.constant 20 : index
    %c0_72 = arith.constant 0 : index
    %71 = vector.load %arg30[%c20_71, %c0_72] : memref<36x256xf32, #tpu.memory_space<vmem>>, vector<4x256xf32>
    tpu.vector_store %arg30[%c20_71, %c0_72], %70 {strides = array<i32>} : memref<36x256xf32, #tpu.memory_space<vmem>>, vector<4x256xf32>,
    %c0_73 = arith.constant 0 : index
    %c143_74 = arith.constant 143 : index
    %72 = vector.load %arg29[%c0_73, %c143_74] : memref<4x401xf32, #tpu.memory_space<vmem>>, vector<4x256xf32>
    %73 = vector.broadcast %8 : vector<1x256xf32> to vector<4x256xf32>
    %74 = arith.mulf %72, %73 : vector<4x256xf32>
    %c24_75 = arith.constant 24 : index
    %c0_76 = arith.constant 0 : index
    %75 = vector.load %arg30[%c24_75, %c0_76] : memref<36x256xf32, #tpu.memory_space<vmem>>, vector<4x256xf32>
    tpu.vector_store %arg30[%c24_75, %c0_76], %74 {strides = array<i32>} : memref<36x256xf32, #tpu.memory_space<vmem>>, vector<4x256xf32>,
    %c0_77 = arith.constant 0 : index
    %c144_78 = arith.constant 144 : index
    %76 = vector.load %arg29[%c0_77, %c144_78] : memref<4x401xf32, #tpu.memory_space<vmem>>, vector<4x256xf32>
    %c28_79 = arith.constant 28 : index
    %c0_80 = arith.constant 0 : index
    %77 = vector.load %arg30[%c28_79, %c0_80] : memref<36x256xf32, #tpu.memory_space<vmem>>, vector<4x256xf32>
    tpu.vector_store %arg30[%c28_79, %c0_80], %76 {strides = array<i32>} : memref<36x256xf32, #tpu.memory_space<vmem>>, vector<4x256xf32>,
    %c0_81 = arith.constant 0 : index
    %c145_82 = arith.constant 145 : index
    %78 = vector.load %arg29[%c0_81, %c145_82] : memref<4x401xf32, #tpu.memory_space<vmem>>, vector<4x256xf32>
    %79 = vector.broadcast %9 : vector<1x256xf32> to vector<4x256xf32>
    %80 = arith.mulf %78, %79 : vector<4x256xf32>
    %c32_83 = arith.constant 32 : index
    %c0_84 = arith.constant 0 : index
    %81 = vector.load %arg30[%c32_83, %c0_84] : memref<36x256xf32, #tpu.memory_space<vmem>>, vector<4x256xf32>
    tpu.vector_store %arg30[%c32_83, %c0_84], %80 {strides = array<i32>} : memref<36x256xf32, #tpu.memory_space<vmem>>, vector<4x256xf32>,
    %c0_85 = arith.constant 0 : index
    %c0_86 = arith.constant 0 : index
    %82 = vector.load %arg30[%c0_85, %c0_86] : memref<36x256xf32, #tpu.memory_space<vmem>>, vector<36x256xf32>
    %cst_87 = arith.constant dense<0.000000e+00> : vector<4x256xf32>
    %83 = tpu.matmul %49, %82, %cst_87 {dimension_numbers = #tpu.dot_dimension_numbers<[1], [0], [0], [1], [0, 0, 1, 1], [], []>} : vector<4x36xf32>, vector<36x256xf32>, vector<4x256xf32> -> vector<4x256xf32>
    %84 = vector.broadcast %50 : vector<4x1xf32> to vector<4x256xf32>
    %85 = arith.addf %83, %84 : vector<4x256xf32>
    %86 = arith.addf %85, %7 : vector<4x256xf32>
    %c0_88 = arith.constant 0 : index
    %c0_89 = arith.constant 0 : index
    %c0_90 = arith.constant 0 : index
    %87 = vector.load %arg27[%c0_88, %c0_89, %c0_90] : memref<1x4x256xf32, #tpu.memory_space<vmem>>, vector<1x4x256xf32>
    %88 = vector.shape_cast %87 : vector<1x4x256xf32> to vector<4x256xf32>
    %89 = vector.shape_cast %86 : vector<4x256xf32> to vector<1x4x256xf32>
    tpu.vector_store %arg27[%c0_88, %c0_89, %c0_90], %89 {strides = array<i32>} : memref<1x4x256xf32, #tpu.memory_space<vmem>>, vector<1x4x256xf32>,
    %c0_91 = arith.constant 0 : index
    %c0_92 = arith.constant 0 : index
    %90 = vector.load %arg12[%c0_91, %c0_92] : memref<4x4xf32, #tpu.memory_space<vmem>>, vector<4x4xf32>
    %c0_93 = arith.constant 0 : index
    %c0_94 = arith.constant 0 : index
    %91 = vector.load %arg13[%c0_93, %c0_94] : memref<4x1xf32, #tpu.memory_space<vmem>>, vector<4x1xf32>
    %cst_95 = arith.constant dense<0.000000e+00> : vector<4x256xf32>
    %92 = tpu.matmul %90, %86, %cst_95 {dimension_numbers = #tpu.dot_dimension_numbers<[1], [0], [0], [1], [0, 0, 1, 1], [], []>} : vector<4x4xf32>, vector<4x256xf32>, vector<4x256xf32> -> vector<4x256xf32>
    %93 = vector.broadcast %91 : vector<4x1xf32> to vector<4x256xf32>
    %94 = arith.addf %92, %93 : vector<4x256xf32>
    %c0_96 = arith.constant 0 : index
    %c0_97 = arith.constant 0 : index
    %95 = vector.load %arg2[%c0_96, %c0_97] : memref<256x16xf32, #tpu.memory_space<vmem>>, vector<256x16xf32>
    %cst_98 = arith.constant dense<0.000000e+00> : vector<4x16xf32>
    %96 = tpu.matmul %94, %95, %cst_98 {dimension_numbers = #tpu.dot_dimension_numbers<[1], [0], [0], [1], [0, 0, 1, 1], [], []>} : vector<4x256xf32>, vector<256x16xf32>, vector<4x16xf32> -> vector<4x16xf32>
    %c0_99 = arith.constant 0 : index
    %c0_100 = arith.constant 0 : index
    %97 = vector.load %arg3[%c0_99, %c0_100] : memref<256x16xf32, #tpu.memory_space<vmem>>, vector<256x16xf32>
    %cst_101 = arith.constant dense<0.000000e+00> : vector<4x16xf32>
    %98 = tpu.matmul %94, %97, %cst_101 {dimension_numbers = #tpu.dot_dimension_numbers<[1], [0], [0], [1], [0, 0, 1, 1], [], []>} : vector<4x256xf32>, vector<256x16xf32>, vector<4x16xf32> -> vector<4x16xf32>
    %c0_102 = arith.constant 0 : index
    %c0_103 = arith.constant 0 : index
    %99 = vector.load %arg14[%c0_102, %c0_103] : memref<4x12xf32, #tpu.memory_space<vmem>>, vector<4x12xf32>
    %c0_104 = arith.constant 0 : index
    %c128_105 = arith.constant 128 : index
    %100 = vector.load %arg31[%c0_104, %c128_105] : memref<4x145xf32, #tpu.memory_space<vmem>>, vector<4x16xf32>
    tpu.vector_store %arg31[%c0_104, %c128_105], %96 {strides = array<i32>} : memref<4x145xf32, #tpu.memory_space<vmem>>, vector<4x16xf32>,
    %c0_106 = arith.constant 0 : index
    %c127_107 = arith.constant 127 : index
    %101 = vector.load %arg31[%c0_106, %c127_107] : memref<4x145xf32, #tpu.memory_space<vmem>>, vector<4x16xf32>
    %c0_108 = arith.constant 0 : index
    %c0_109 = arith.constant 0 : index
    %102 = vector.load %arg32[%c0_108, %c0_109] : memref<12x16xf32, #tpu.memory_space<vmem>>, vector<4x16xf32>
    tpu.vector_store %arg32[%c0_108, %c0_109], %101 {strides = array<i32>} : memref<12x16xf32, #tpu.memory_space<vmem>>, vector<4x16xf32>,
    %c0_110 = arith.constant 0 : index
    %c128_111 = arith.constant 128 : index
    %103 = vector.load %arg31[%c0_110, %c128_111] : memref<4x145xf32, #tpu.memory_space<vmem>>, vector<4x16xf32>
    %c4_112 = arith.constant 4 : index
    %c0_113 = arith.constant 0 : index
    %104 = vector.load %arg32[%c4_112, %c0_113] : memref<12x16xf32, #tpu.memory_space<vmem>>, vector<4x16xf32>
    tpu.vector_store %arg32[%c4_112, %c0_113], %103 {strides = array<i32>} : memref<12x16xf32, #tpu.memory_space<vmem>>, vector<4x16xf32>,
    %c0_114 = arith.constant 0 : index
    %c129_115 = arith.constant 129 : index
    %105 = vector.load %arg31[%c0_114, %c129_115] : memref<4x145xf32, #tpu.memory_space<vmem>>, vector<4x16xf32>
    %c8_116 = arith.constant 8 : index
    %c0_117 = arith.constant 0 : index
    %106 = vector.load %arg32[%c8_116, %c0_117] : memref<12x16xf32, #tpu.memory_space<vmem>>, vector<4x16xf32>
    tpu.vector_store %arg32[%c8_116, %c0_117], %105 {strides = array<i32>} : memref<12x16xf32, #tpu.memory_space<vmem>>, vector<4x16xf32>,
    %c0_118 = arith.constant 0 : index
    %c0_119 = arith.constant 0 : index
    %107 = vector.load %arg32[%c0_118, %c0_119] : memref<12x16xf32, #tpu.memory_space<vmem>>, vector<12x16xf32>
    %cst_120 = arith.constant dense<0.000000e+00> : vector<4x16xf32>
    %108 = tpu.matmul %99, %107, %cst_120 {dimension_numbers = #tpu.dot_dimension_numbers<[1], [0], [0], [1], [0, 0, 1, 1], [], []>} : vector<4x12xf32>, vector<12x16xf32>, vector<4x16xf32> -> vector<4x16xf32>
    %c0_121 = arith.constant 0 : index
    %c0_122 = arith.constant 0 : index
    %109 = vector.load %arg15[%c0_121, %c0_122] : memref<4x12xf32, #tpu.memory_space<vmem>>, vector<4x12xf32>
    %c0_123 = arith.constant 0 : index
    %c128_124 = arith.constant 128 : index
    %110 = vector.load %arg33[%c0_123, %c128_124] : memref<4x145xf32, #tpu.memory_space<vmem>>, vector<4x16xf32>
    tpu.vector_store %arg33[%c0_123, %c128_124], %98 {strides = array<i32>} : memref<4x145xf32, #tpu.memory_space<vmem>>, vector<4x16xf32>,
    %c0_125 = arith.constant 0 : index
    %c127_126 = arith.constant 127 : index
    %111 = vector.load %arg33[%c0_125, %c127_126] : memref<4x145xf32, #tpu.memory_space<vmem>>, vector<4x16xf32>
    %c0_127 = arith.constant 0 : index
    %c0_128 = arith.constant 0 : index
    %112 = vector.load %arg34[%c0_127, %c0_128] : memref<12x16xf32, #tpu.memory_space<vmem>>, vector<4x16xf32>
    tpu.vector_store %arg34[%c0_127, %c0_128], %111 {strides = array<i32>} : memref<12x16xf32, #tpu.memory_space<vmem>>, vector<4x16xf32>,
    %c0_129 = arith.constant 0 : index
    %c128_130 = arith.constant 128 : index
    %113 = vector.load %arg33[%c0_129, %c128_130] : memref<4x145xf32, #tpu.memory_space<vmem>>, vector<4x16xf32>
    %c4_131 = arith.constant 4 : index
    %c0_132 = arith.constant 0 : index
    %114 = vector.load %arg34[%c4_131, %c0_132] : memref<12x16xf32, #tpu.memory_space<vmem>>, vector<4x16xf32>
    tpu.vector_store %arg34[%c4_131, %c0_132], %113 {strides = array<i32>} : memref<12x16xf32, #tpu.memory_space<vmem>>, vector<4x16xf32>,
    %c0_133 = arith.constant 0 : index
    %c129_134 = arith.constant 129 : index
    %115 = vector.load %arg33[%c0_133, %c129_134] : memref<4x145xf32, #tpu.memory_space<vmem>>, vector<4x16xf32>
    %c8_135 = arith.constant 8 : index
    %c0_136 = arith.constant 0 : index
    %116 = vector.load %arg34[%c8_135, %c0_136] : memref<12x16xf32, #tpu.memory_space<vmem>>, vector<4x16xf32>
    tpu.vector_store %arg34[%c8_135, %c0_136], %115 {strides = array<i32>} : memref<12x16xf32, #tpu.memory_space<vmem>>, vector<4x16xf32>,
    %c0_137 = arith.constant 0 : index
    %c0_138 = arith.constant 0 : index
    %117 = vector.load %arg34[%c0_137, %c0_138] : memref<12x16xf32, #tpu.memory_space<vmem>>, vector<12x16xf32>
    %cst_139 = arith.constant dense<0.000000e+00> : vector<4x16xf32>
    %118 = tpu.matmul %109, %117, %cst_139 {dimension_numbers = #tpu.dot_dimension_numbers<[1], [0], [0], [1], [0, 0, 1, 1], [], []>} : vector<4x12xf32>, vector<12x16xf32>, vector<4x16xf32> -> vector<4x16xf32>
    %c0_140 = arith.constant 0 : index
    %c0_141 = arith.constant 0 : index
    %119 = vector.load %arg4[%c0_140, %c0_141] : memref<16x256xf32, #tpu.memory_space<vmem>>, vector<16x256xf32>
    %cst_142 = arith.constant dense<0.000000e+00> : vector<4x256xf32>
    %120 = tpu.matmul %108, %119, %cst_142 {dimension_numbers = #tpu.dot_dimension_numbers<[1], [0], [0], [1], [0, 0, 1, 1], [], []>} : vector<4x16xf32>, vector<16x256xf32>, vector<4x256xf32> -> vector<4x256xf32>
    %c0_143 = arith.constant 0 : index
    %c0_144 = arith.constant 0 : index
    %121 = vector.load %arg5[%c0_143, %c0_144] : memref<16x256xf32, #tpu.memory_space<vmem>>, vector<16x256xf32>
    %cst_145 = arith.constant dense<0.000000e+00> : vector<4x256xf32>
    %122 = tpu.matmul %118, %121, %cst_145 {dimension_numbers = #tpu.dot_dimension_numbers<[1], [0], [0], [1], [0, 0, 1, 1], [], []>} : vector<4x16xf32>, vector<16x256xf32>, vector<4x256xf32> -> vector<4x256xf32>
    %123 = arith.addf %94, %120 : vector<4x256xf32>
    %124 = arith.addf %123, %122 : vector<4x256xf32>
    %cst_146 = arith.constant 0.000000e+00 : f32
    %125 = vector.broadcast %cst_146 : f32 to vector<4x256xf32>
    %126 = arith.cmpf ogt, %124, %125 : vector<4x256xf32>
    %cst_147 = arith.constant 2.000000e-01 : f32
    %127 = vector.broadcast %cst_147 : f32 to vector<4x256xf32>
    %128 = arith.mulf %127, %124 : vector<4x256xf32>
    %129 = arith.select %126, %124, %128 : vector<4x256xi1>, vector<4x256xf32>
    %c0_148 = arith.constant 0 : index
    %c0_149 = arith.constant 0 : index
    %130 = vector.load %arg16[%c0_148, %c0_149] : memref<4x36xf32, #tpu.memory_space<vmem>>, vector<4x36xf32>
    %c0_150 = arith.constant 0 : index
    %c0_151 = arith.constant 0 : index
    %131 = vector.load %arg17[%c0_150, %c0_151] : memref<4x1xf32, #tpu.memory_space<vmem>>, vector<4x1xf32>
    %c0_152 = arith.constant 0 : index
    %c128_153 = arith.constant 128 : index
    %132 = vector.load %arg29[%c0_152, %c128_153] : memref<4x401xf32, #tpu.memory_space<vmem>>, vector<4x256xf32>
    tpu.vector_store %arg29[%c0_152, %c128_153], %129 {strides = array<i32>} : memref<4x401xf32, #tpu.memory_space<vmem>>, vector<4x256xf32>,
    %c0_154 = arith.constant 0 : index
    %c111_155 = arith.constant 111 : index
    %133 = vector.load %arg29[%c0_154, %c111_155] : memref<4x401xf32, #tpu.memory_space<vmem>>, vector<4x256xf32>
    %134 = vector.broadcast %8 : vector<1x256xf32> to vector<4x256xf32>
    %135 = arith.mulf %133, %134 : vector<4x256xf32>
    %c0_156 = arith.constant 0 : index
    %c0_157 = arith.constant 0 : index
    %136 = vector.load %arg30[%c0_156, %c0_157] : memref<36x256xf32, #tpu.memory_space<vmem>>, vector<4x256xf32>
    tpu.vector_store %arg30[%c0_156, %c0_157], %135 {strides = array<i32>} : memref<36x256xf32, #tpu.memory_space<vmem>>, vector<4x256xf32>,
    %c0_158 = arith.constant 0 : index
    %c112_159 = arith.constant 112 : index
    %137 = vector.load %arg29[%c0_158, %c112_159] : memref<4x401xf32, #tpu.memory_space<vmem>>, vector<4x256xf32>
    %c4_160 = arith.constant 4 : index
    %c0_161 = arith.constant 0 : index
    %138 = vector.load %arg30[%c4_160, %c0_161] : memref<36x256xf32, #tpu.memory_space<vmem>>, vector<4x256xf32>
    tpu.vector_store %arg30[%c4_160, %c0_161], %137 {strides = array<i32>} : memref<36x256xf32, #tpu.memory_space<vmem>>, vector<4x256xf32>,
    %c0_162 = arith.constant 0 : index
    %c113_163 = arith.constant 113 : index
    %139 = vector.load %arg29[%c0_162, %c113_163] : memref<4x401xf32, #tpu.memory_space<vmem>>, vector<4x256xf32>
    %140 = vector.broadcast %9 : vector<1x256xf32> to vector<4x256xf32>
    %141 = arith.mulf %139, %140 : vector<4x256xf32>
    %c8_164 = arith.constant 8 : index
    %c0_165 = arith.constant 0 : index
    %142 = vector.load %arg30[%c8_164, %c0_165] : memref<36x256xf32, #tpu.memory_space<vmem>>, vector<4x256xf32>
    tpu.vector_store %arg30[%c8_164, %c0_165], %141 {strides = array<i32>} : memref<36x256xf32, #tpu.memory_space<vmem>>, vector<4x256xf32>,
    %c0_166 = arith.constant 0 : index
    %c127_167 = arith.constant 127 : index
    %143 = vector.load %arg29[%c0_166, %c127_167] : memref<4x401xf32, #tpu.memory_space<vmem>>, vector<4x256xf32>
    %144 = vector.broadcast %8 : vector<1x256xf32> to vector<4x256xf32>
    %145 = arith.mulf %143, %144 : vector<4x256xf32>
    %c12_168 = arith.constant 12 : index
    %c0_169 = arith.constant 0 : index
    %146 = vector.load %arg30[%c12_168, %c0_169] : memref<36x256xf32, #tpu.memory_space<vmem>>, vector<4x256xf32>
    tpu.vector_store %arg30[%c12_168, %c0_169], %145 {strides = array<i32>} : memref<36x256xf32, #tpu.memory_space<vmem>>, vector<4x256xf32>,
    %c0_170 = arith.constant 0 : index
    %c128_171 = arith.constant 128 : index
    %147 = vector.load %arg29[%c0_170, %c128_171] : memref<4x401xf32, #tpu.memory_space<vmem>>, vector<4x256xf32>
    %c16_172 = arith.constant 16 : index
    %c0_173 = arith.constant 0 : index
    %148 = vector.load %arg30[%c16_172, %c0_173] : memref<36x256xf32, #tpu.memory_space<vmem>>, vector<4x256xf32>
    tpu.vector_store %arg30[%c16_172, %c0_173], %147 {strides = array<i32>} : memref<36x256xf32, #tpu.memory_space<vmem>>, vector<4x256xf32>,
    %c0_174 = arith.constant 0 : index
    %c129_175 = arith.constant 129 : index
    %149 = vector.load %arg29[%c0_174, %c129_175] : memref<4x401xf32, #tpu.memory_space<vmem>>, vector<4x256xf32>
    %150 = vector.broadcast %9 : vector<1x256xf32> to vector<4x256xf32>
    %151 = arith.mulf %149, %150 : vector<4x256xf32>
    %c20_176 = arith.constant 20 : index
    %c0_177 = arith.constant 0 : index
    %152 = vector.load %arg30[%c20_176, %c0_177] : memref<36x256xf32, #tpu.memory_space<vmem>>, vector<4x256xf32>
    tpu.vector_store %arg30[%c20_176, %c0_177], %151 {strides = array<i32>} : memref<36x256xf32, #tpu.memory_space<vmem>>, vector<4x256xf32>,
    %c0_178 = arith.constant 0 : index
    %c143_179 = arith.constant 143 : index
    %153 = vector.load %arg29[%c0_178, %c143_179] : memref<4x401xf32, #tpu.memory_space<vmem>>, vector<4x256xf32>
    %154 = vector.broadcast %8 : vector<1x256xf32> to vector<4x256xf32>
    %155 = arith.mulf %153, %154 : vector<4x256xf32>
    %c24_180 = arith.constant 24 : index
    %c0_181 = arith.constant 0 : index
    %156 = vector.load %arg30[%c24_180, %c0_181] : memref<36x256xf32, #tpu.memory_space<vmem>>, vector<4x256xf32>
    tpu.vector_store %arg30[%c24_180, %c0_181], %155 {strides = array<i32>} : memref<36x256xf32, #tpu.memory_space<vmem>>, vector<4x256xf32>,
    %c0_182 = arith.constant 0 : index
    %c144_183 = arith.constant 144 : index
    %157 = vector.load %arg29[%c0_182, %c144_183] : memref<4x401xf32, #tpu.memory_space<vmem>>, vector<4x256xf32>
    %c28_184 = arith.constant 28 : index
    %c0_185 = arith.constant 0 : index
    %158 = vector.load %arg30[%c28_184, %c0_185] : memref<36x256xf32, #tpu.memory_space<vmem>>, vector<4x256xf32>
    tpu.vector_store %arg30[%c28_184, %c0_185], %157 {strides = array<i32>} : memref<36x256xf32, #tpu.memory_space<vmem>>, vector<4x256xf32>,
    %c0_186 = arith.constant 0 : index
    %c145_187 = arith.constant 145 : index
    %159 = vector.load %arg29[%c0_186, %c145_187] : memref<4x401xf32, #tpu.memory_space<vmem>>, vector<4x256xf32>
    %160 = vector.broadcast %9 : vector<1x256xf32> to vector<4x256xf32>
    %161 = arith.mulf %159, %160 : vector<4x256xf32>
    %c32_188 = arith.constant 32 : index
    %c0_189 = arith.constant 0 : index
    %162 = vector.load %arg30[%c32_188, %c0_189] : memref<36x256xf32, #tpu.memory_space<vmem>>, vector<4x256xf32>
    tpu.vector_store %arg30[%c32_188, %c0_189], %161 {strides = array<i32>} : memref<36x256xf32, #tpu.memory_space<vmem>>, vector<4x256xf32>,
    %c0_190 = arith.constant 0 : index
    %c0_191 = arith.constant 0 : index
    %163 = vector.load %arg30[%c0_190, %c0_191] : memref<36x256xf32, #tpu.memory_space<vmem>>, vector<36x256xf32>
    %cst_192 = arith.constant dense<0.000000e+00> : vector<4x256xf32>
    %164 = tpu.matmul %130, %163, %cst_192 {dimension_numbers = #tpu.dot_dimension_numbers<[1], [0], [0], [1], [0, 0, 1, 1], [], []>} : vector<4x36xf32>, vector<36x256xf32>, vector<4x256xf32> -> vector<4x256xf32>
    %165 = vector.broadcast %131 : vector<4x1xf32> to vector<4x256xf32>
    %166 = arith.addf %164, %165 : vector<4x256xf32>
    %cst_193 = arith.constant 0.000000e+00 : f32
    %167 = vector.broadcast %cst_193 : f32 to vector<4x256xf32>
    %168 = arith.cmpf ogt, %166, %167 : vector<4x256xf32>
    %cst_194 = arith.constant 2.000000e-01 : f32
    %169 = vector.broadcast %cst_194 : f32 to vector<4x256xf32>
    %170 = arith.mulf %169, %166 : vector<4x256xf32>
    %171 = arith.select %168, %166, %170 : vector<4x256xi1>, vector<4x256xf32>
    %c0_195 = arith.constant 0 : index
    %c0_196 = arith.constant 0 : index
    %c0_197 = arith.constant 0 : index
    %172 = vector.load %arg26[%c0_195, %c0_196, %c0_197] : memref<1x4x256xf32, #tpu.memory_space<vmem>>, vector<1x4x256xf32>
    %173 = vector.shape_cast %172 : vector<1x4x256xf32> to vector<4x256xf32>
    %174 = vector.shape_cast %171 : vector<4x256xf32> to vector<1x4x256xf32>
    tpu.vector_store %arg26[%c0_195, %c0_196, %c0_197], %174 {strides = array<i32>} : memref<1x4x256xf32, #tpu.memory_space<vmem>>, vector<1x4x256xf32>,
    %c0_198 = arith.constant 0 : index
    %c0_199 = arith.constant 0 : index
    %175 = vector.load %arg18[%c0_198, %c0_199] : memref<9x36xf32, #tpu.memory_space<vmem>>, vector<9x36xf32>
    %c0_200 = arith.constant 0 : index
    %c0_201 = arith.constant 0 : index
    %176 = vector.load %arg19[%c0_200, %c0_201] : memref<9x1xf32, #tpu.memory_space<vmem>>, vector<9x1xf32>
    %c0_202 = arith.constant 0 : index
    %c128_203 = arith.constant 128 : index
    %177 = vector.load %arg29[%c0_202, %c128_203] : memref<4x401xf32, #tpu.memory_space<vmem>>, vector<4x256xf32>
    tpu.vector_store %arg29[%c0_202, %c128_203], %171 {strides = array<i32>} : memref<4x401xf32, #tpu.memory_space<vmem>>, vector<4x256xf32>,
    %c0_204 = arith.constant 0 : index
    %c111_205 = arith.constant 111 : index
    %178 = vector.load %arg29[%c0_204, %c111_205] : memref<4x401xf32, #tpu.memory_space<vmem>>, vector<4x256xf32>
    %179 = vector.broadcast %8 : vector<1x256xf32> to vector<4x256xf32>
    %180 = arith.mulf %178, %179 : vector<4x256xf32>
    %c0_206 = arith.constant 0 : index
    %c0_207 = arith.constant 0 : index
    %181 = vector.load %arg30[%c0_206, %c0_207] : memref<36x256xf32, #tpu.memory_space<vmem>>, vector<4x256xf32>
    tpu.vector_store %arg30[%c0_206, %c0_207], %180 {strides = array<i32>} : memref<36x256xf32, #tpu.memory_space<vmem>>, vector<4x256xf32>,
    %c0_208 = arith.constant 0 : index
    %c112_209 = arith.constant 112 : index
    %182 = vector.load %arg29[%c0_208, %c112_209] : memref<4x401xf32, #tpu.memory_space<vmem>>, vector<4x256xf32>
    %c4_210 = arith.constant 4 : index
    %c0_211 = arith.constant 0 : index
    %183 = vector.load %arg30[%c4_210, %c0_211] : memref<36x256xf32, #tpu.memory_space<vmem>>, vector<4x256xf32>
    tpu.vector_store %arg30[%c4_210, %c0_211], %182 {strides = array<i32>} : memref<36x256xf32, #tpu.memory_space<vmem>>, vector<4x256xf32>,
    %c0_212 = arith.constant 0 : index
    %c113_213 = arith.constant 113 : index
    %184 = vector.load %arg29[%c0_212, %c113_213] : memref<4x401xf32, #tpu.memory_space<vmem>>, vector<4x256xf32>
    %185 = vector.broadcast %9 : vector<1x256xf32> to vector<4x256xf32>
    %186 = arith.mulf %184, %185 : vector<4x256xf32>
    %c8_214 = arith.constant 8 : index
    %c0_215 = arith.constant 0 : index
    %187 = vector.load %arg30[%c8_214, %c0_215] : memref<36x256xf32, #tpu.memory_space<vmem>>, vector<4x256xf32>
    tpu.vector_store %arg30[%c8_214, %c0_215], %186 {strides = array<i32>} : memref<36x256xf32, #tpu.memory_space<vmem>>, vector<4x256xf32>,
    %c0_216 = arith.constant 0 : index
    %c127_217 = arith.constant 127 : index
    %188 = vector.load %arg29[%c0_216, %c127_217] : memref<4x401xf32, #tpu.memory_space<vmem>>, vector<4x256xf32>
    %189 = vector.broadcast %8 : vector<1x256xf32> to vector<4x256xf32>
    %190 = arith.mulf %188, %189 : vector<4x256xf32>
    %c12_218 = arith.constant 12 : index
    %c0_219 = arith.constant 0 : index
    %191 = vector.load %arg30[%c12_218, %c0_219] : memref<36x256xf32, #tpu.memory_space<vmem>>, vector<4x256xf32>
    tpu.vector_store %arg30[%c12_218, %c0_219], %190 {strides = array<i32>} : memref<36x256xf32, #tpu.memory_space<vmem>>, vector<4x256xf32>,
    %c0_220 = arith.constant 0 : index
    %c128_221 = arith.constant 128 : index
    %192 = vector.load %arg29[%c0_220, %c128_221] : memref<4x401xf32, #tpu.memory_space<vmem>>, vector<4x256xf32>
    %c16_222 = arith.constant 16 : index
    %c0_223 = arith.constant 0 : index
    %193 = vector.load %arg30[%c16_222, %c0_223] : memref<36x256xf32, #tpu.memory_space<vmem>>, vector<4x256xf32>
    tpu.vector_store %arg30[%c16_222, %c0_223], %192 {strides = array<i32>} : memref<36x256xf32, #tpu.memory_space<vmem>>, vector<4x256xf32>,
    %c0_224 = arith.constant 0 : index
    %c129_225 = arith.constant 129 : index
    %194 = vector.load %arg29[%c0_224, %c129_225] : memref<4x401xf32, #tpu.memory_space<vmem>>, vector<4x256xf32>
    %195 = vector.broadcast %9 : vector<1x256xf32> to vector<4x256xf32>
    %196 = arith.mulf %194, %195 : vector<4x256xf32>
    %c20_226 = arith.constant 20 : index
    %c0_227 = arith.constant 0 : index
    %197 = vector.load %arg30[%c20_226, %c0_227] : memref<36x256xf32, #tpu.memory_space<vmem>>, vector<4x256xf32>
    tpu.vector_store %arg30[%c20_226, %c0_227], %196 {strides = array<i32>} : memref<36x256xf32, #tpu.memory_space<vmem>>, vector<4x256xf32>,
    %c0_228 = arith.constant 0 : index
    %c143_229 = arith.constant 143 : index
    %198 = vector.load %arg29[%c0_228, %c143_229] : memref<4x401xf32, #tpu.memory_space<vmem>>, vector<4x256xf32>
    %199 = vector.broadcast %8 : vector<1x256xf32> to vector<4x256xf32>
    %200 = arith.mulf %198, %199 : vector<4x256xf32>
    %c24_230 = arith.constant 24 : index
    %c0_231 = arith.constant 0 : index
    %201 = vector.load %arg30[%c24_230, %c0_231] : memref<36x256xf32, #tpu.memory_space<vmem>>, vector<4x256xf32>
    tpu.vector_store %arg30[%c24_230, %c0_231], %200 {strides = array<i32>} : memref<36x256xf32, #tpu.memory_space<vmem>>, vector<4x256xf32>,
    %c0_232 = arith.constant 0 : index
    %c144_233 = arith.constant 144 : index
    %202 = vector.load %arg29[%c0_232, %c144_233] : memref<4x401xf32, #tpu.memory_space<vmem>>, vector<4x256xf32>
    %c28_234 = arith.constant 28 : index
    %c0_235 = arith.constant 0 : index
    %203 = vector.load %arg30[%c28_234, %c0_235] : memref<36x256xf32, #tpu.memory_space<vmem>>, vector<4x256xf32>
    tpu.vector_store %arg30[%c28_234, %c0_235], %202 {strides = array<i32>} : memref<36x256xf32, #tpu.memory_space<vmem>>, vector<4x256xf32>,
    %c0_236 = arith.constant 0 : index
    %c145_237 = arith.constant 145 : index
    %204 = vector.load %arg29[%c0_236, %c145_237] : memref<4x401xf32, #tpu.memory_space<vmem>>, vector<4x256xf32>
    %205 = vector.broadcast %9 : vector<1x256xf32> to vector<4x256xf32>
    %206 = arith.mulf %204, %205 : vector<4x256xf32>
    %c32_238 = arith.constant 32 : index
    %c0_239 = arith.constant 0 : index
    %207 = vector.load %arg30[%c32_238, %c0_239] : memref<36x256xf32, #tpu.memory_space<vmem>>, vector<4x256xf32>
    tpu.vector_store %arg30[%c32_238, %c0_239], %206 {strides = array<i32>} : memref<36x256xf32, #tpu.memory_space<vmem>>, vector<4x256xf32>,
    %c0_240 = arith.constant 0 : index
    %c0_241 = arith.constant 0 : index
    %208 = vector.load %arg30[%c0_240, %c0_241] : memref<36x256xf32, #tpu.memory_space<vmem>>, vector<36x256xf32>
    %cst_242 = arith.constant dense<0.000000e+00> : vector<9x256xf32>
    %209 = tpu.matmul %175, %208, %cst_242 {dimension_numbers = #tpu.dot_dimension_numbers<[1], [0], [0], [1], [0, 0, 1, 1], [], []>} : vector<9x36xf32>, vector<36x256xf32>, vector<9x256xf32> -> vector<9x256xf32>
    %210 = vector.broadcast %176 : vector<9x1xf32> to vector<9x256xf32>
    %211 = arith.addf %209, %210 : vector<9x256xf32>
    %cst_243 = arith.constant 0.000000e+00 : f32
    %212 = vector.broadcast %cst_243 : f32 to vector<9x256xf32>
    %213 = arith.cmpf ogt, %211, %212 : vector<9x256xf32>
    %cst_244 = arith.constant 2.000000e-01 : f32
    %214 = vector.broadcast %cst_244 : f32 to vector<9x256xf32>
    %215 = arith.mulf %214, %211 : vector<9x256xf32>
    %216 = arith.select %213, %211, %215 : vector<9x256xi1>, vector<9x256xf32>
    %c0_245 = arith.constant 0 : index
    %c0_246 = arith.constant 0 : index
    %c0_247 = arith.constant 0 : index
    %217 = vector.load %arg25[%c0_245, %c0_246, %c0_247] : memref<1x9x256xf32, #tpu.memory_space<vmem>>, vector<1x9x256xf32>
    %218 = vector.shape_cast %217 : vector<1x9x256xf32> to vector<9x256xf32>
    %219 = vector.shape_cast %216 : vector<9x256xf32> to vector<1x9x256xf32>
    tpu.vector_store %arg25[%c0_245, %c0_246, %c0_247], %219 {strides = array<i32>} : memref<1x9x256xf32, #tpu.memory_space<vmem>>, vector<1x9x256xf32>,
    %220 = arith.subf %86, %171 : vector<4x256xf32>
    %c0_248 = arith.constant 0 : index
    %c0_249 = arith.constant 0 : index
    %c0_250 = arith.constant 0 : index
    %221 = vector.load %arg28[%c0_248, %c0_249, %c0_250] : memref<1x4x256xf32, #tpu.memory_space<vmem>>, vector<1x4x256xf32>
    %222 = vector.shape_cast %221 : vector<1x4x256xf32> to vector<4x256xf32>
    %223 = vector.shape_cast %220 : vector<4x256xf32> to vector<1x4x256xf32>
    tpu.vector_store %arg28[%c0_248, %c0_249, %c0_250], %223 {strides = array<i32>} : memref<1x4x256xf32, #tpu.memory_space<vmem>>, vector<1x4x256xf32>,
    %c0_251 = arith.constant 0 : index
    %c0_252 = arith.constant 0 : index
    %224 = vector.load %arg20[%c0_251, %c0_252] : memref<4x36xf32, #tpu.memory_space<vmem>>, vector<4x36xf32>
    %c0_253 = arith.constant 0 : index
    %c0_254 = arith.constant 0 : index
    %225 = vector.load %arg21[%c0_253, %c0_254] : memref<4x1xf32, #tpu.memory_space<vmem>>, vector<4x1xf32>
    %c0_255 = arith.constant 0 : index
    %c128_256 = arith.constant 128 : index
    %226 = vector.load %arg29[%c0_255, %c128_256] : memref<4x401xf32, #tpu.memory_space<vmem>>, vector<4x256xf32>
    tpu.vector_store %arg29[%c0_255, %c128_256], %220 {strides = array<i32>} : memref<4x401xf32, #tpu.memory_space<vmem>>, vector<4x256xf32>,
    %c0_257 = arith.constant 0 : index
    %c111_258 = arith.constant 111 : index
    %227 = vector.load %arg29[%c0_257, %c111_258] : memref<4x401xf32, #tpu.memory_space<vmem>>, vector<4x256xf32>
    %228 = vector.broadcast %8 : vector<1x256xf32> to vector<4x256xf32>
    %229 = arith.mulf %227, %228 : vector<4x256xf32>
    %c0_259 = arith.constant 0 : index
    %c0_260 = arith.constant 0 : index
    %230 = vector.load %arg30[%c0_259, %c0_260] : memref<36x256xf32, #tpu.memory_space<vmem>>, vector<4x256xf32>
    tpu.vector_store %arg30[%c0_259, %c0_260], %229 {strides = array<i32>} : memref<36x256xf32, #tpu.memory_space<vmem>>, vector<4x256xf32>,
    %c0_261 = arith.constant 0 : index
    %c112_262 = arith.constant 112 : index
    %231 = vector.load %arg29[%c0_261, %c112_262] : memref<4x401xf32, #tpu.memory_space<vmem>>, vector<4x256xf32>
    %c4_263 = arith.constant 4 : index
    %c0_264 = arith.constant 0 : index
    %232 = vector.load %arg30[%c4_263, %c0_264] : memref<36x256xf32, #tpu.memory_space<vmem>>, vector<4x256xf32>
    tpu.vector_store %arg30[%c4_263, %c0_264], %231 {strides = array<i32>} : memref<36x256xf32, #tpu.memory_space<vmem>>, vector<4x256xf32>,
    %c0_265 = arith.constant 0 : index
    %c113_266 = arith.constant 113 : index
    %233 = vector.load %arg29[%c0_265, %c113_266] : memref<4x401xf32, #tpu.memory_space<vmem>>, vector<4x256xf32>
    %234 = vector.broadcast %9 : vector<1x256xf32> to vector<4x256xf32>
    %235 = arith.mulf %233, %234 : vector<4x256xf32>
    %c8_267 = arith.constant 8 : index
    %c0_268 = arith.constant 0 : index
    %236 = vector.load %arg30[%c8_267, %c0_268] : memref<36x256xf32, #tpu.memory_space<vmem>>, vector<4x256xf32>
    tpu.vector_store %arg30[%c8_267, %c0_268], %235 {strides = array<i32>} : memref<36x256xf32, #tpu.memory_space<vmem>>, vector<4x256xf32>,
    %c0_269 = arith.constant 0 : index
    %c127_270 = arith.constant 127 : index
    %237 = vector.load %arg29[%c0_269, %c127_270] : memref<4x401xf32, #tpu.memory_space<vmem>>, vector<4x256xf32>
    %238 = vector.broadcast %8 : vector<1x256xf32> to vector<4x256xf32>
    %239 = arith.mulf %237, %238 : vector<4x256xf32>
    %c12_271 = arith.constant 12 : index
    %c0_272 = arith.constant 0 : index
    %240 = vector.load %arg30[%c12_271, %c0_272] : memref<36x256xf32, #tpu.memory_space<vmem>>, vector<4x256xf32>
    tpu.vector_store %arg30[%c12_271, %c0_272], %239 {strides = array<i32>} : memref<36x256xf32, #tpu.memory_space<vmem>>, vector<4x256xf32>,
    %c0_273 = arith.constant 0 : index
    %c128_274 = arith.constant 128 : index
    %241 = vector.load %arg29[%c0_273, %c128_274] : memref<4x401xf32, #tpu.memory_space<vmem>>, vector<4x256xf32>
    %c16_275 = arith.constant 16 : index
    %c0_276 = arith.constant 0 : index
    %242 = vector.load %arg30[%c16_275, %c0_276] : memref<36x256xf32, #tpu.memory_space<vmem>>, vector<4x256xf32>
    tpu.vector_store %arg30[%c16_275, %c0_276], %241 {strides = array<i32>} : memref<36x256xf32, #tpu.memory_space<vmem>>, vector<4x256xf32>,
    %c0_277 = arith.constant 0 : index
    %c129_278 = arith.constant 129 : index
    %243 = vector.load %arg29[%c0_277, %c129_278] : memref<4x401xf32, #tpu.memory_space<vmem>>, vector<4x256xf32>
    %244 = vector.broadcast %9 : vector<1x256xf32> to vector<4x256xf32>
    %245 = arith.mulf %243, %244 : vector<4x256xf32>
    %c20_279 = arith.constant 20 : index
    %c0_280 = arith.constant 0 : index
    %246 = vector.load %arg30[%c20_279, %c0_280] : memref<36x256xf32, #tpu.memory_space<vmem>>, vector<4x256xf32>
    tpu.vector_store %arg30[%c20_279, %c0_280], %245 {strides = array<i32>} : memref<36x256xf32, #tpu.memory_space<vmem>>, vector<4x256xf32>,
    %c0_281 = arith.constant 0 : index
    %c143_282 = arith.constant 143 : index
    %247 = vector.load %arg29[%c0_281, %c143_282] : memref<4x401xf32, #tpu.memory_space<vmem>>, vector<4x256xf32>
    %248 = vector.broadcast %8 : vector<1x256xf32> to vector<4x256xf32>
    %249 = arith.mulf %247, %248 : vector<4x256xf32>
    %c24_283 = arith.constant 24 : index
    %c0_284 = arith.constant 0 : index
    %250 = vector.load %arg30[%c24_283, %c0_284] : memref<36x256xf32, #tpu.memory_space<vmem>>, vector<4x256xf32>
    tpu.vector_store %arg30[%c24_283, %c0_284], %249 {strides = array<i32>} : memref<36x256xf32, #tpu.memory_space<vmem>>, vector<4x256xf32>,
    %c0_285 = arith.constant 0 : index
    %c144_286 = arith.constant 144 : index
    %251 = vector.load %arg29[%c0_285, %c144_286] : memref<4x401xf32, #tpu.memory_space<vmem>>, vector<4x256xf32>
    %c28_287 = arith.constant 28 : index
    %c0_288 = arith.constant 0 : index
    %252 = vector.load %arg30[%c28_287, %c0_288] : memref<36x256xf32, #tpu.memory_space<vmem>>, vector<4x256xf32>
    tpu.vector_store %arg30[%c28_287, %c0_288], %251 {strides = array<i32>} : memref<36x256xf32, #tpu.memory_space<vmem>>, vector<4x256xf32>,
    %c0_289 = arith.constant 0 : index
    %c145_290 = arith.constant 145 : index
    %253 = vector.load %arg29[%c0_289, %c145_290] : memref<4x401xf32, #tpu.memory_space<vmem>>, vector<4x256xf32>
    %254 = vector.broadcast %9 : vector<1x256xf32> to vector<4x256xf32>
    %255 = arith.mulf %253, %254 : vector<4x256xf32>
    %c32_291 = arith.constant 32 : index
    %c0_292 = arith.constant 0 : index
    %256 = vector.load %arg30[%c32_291, %c0_292] : memref<36x256xf32, #tpu.memory_space<vmem>>, vector<4x256xf32>
    tpu.vector_store %arg30[%c32_291, %c0_292], %255 {strides = array<i32>} : memref<36x256xf32, #tpu.memory_space<vmem>>, vector<4x256xf32>,
    %c0_293 = arith.constant 0 : index
    %c0_294 = arith.constant 0 : index
    %257 = vector.load %arg30[%c0_293, %c0_294] : memref<36x256xf32, #tpu.memory_space<vmem>>, vector<36x256xf32>
    %cst_295 = arith.constant dense<0.000000e+00> : vector<4x256xf32>
    %258 = tpu.matmul %224, %257, %cst_295 {dimension_numbers = #tpu.dot_dimension_numbers<[1], [0], [0], [1], [0, 0, 1, 1], [], []>} : vector<4x36xf32>, vector<36x256xf32>, vector<4x256xf32> -> vector<4x256xf32>
    %259 = vector.broadcast %225 : vector<4x1xf32> to vector<4x256xf32>
    %260 = arith.addf %258, %259 : vector<4x256xf32>
    %cst_296 = arith.constant 0.000000e+00 : f32
    %261 = vector.broadcast %cst_296 : f32 to vector<4x256xf32>
    %262 = arith.maximumf %260, %261 : vector<4x256xf32>
    %c0_297 = arith.constant 0 : index
    %c0_298 = arith.constant 0 : index
    %263 = vector.load %arg22[%c0_297, %c0_298] : memref<4x36xf32, #tpu.memory_space<vmem>>, vector<4x36xf32>
    %c0_299 = arith.constant 0 : index
    %c0_300 = arith.constant 0 : index
    %264 = vector.load %arg23[%c0_299, %c0_300] : memref<4x1xf32, #tpu.memory_space<vmem>>, vector<4x1xf32>
    %c0_301 = arith.constant 0 : index
    %c128_302 = arith.constant 128 : index
    %265 = vector.load %arg29[%c0_301, %c128_302] : memref<4x401xf32, #tpu.memory_space<vmem>>, vector<4x256xf32>
    tpu.vector_store %arg29[%c0_301, %c128_302], %262 {strides = array<i32>} : memref<4x401xf32, #tpu.memory_space<vmem>>, vector<4x256xf32>,
    %c0_303 = arith.constant 0 : index
    %c111_304 = arith.constant 111 : index
    %266 = vector.load %arg29[%c0_303, %c111_304] : memref<4x401xf32, #tpu.memory_space<vmem>>, vector<4x256xf32>
    %267 = vector.broadcast %8 : vector<1x256xf32> to vector<4x256xf32>
    %268 = arith.mulf %266, %267 : vector<4x256xf32>
    %c0_305 = arith.constant 0 : index
    %c0_306 = arith.constant 0 : index
    %269 = vector.load %arg30[%c0_305, %c0_306] : memref<36x256xf32, #tpu.memory_space<vmem>>, vector<4x256xf32>
    tpu.vector_store %arg30[%c0_305, %c0_306], %268 {strides = array<i32>} : memref<36x256xf32, #tpu.memory_space<vmem>>, vector<4x256xf32>,
    %c0_307 = arith.constant 0 : index
    %c112_308 = arith.constant 112 : index
    %270 = vector.load %arg29[%c0_307, %c112_308] : memref<4x401xf32, #tpu.memory_space<vmem>>, vector<4x256xf32>
    %c4_309 = arith.constant 4 : index
    %c0_310 = arith.constant 0 : index
    %271 = vector.load %arg30[%c4_309, %c0_310] : memref<36x256xf32, #tpu.memory_space<vmem>>, vector<4x256xf32>
    tpu.vector_store %arg30[%c4_309, %c0_310], %270 {strides = array<i32>} : memref<36x256xf32, #tpu.memory_space<vmem>>, vector<4x256xf32>,
    %c0_311 = arith.constant 0 : index
    %c113_312 = arith.constant 113 : index
    %272 = vector.load %arg29[%c0_311, %c113_312] : memref<4x401xf32, #tpu.memory_space<vmem>>, vector<4x256xf32>
    %273 = vector.broadcast %9 : vector<1x256xf32> to vector<4x256xf32>
    %274 = arith.mulf %272, %273 : vector<4x256xf32>
    %c8_313 = arith.constant 8 : index
    %c0_314 = arith.constant 0 : index
    %275 = vector.load %arg30[%c8_313, %c0_314] : memref<36x256xf32, #tpu.memory_space<vmem>>, vector<4x256xf32>
    tpu.vector_store %arg30[%c8_313, %c0_314], %274 {strides = array<i32>} : memref<36x256xf32, #tpu.memory_space<vmem>>, vector<4x256xf32>,
    %c0_315 = arith.constant 0 : index
    %c127_316 = arith.constant 127 : index
    %276 = vector.load %arg29[%c0_315, %c127_316] : memref<4x401xf32, #tpu.memory_space<vmem>>, vector<4x256xf32>
    %277 = vector.broadcast %8 : vector<1x256xf32> to vector<4x256xf32>
    %278 = arith.mulf %276, %277 : vector<4x256xf32>
    %c12_317 = arith.constant 12 : index
    %c0_318 = arith.constant 0 : index
    %279 = vector.load %arg30[%c12_317, %c0_318] : memref<36x256xf32, #tpu.memory_space<vmem>>, vector<4x256xf32>
    tpu.vector_store %arg30[%c12_317, %c0_318], %278 {strides = array<i32>} : memref<36x256xf32, #tpu.memory_space<vmem>>, vector<4x256xf32>,
    %c0_319 = arith.constant 0 : index
    %c128_320 = arith.constant 128 : index
    %280 = vector.load %arg29[%c0_319, %c128_320] : memref<4x401xf32, #tpu.memory_space<vmem>>, vector<4x256xf32>
    %c16_321 = arith.constant 16 : index
    %c0_322 = arith.constant 0 : index
    %281 = vector.load %arg30[%c16_321, %c0_322] : memref<36x256xf32, #tpu.memory_space<vmem>>, vector<4x256xf32>
    tpu.vector_store %arg30[%c16_321, %c0_322], %280 {strides = array<i32>} : memref<36x256xf32, #tpu.memory_space<vmem>>, vector<4x256xf32>,
    %c0_323 = arith.constant 0 : index
    %c129_324 = arith.constant 129 : index
    %282 = vector.load %arg29[%c0_323, %c129_324] : memref<4x401xf32, #tpu.memory_space<vmem>>, vector<4x256xf32>
    %283 = vector.broadcast %9 : vector<1x256xf32> to vector<4x256xf32>
    %284 = arith.mulf %282, %283 : vector<4x256xf32>
    %c20_325 = arith.constant 20 : index
    %c0_326 = arith.constant 0 : index
    %285 = vector.load %arg30[%c20_325, %c0_326] : memref<36x256xf32, #tpu.memory_space<vmem>>, vector<4x256xf32>
    tpu.vector_store %arg30[%c20_325, %c0_326], %284 {strides = array<i32>} : memref<36x256xf32, #tpu.memory_space<vmem>>, vector<4x256xf32>,
    %c0_327 = arith.constant 0 : index
    %c143_328 = arith.constant 143 : index
    %286 = vector.load %arg29[%c0_327, %c143_328] : memref<4x401xf32, #tpu.memory_space<vmem>>, vector<4x256xf32>
    %287 = vector.broadcast %8 : vector<1x256xf32> to vector<4x256xf32>
    %288 = arith.mulf %286, %287 : vector<4x256xf32>
    %c24_329 = arith.constant 24 : index
    %c0_330 = arith.constant 0 : index
    %289 = vector.load %arg30[%c24_329, %c0_330] : memref<36x256xf32, #tpu.memory_space<vmem>>, vector<4x256xf32>
    tpu.vector_store %arg30[%c24_329, %c0_330], %288 {strides = array<i32>} : memref<36x256xf32, #tpu.memory_space<vmem>>, vector<4x256xf32>,
    %c0_331 = arith.constant 0 : index
    %c144_332 = arith.constant 144 : index
    %290 = vector.load %arg29[%c0_331, %c144_332] : memref<4x401xf32, #tpu.memory_space<vmem>>, vector<4x256xf32>
    %c28_333 = arith.constant 28 : index
    %c0_334 = arith.constant 0 : index
    %291 = vector.load %arg30[%c28_333, %c0_334] : memref<36x256xf32, #tpu.memory_space<vmem>>, vector<4x256xf32>
    tpu.vector_store %arg30[%c28_333, %c0_334], %290 {strides = array<i32>} : memref<36x256xf32, #tpu.memory_space<vmem>>, vector<4x256xf32>,
    %c0_335 = arith.constant 0 : index
    %c145_336 = arith.constant 145 : index
    %292 = vector.load %arg29[%c0_335, %c145_336] : memref<4x401xf32, #tpu.memory_space<vmem>>, vector<4x256xf32>
    %293 = vector.broadcast %9 : vector<1x256xf32> to vector<4x256xf32>
    %294 = arith.mulf %292, %293 : vector<4x256xf32>
    %c32_337 = arith.constant 32 : index
    %c0_338 = arith.constant 0 : index
    %295 = vector.load %arg30[%c32_337, %c0_338] : memref<36x256xf32, #tpu.memory_space<vmem>>, vector<4x256xf32>
    tpu.vector_store %arg30[%c32_337, %c0_338], %294 {strides = array<i32>} : memref<36x256xf32, #tpu.memory_space<vmem>>, vector<4x256xf32>,
    %c0_339 = arith.constant 0 : index
    %c0_340 = arith.constant 0 : index
    %296 = vector.load %arg30[%c0_339, %c0_340] : memref<36x256xf32, #tpu.memory_space<vmem>>, vector<36x256xf32>
    %cst_341 = arith.constant dense<0.000000e+00> : vector<4x256xf32>
    %297 = tpu.matmul %263, %296, %cst_341 {dimension_numbers = #tpu.dot_dimension_numbers<[1], [0], [0], [1], [0, 0, 1, 1], [], []>} : vector<4x36xf32>, vector<36x256xf32>, vector<4x256xf32> -> vector<4x256xf32>
    %298 = vector.broadcast %264 : vector<4x1xf32> to vector<4x256xf32>
    %299 = arith.addf %297, %298 : vector<4x256xf32>
    %300 = arith.addf %299, %220 : vector<4x256xf32>
    %c0_342 = arith.constant 0 : index
    %c0_343 = arith.constant 0 : index
    %c0_344 = arith.constant 0 : index
    %301 = vector.load %arg24[%c0_342, %c0_343, %c0_344] : memref<1x4x256xf32, #tpu.memory_space<vmem>>, vector<1x4x256xf32>
    %302 = vector.shape_cast %301 : vector<1x4x256xf32> to vector<4x256xf32>
    %303 = vector.shape_cast %300 : vector<4x256xf32> to vector<1x4x256xf32>
    tpu.vector_store %arg24[%c0_342, %c0_343, %c0_344], %303 {strides = array<i32>} : memref<1x4x256xf32, #tpu.memory_space<vmem>>, vector<1x4x256xf32>,
    return
  }
  func.func @transform_0(%arg0: i32) -> (i32, i32, i32) {
    %c0_i32 = arith.constant 0 : i32
    %c0_i32_0 = arith.constant 0 : i32
    %c0_i32_1 = arith.constant 0 : i32
    return %arg0, %c0_i32, %c0_i32_0 : i32, i32, i32
  }
  func.func @transform_1(%arg0: i32) -> (i32, i32) {
    %c0_i32 = arith.constant 0 : i32
    %c0_i32_0 = arith.constant 0 : i32
    %c0_i32_1 = arith.constant 0 : i32
    return %c0_i32, %c0_i32_0 : i32, i32
  }
  func.func @transform_2(%arg0: i32) -> (i32, i32) {
    %c0_i32 = arith.constant 0 : i32
    %c0_i32_0 = arith.constant 0 : i32
    %c0_i32_1 = arith.constant 0 : i32
    return %c0_i32, %c0_i32_0 : i32, i32
  }
  func.func @transform_3(%arg0: i32) -> (i32, i32) {
    %c0_i32 = arith.constant 0 : i32
    %c0_i32_0 = arith.constant 0 : i32
    %c0_i32_1 = arith.constant 0 : i32
    return %c0_i32, %c0_i32_0 : i32, i32
  }
  func.func @transform_4(%arg0: i32) -> (i32, i32) {
    %c0_i32 = arith.constant 0 : i32
    %c0_i32_0 = arith.constant 0 : i32
    %c0_i32_1 = arith.constant 0 : i32
    return %c0_i32, %c0_i32_0 : i32, i32
  }
  func.func @transform_5(%arg0: i32) -> (i32, i32) {
    %c0_i32 = arith.constant 0 : i32
    %c0_i32_0 = arith.constant 0 : i32
    %c0_i32_1 = arith.constant 0 : i32
    return %c0_i32, %c0_i32_0 : i32, i32
  }
  func.func @transform_6(%arg0: i32) -> (i32, i32) {
    %c0_i32 = arith.constant 0 : i32
    %c0_i32_0 = arith.constant 0 : i32
    %c0_i32_1 = arith.constant 0 : i32
    return %c0_i32, %c0_i32_0 : i32, i32
  }
  func.func @transform_7(%arg0: i32) -> (i32, i32) {
    %c0_i32 = arith.constant 0 : i32
    %c0_i32_0 = arith.constant 0 : i32
    %c0_i32_1 = arith.constant 0 : i32
    return %c0_i32, %c0_i32_0 : i32, i32
  }
  func.func @transform_8(%arg0: i32) -> (i32, i32) {
    %c0_i32 = arith.constant 0 : i32
    %c0_i32_0 = arith.constant 0 : i32
    %c0_i32_1 = arith.constant 0 : i32
    return %c0_i32, %c0_i32_0 : i32, i32
  }
  func.func @transform_9(%arg0: i32) -> (i32, i32) {
    %c0_i32 = arith.constant 0 : i32
    %c0_i32_0 = arith.constant 0 : i32
    %c0_i32_1 = arith.constant 0 : i32
    return %c0_i32, %c0_i32_0 : i32, i32
  }
  func.func @transform_10(%arg0: i32) -> (i32, i32) {
    %c0_i32 = arith.constant 0 : i32
    %c0_i32_0 = arith.constant 0 : i32
    %c0_i32_1 = arith.constant 0 : i32
    return %c0_i32, %c0_i32_0 : i32, i32
  }
  func.func @transform_11(%arg0: i32) -> (i32, i32) {
    %c0_i32 = arith.constant 0 : i32
    %c0_i32_0 = arith.constant 0 : i32
    %c0_i32_1 = arith.constant 0 : i32
    return %c0_i32, %c0_i32_0 : i32, i32
  }
  func.func @transform_12(%arg0: i32) -> (i32, i32) {
    %c0_i32 = arith.constant 0 : i32
    %c0_i32_0 = arith.constant 0 : i32
    %c0_i32_1 = arith.constant 0 : i32
    return %c0_i32, %c0_i32_0 : i32, i32
  }
  func.func @transform_13(%arg0: i32) -> (i32, i32) {
    %c0_i32 = arith.constant 0 : i32
    %c0_i32_0 = arith.constant 0 : i32
    %c0_i32_1 = arith.constant 0 : i32
    return %c0_i32, %c0_i32_0 : i32, i32
  }
  func.func @transform_14(%arg0: i32) -> (i32, i32) {
    %c0_i32 = arith.constant 0 : i32
    %c0_i32_0 = arith.constant 0 : i32
    %c0_i32_1 = arith.constant 0 : i32
    return %c0_i32, %c0_i32_0 : i32, i32
  }
  func.func @transform_15(%arg0: i32) -> (i32, i32) {
    %c0_i32 = arith.constant 0 : i32
    %c0_i32_0 = arith.constant 0 : i32
    %c0_i32_1 = arith.constant 0 : i32
    return %c0_i32, %c0_i32_0 : i32, i32
  }
  func.func @transform_16(%arg0: i32) -> (i32, i32) {
    %c0_i32 = arith.constant 0 : i32
    %c0_i32_0 = arith.constant 0 : i32
    %c0_i32_1 = arith.constant 0 : i32
    return %c0_i32, %c0_i32_0 : i32, i32
  }
  func.func @transform_17(%arg0: i32) -> (i32, i32) {
    %c0_i32 = arith.constant 0 : i32
    %c0_i32_0 = arith.constant 0 : i32
    %c0_i32_1 = arith.constant 0 : i32
    return %c0_i32, %c0_i32_0 : i32, i32
  }
  func.func @transform_18(%arg0: i32) -> (i32, i32) {
    %c0_i32 = arith.constant 0 : i32
    %c0_i32_0 = arith.constant 0 : i32
    %c0_i32_1 = arith.constant 0 : i32
    return %c0_i32, %c0_i32_0 : i32, i32
  }
  func.func @transform_19(%arg0: i32) -> (i32, i32) {
    %c0_i32 = arith.constant 0 : i32
    %c0_i32_0 = arith.constant 0 : i32
    %c0_i32_1 = arith.constant 0 : i32
    return %c0_i32, %c0_i32_0 : i32, i32
  }
  func.func @transform_20(%arg0: i32) -> (i32, i32) {
    %c0_i32 = arith.constant 0 : i32
    %c0_i32_0 = arith.constant 0 : i32
    %c0_i32_1 = arith.constant 0 : i32
    return %c0_i32, %c0_i32_0 : i32, i32
  }
  func.func @transform_21(%arg0: i32) -> (i32, i32) {
    %c0_i32 = arith.constant 0 : i32
    %c0_i32_0 = arith.constant 0 : i32
    %c0_i32_1 = arith.constant 0 : i32
    return %c0_i32, %c0_i32_0 : i32, i32
  }
  func.func @transform_22(%arg0: i32) -> (i32, i32) {
    %c0_i32 = arith.constant 0 : i32
    %c0_i32_0 = arith.constant 0 : i32
    %c0_i32_1 = arith.constant 0 : i32
    return %c0_i32, %c0_i32_0 : i32, i32
  }
  func.func @transform_23(%arg0: i32) -> (i32, i32, i32) {
    %c0_i32 = arith.constant 0 : i32
    %c0_i32_0 = arith.constant 0 : i32
    %c0_i32_1 = arith.constant 0 : i32
    return %arg0, %c0_i32, %c0_i32_0 : i32, i32, i32
  }
  func.func @transform_24(%arg0: i32) -> (i32, i32, i32) {
    %c0_i32 = arith.constant 0 : i32
    %c0_i32_0 = arith.constant 0 : i32
    %c0_i32_1 = arith.constant 0 : i32
    return %arg0, %c0_i32, %c0_i32_0 : i32, i32, i32
  }
  func.func @transform_25(%arg0: i32) -> (i32, i32, i32) {
    %c0_i32 = arith.constant 0 : i32
    %c0_i32_0 = arith.constant 0 : i32
    %c0_i32_1 = arith.constant 0 : i32
    return %arg0, %c0_i32, %c0_i32_0 : i32, i32, i32
  }
  func.func @transform_26(%arg0: i32) -> (i32, i32, i32) {
    %c0_i32 = arith.constant 0 : i32
    %c0_i32_0 = arith.constant 0 : i32
    %c0_i32_1 = arith.constant 0 : i32
    return %arg0, %c0_i32, %c0_i32_0 : i32, i32, i32
  }
  func.func @transform_27(%arg0: i32) -> (i32, i32, i32) {
    %c0_i32 = arith.constant 0 : i32
    %c0_i32_0 = arith.constant 0 : i32
    %c0_i32_1 = arith.constant 0 : i32
    return %arg0, %c0_i32, %c0_i32_0 : i32, i32, i32
  }
}

</mosaic_0001>

<llo_original>
// kernel: bcm_block.1
$region0: #{bcm_block.1}
  #allocation0 [shape = 'u32[]', space=smem, size = 0x4, offset = 0x4, fixed_abs, tag = 'smem constant byte address 0x4 - core index']
  #allocation1 [shape = 'u32[72,128]{1,0:T(1,128)}', space=vmem, size = 0x9000, scoped, tag = 'internal scratch']
  #allocation2 [shape = 'f32[4,401]{1,0:T(4,128)}', space=vmem, size = 0x2000, scoped, tag = 'scratch operand']
  #allocation3 [shape = 'f32[36,256]{1,0:T(8,128)}', space=vmem, size = 0xa000, scoped, tag = 'scratch operand']
  #allocation4 [shape = 'f32[4,145]{1,0:T(4,128)}', space=vmem, size = 0x1000, scoped, tag = 'scratch operand']
  #allocation5 [shape = 'f32[12,16]{1,0:T(8,128)}', space=vmem, size = 0x2000, scoped, tag = 'scratch operand']
  #allocation6 [shape = 'f32[4,145]{1,0:T(4,128)}', space=vmem, size = 0x1000, scoped, tag = 'scratch operand']
  #allocation7 [shape = 'f32[12,16]{1,0:T(8,128)}', space=vmem, size = 0x2000, scoped, tag = 'scratch operand']
  %s0 = inlined_call_operand.vmem [shape: f32[2,4,256], index: 0, kind: input, shape index: {}]
  %s1 = inlined_call_operand.vmem [shape: f32[256,16], index: 1, kind: input, shape index: {}]
  %s2 = inlined_call_operand.vmem [shape: f32[256,16], index: 2, kind: input, shape index: {}]
  %s3 = inlined_call_operand.vmem [shape: f32[16,256], index: 3, kind: input, shape index: {}]
  %s4 = inlined_call_operand.vmem [shape: f32[16,256], index: 4, kind: input, shape index: {}]
  %s5 = inlined_call_operand.vmem [shape: f32[1,256], index: 5, kind: input, shape index: {}]
  %s6 = inlined_call_operand.vmem [shape: f32[1,256], index: 6, kind: input, shape index: {}]
  %s7 = inlined_call_operand.vmem [shape: f32[4,36], index: 7, kind: input, shape index: {}]
  %s8 = inlined_call_operand.vmem [shape: f32[4,1], index: 8, kind: input, shape index: {}]
  %s9 = inlined_call_operand.vmem [shape: f32[4,36], index: 9, kind: input, shape index: {}]
  %s10 = inlined_call_operand.vmem [shape: f32[4,1], index: 10, kind: input, shape index: {}]
  %s11 = inlined_call_operand.vmem [shape: f32[4,4], index: 11, kind: input, shape index: {}]
  %s12 = inlined_call_operand.vmem [shape: f32[4,1], index: 12, kind: input, shape index: {}]
  %s13 = inlined_call_operand.vmem [shape: f32[4,12], index: 13, kind: input, shape index: {}]
  %s14 = inlined_call_operand.vmem [shape: f32[4,12], index: 14, kind: input, shape index: {}]
  %s15 = inlined_call_operand.vmem [shape: f32[4,36], index: 15, kind: input, shape index: {}]
  %s16 = inlined_call_operand.vmem [shape: f32[4,1], index: 16, kind: input, shape index: {}]
  %s17 = inlined_call_operand.vmem [shape: f32[9,36], index: 17, kind: input, shape index: {}]
  %s18 = inlined_call_operand.vmem [shape: f32[9,1], index: 18, kind: input, shape index: {}]
  %s19 = inlined_call_operand.vmem [shape: f32[4,36], index: 19, kind: input, shape index: {}]
  %s20 = inlined_call_operand.vmem [shape: f32[4,1], index: 20, kind: input, shape index: {}]
  %s21 = inlined_call_operand.vmem [shape: f32[4,36], index: 21, kind: input, shape index: {}]
  %s22 = inlined_call_operand.vmem [shape: f32[4,1], index: 22, kind: input, shape index: {}]
  %s23 = inlined_call_operand.vmem [shape: f32[2,4,256], index: 23, kind: output, shape index: {0}]
  %s24 = inlined_call_operand.vmem [shape: f32[2,9,256], index: 24, kind: output, shape index: {1}]
  %s25 = inlined_call_operand.vmem [shape: f32[2,4,256], index: 25, kind: output, shape index: {2}]
  %s26 = inlined_call_operand.vmem [shape: f32[2,4,256], index: 26, kind: output, shape index: {3}]
  %s27 = inlined_call_operand.vmem [shape: f32[2,4,256], index: 27, kind: output, shape index: {4}]
  %28 = xla_tuple %s23, %s24, %s25, %s26, %s27
  %s29 = sld [smem:[#allocation0]]
  $region157: #{bcm_block.1} parent=0
    _
  %s31 = ssub.s32 1, %s29
  %s32 = scalar_select 0, %s31, %s29
  loop: start=0, step=1, limit=4
  $region2: #{bcm_block.1} parent=0 // loop_pre_header
    _
  $region3: #{bcm_block.1} parent=0 // loop_header
    %s34 = sphi 0, %s38
    %p35 = scmp.ge.s32.totalorder %s34, 4
    %s44 = sphi 0, %s46
    %s47 = sphi 0, %s44
    %s48 = sphi 0, %s47
    %s64 = sphi 0, %s48
    %s68 = sphi 0, %s68
    %s70 = sphi 0, %s68
    %s71 = sphi 0, %s70
    %s85 = sphi 0, %s71
    %s89 = sphi 0, %s89
    %s91 = sphi 0, %s89
    %s92 = sphi 0, %s91
    %s106 = sphi 0, %s92
    %s110 = sphi 0, %s110
    %s112 = sphi 0, %s110
    %s113 = sphi 0, %s112
    %s127 = sphi 0, %s113
    %s131 = sphi 0, %s131
    %s133 = sphi 0, %s131
    %s134 = sphi 0, %s133
    %s148 = sphi 0, %s134
    %s152 = sphi 0, %s152
    %s154 = sphi 0, %s152
    %s155 = sphi 0, %s154
    %s169 = sphi 0, %s155
    %s173 = sphi 0, %s173
    %s175 = sphi 0, %s173
    %s176 = sphi 0, %s175
    %s190 = sphi 0, %s176
    %s194 = sphi 0, %s194
    %s196 = sphi 0, %s194
    %s197 = sphi 0, %s196
    %s211 = sphi 0, %s197
    %s215 = sphi 0, %s215
    %s217 = sphi 0, %s215
    %s218 = sphi 0, %s217
    %s232 = sphi 0, %s218
    %s236 = sphi 0, %s236
    %s238 = sphi 0, %s236
    %s239 = sphi 0, %s238
    %s253 = sphi 0, %s239
    %s257 = sphi 0, %s257
    %s259 = sphi 0, %s257
    %s260 = sphi 0, %s259
    %s274 = sphi 0, %s260
    %s278 = sphi 0, %s278
    %s280 = sphi 0, %s278
    %s281 = sphi 0, %s280
    %s295 = sphi 0, %s281
    %s299 = sphi 0, %s299
    %s301 = sphi 0, %s299
    %s302 = sphi 0, %s301
    %s316 = sphi 0, %s302
    %s320 = sphi 0, %s320
    %s322 = sphi 0, %s320
    %s323 = sphi 0, %s322
    %s337 = sphi 0, %s323
    %s341 = sphi 0, %s341
    %s343 = sphi 0, %s341
    %s344 = sphi 0, %s343
    %s358 = sphi 0, %s344
    %s362 = sphi 0, %s362
    %s364 = sphi 0, %s362
    %s365 = sphi 0, %s364
    %s379 = sphi 0, %s365
    %s383 = sphi 0, %s383
    %s385 = sphi 0, %s383
    %s386 = sphi 0, %s385
    %s400 = sphi 0, %s386
    %s404 = sphi 0, %s404
    %s406 = sphi 0, %s404
    %s407 = sphi 0, %s406
    %s421 = sphi 0, %s407
    %s425 = sphi 0, %s425
    %s427 = sphi 0, %s425
    %s428 = sphi 0, %s427
    %s442 = sphi 0, %s428
    %s446 = sphi 0, %s446
    %s448 = sphi 0, %s446
    %s449 = sphi 0, %s448
    %s463 = sphi 0, %s449
    %s467 = sphi 0, %s467
    %s469 = sphi 0, %s467
    %s470 = sphi 0, %s469
    %s484 = sphi 0, %s470
    %s488 = sphi 0, %s488
    %s490 = sphi 0, %s488
    %s491 = sphi 0, %s490
    %s505 = sphi 0, %s491
    %s509 = sphi 0, %s509
    %s511 = sphi 0, %s509
    %s512 = sphi 0, %s511
    %s526 = sphi 0, %s512
    %s532 = sphi 0, %s534
    %s535 = sphi 0, %s532
    %s536 = sphi 0, %s535
    %s552 = sphi 0, %s536
    %s558 = sphi 0, %s560
    %s561 = sphi 0, %s558
    %s562 = sphi 0, %s561
    %s578 = sphi 0, %s562
    %s584 = sphi 0, %s586
    %s587 = sphi 0, %s584
    %s588 = sphi 0, %s587
    %s604 = sphi 0, %s588
    %s610 = sphi 0, %s612
    %s613 = sphi 0, %s610
    %s614 = sphi 0, %s613
    %s630 = sphi 0, %s614
    %s636 = sphi 0, %s638
    %s639 = sphi 0, %s636
    %s640 = sphi 0, %s639
    %s656 = sphi 0, %s640
  $region4: #{bcm_block.1} parent=0 // loop_header_branch
    %37 = sbr.rel (%p35) target = $region8
  $region5: #{bcm_block.1} parent=0 // loop_body
    %s39 = ssub.s32 %s34, 1
    %s40 = ssub.s32 %s34, 2
    %s41 = sadd.s32 %s34, 1
    %s42 = ssub.s32 %s34, %s41
    %p43 = scmp.eq.s32.totalorder %s42, 0
    %s45 = sadd.s32 %s44, 1
    %s46 = scalar_select %p43, %s44, %s45
    %p49 = pneg %p43
    %p50 = scmp.eq.s32.totalorder %s34, 1
    %p51 = por %p49, %p50
    %p52 = scmp.ne.s32.totalorder %s44, %s47
    %p53 = scmp.eq.s32.totalorder %s34, 0
    %p54 = por %p52, %p53
    %p55 = scmp.ne.s32.totalorder %s44, %s47
    %p56 = scmp.eq.s32.totalorder %s39, 1
    %p57 = por %p55, %p56
    %p58 = scmp.ne.s32.totalorder %s47, %s48
    %p59 = scmp.eq.s32.totalorder %s39, 0
    %p60 = por %p58, %p59
    %p61 = scmp.ne.s32.totalorder %s47, %s48
    %p62 = scmp.eq.s32.totalorder %s40, 1
    %p63 = por %p61, %p62
    %p65 = scmp.ne.s32.totalorder %s48, %s64
    %p66 = scmp.eq.s32.totalorder %s40, 0
    %p67 = por %p65, %p66
    %s69 = sadd.s32 %s68, 1
    %p72 = scmp.eq.s32.totalorder %s34, 1
    %p73 = scmp.ne.s32.totalorder %s68, %s70
    %p74 = scmp.eq.s32.totalorder %s34, 0
    %p75 = por %p73, %p74
    %p76 = scmp.ne.s32.totalorder %s68, %s70
    %p77 = scmp.eq.s32.totalorder %s39, 1
    %p78 = por %p76, %p77
    %p79 = scmp.ne.s32.totalorder %s70, %s71
    %p80 = scmp.eq.s32.totalorder %s39, 0
    %p81 = por %p79, %p80
    %p82 = scmp.ne.s32.totalorder %s70, %s71
    %p83 = scmp.eq.s32.totalorder %s40, 1
    %p84 = por %p82, %p83
    %p86 = scmp.ne.s32.totalorder %s71, %s85
    %p87 = scmp.eq.s32.totalorder %s40, 0
    %p88 = por %p86, %p87
    %s90 = sadd.s32 %s89, 1
    %p93 = scmp.eq.s32.totalorder %s34, 1
    %p94 = scmp.ne.s32.totalorder %s89, %s91
    %p95 = scmp.eq.s32.totalorder %s34, 0
    %p96 = por %p94, %p95
    %p97 = scmp.ne.s32.totalorder %s89, %s91
    %p98 = scmp.eq.s32.totalorder %s39, 1
    %p99 = por %p97, %p98
    %p100 = scmp.ne.s32.totalorder %s91, %s92
    %p101 = scmp.eq.s32.totalorder %s39, 0
    %p102 = por %p100, %p101
    %p103 = scmp.ne.s32.totalorder %s91, %s92
    %p104 = scmp.eq.s32.totalorder %s40, 1
    %p105 = por %p103, %p104
    %p107 = scmp.ne.s32.totalorder %s92, %s106
    %p108 = scmp.eq.s32.totalorder %s40, 0
    %p109 = por %p107, %p108
    %s111 = sadd.s32 %s110, 1
    %p114 = scmp.eq.s32.totalorder %s34, 1
    %p115 = scmp.ne.s32.totalorder %s110, %s112
    %p116 = scmp.eq.s32.totalorder %s34, 0
    %p117 = por %p115, %p116
    %p118 = scmp.ne.s32.totalorder %s110, %s112
    %p119 = scmp.eq.s32.totalorder %s39, 1
    %p120 = por %p118, %p119
    %p121 = scmp.ne.s32.totalorder %s112, %s113
    %p122 = scmp.eq.s32.totalorder %s39, 0
    %p123 = por %p121, %p122
    %p124 = scmp.ne.s32.totalorder %s112, %s113
    %p125 = scmp.eq.s32.totalorder %s40, 1
    %p126 = por %p124, %p125
    %p128 = scmp.ne.s32.totalorder %s113, %s127
    %p129 = scmp.eq.s32.totalorder %s40, 0
    %p130 = por %p128, %p129
    %s132 = sadd.s32 %s131, 1
    %p135 = scmp.eq.s32.totalorder %s34, 1
    %p136 = scmp.ne.s32.totalorder %s131, %s133
    %p137 = scmp.eq.s32.totalorder %s34, 0
    %p138 = por %p136, %p137
    %p139 = scmp.ne.s32.totalorder %s131, %s133
    %p140 = scmp.eq.s32.totalorder %s39, 1
    %p141 = por %p139, %p140
    %p142 = scmp.ne.s32.totalorder %s133, %s134
    %p143 = scmp.eq.s32.totalorder %s39, 0
    %p144 = por %p142, %p143
    %p145 = scmp.ne.s32.totalorder %s133, %s134
    %p146 = scmp.eq.s32.totalorder %s40, 1
    %p147 = por %p145, %p146
    %p149 = scmp.ne.s32.totalorder %s134, %s148
    %p150 = scmp.eq.s32.totalorder %s40, 0
    %p151 = por %p149, %p150
    %s153 = sadd.s32 %s152, 1
    %p156 = scmp.eq.s32.totalorder %s34, 1
    %p157 = scmp.ne.s32.totalorder %s152, %s154
    %p158 = scmp.eq.s32.totalorder %s34, 0
    %p159 = por %p157, %p158
    %p160 = scmp.ne.s32.totalorder %s152, %s154
    %p161 = scmp.eq.s32.totalorder %s39, 1
    %p162 = por %p160, %p161
    %p163 = scmp.ne.s32.totalorder %s154, %s155
    %p164 = scmp.eq.s32.totalorder %s39, 0
    %p165 = por %p163, %p164
    %p166 = scmp.ne.s32.totalorder %s154, %s155
    %p167 = scmp.eq.s32.totalorder %s40, 1
    %p168 = por %p166, %p167
    %p170 = scmp.ne.s32.totalorder %s155, %s169
    %p171 = scmp.eq.s32.totalorder %s40, 0
    %p172 = por %p170, %p171
    %s174 = sadd.s32 %s173, 1
    %p177 = scmp.eq.s32.totalorder %s34, 1
    %p178 = scmp.ne.s32.totalorder %s173, %s175
    %p179 = scmp.eq.s32.totalorder %s34, 0
    %p180 = por %p178, %p179
    %p181 = scmp.ne.s32.totalorder %s173, %s175
    %p182 = scmp.eq.s32.totalorder %s39, 1
    %p183 = por %p181, %p182
    %p184 = scmp.ne.s32.totalorder %s175, %s176
    %p185 = scmp.eq.s32.totalorder %s39, 0
    %p186 = por %p184, %p185
    %p187 = scmp.ne.s32.totalorder %s175, %s176
    %p188 = scmp.eq.s32.totalorder %s40, 1
    %p189 = por %p187, %p188
    %p191 = scmp.ne.s32.totalorder %s176, %s190
    %p192 = scmp.eq.s32.totalorder %s40, 0
    %p193 = por %p191, %p192
    %s195 = sadd.s32 %s194, 1
    %p198 = scmp.eq.s32.totalorder %s34, 1
    %p199 = scmp.ne.s32.totalorder %s194, %s196
    %p200 = scmp.eq.s32.totalorder %s34, 0
    %p201 = por %p199, %p200
    %p202 = scmp.ne.s32.totalorder %s194, %s196
    %p203 = scmp.eq.s32.totalorder %s39, 1
    %p204 = por %p202, %p203
    %p205 = scmp.ne.s32.totalorder %s196, %s197
    %p206 = scmp.eq.s32.totalorder %s39, 0
    %p207 = por %p205, %p206
    %p208 = scmp.ne.s32.totalorder %s196, %s197
    %p209 = scmp.eq.s32.totalorder %s40, 1
    %p210 = por %p208, %p209
    %p212 = scmp.ne.s32.totalorder %s197, %s211
    %p213 = scmp.eq.s32.totalorder %s40, 0
    %p214 = por %p212, %p213
    %s216 = sadd.s32 %s215, 1
    %p219 = scmp.eq.s32.totalorder %s34, 1
    %p220 = scmp.ne.s32.totalorder %s215, %s217
    %p221 = scmp.eq.s32.totalorder %s34, 0
    %p222 = por %p220, %p221
    %p223 = scmp.ne.s32.totalorder %s215, %s217
    %p224 = scmp.eq.s32.totalorder %s39, 1
    %p225 = por %p223, %p224
    %p226 = scmp.ne.s32.totalorder %s217, %s218
    %p227 = scmp.eq.s32.totalorder %s39, 0
    %p228 = por %p226, %p227
    %p229 = scmp.ne.s32.totalorder %s217, %s218
    %p230 = scmp.eq.s32.totalorder %s40, 1
    %p231 = por %p229, %p230
    %p233 = scmp.ne.s32.totalorder %s218, %s232
    %p234 = scmp.eq.s32.totalorder %s40, 0
    %p235 = por %p233, %p234
    %s237 = sadd.s32 %s236, 1
    %p240 = scmp.eq.s32.totalorder %s34, 1
    %p241 = scmp.ne.s32.totalorder %s236, %s238
    %p242 = scmp.eq.s32.totalorder %s34, 0
    %p243 = por %p241, %p242
    %p244 = scmp.ne.s32.totalorder %s236, %s238
    %p245 = scmp.eq.s32.totalorder %s39, 1
    %p246 = por %p244, %p245
    %p247 = scmp.ne.s32.totalorder %s238, %s239
    %p248 = scmp.eq.s32.totalorder %s39, 0
    %p249 = por %p247, %p248
    %p250 = scmp.ne.s32.totalorder %s238, %s239
    %p251 = scmp.eq.s32.totalorder %s40, 1
    %p252 = por %p250, %p251
    %p254 = scmp.ne.s32.totalorder %s239, %s253
    %p255 = scmp.eq.s32.totalorder %s40, 0
    %p256 = por %p254, %p255
    %s258 = sadd.s32 %s257, 1
    %p261 = scmp.eq.s32.totalorder %s34, 1
    %p262 = scmp.ne.s32.totalorder %s257, %s259
    %p263 = scmp.eq.s32.totalorder %s34, 0
    %p264 = por %p262, %p263
    %p265 = scmp.ne.s32.totalorder %s257, %s259
    %p266 = scmp.eq.s32.totalorder %s39, 1
    %p267 = por %p265, %p266
    %p268 = scmp.ne.s32.totalorder %s259, %s260
    %p269 = scmp.eq.s32.totalorder %s39, 0
    %p270 = por %p268, %p269
    %p271 = scmp.ne.s32.totalorder %s259, %s260
    %p272 = scmp.eq.s32.totalorder %s40, 1
    %p273 = por %p271, %p272
    %p275 = scmp.ne.s32.totalorder %s260, %s274
    %p276 = scmp.eq.s32.totalorder %s40, 0
    %p277 = por %p275, %p276
    %s279 = sadd.s32 %s278, 1
    %p282 = scmp.eq.s32.totalorder %s34, 1
    %p283 = scmp.ne.s32.totalorder %s278, %s280
    %p284 = scmp.eq.s32.totalorder %s34, 0
    %p285 = por %p283, %p284
    %p286 = scmp.ne.s32.totalorder %s278, %s280
    %p287 = scmp.eq.s32.totalorder %s39, 1
    %p288 = por %p286, %p287
    %p289 = scmp.ne.s32.totalorder %s280, %s281
    %p290 = scmp.eq.s32.totalorder %s39, 0
    %p291 = por %p289, %p290
    %p292 = scmp.ne.s32.totalorder %s280, %s281
    %p293 = scmp.eq.s32.totalorder %s40, 1
    %p294 = por %p292, %p293
    %p296 = scmp.ne.s32.totalorder %s281, %s295
    %p297 = scmp.eq.s32.totalorder %s40, 0
    %p298 = por %p296, %p297
    %s300 = sadd.s32 %s299, 1
    %p303 = scmp.eq.s32.totalorder %s34, 1
    %p304 = scmp.ne.s32.totalorder %s299, %s301
    %p305 = scmp.eq.s32.totalorder %s34, 0
    %p306 = por %p304, %p305
    %p307 = scmp.ne.s32.totalorder %s299, %s301
    %p308 = scmp.eq.s32.totalorder %s39, 1
    %p309 = por %p307, %p308
    %p310 = scmp.ne.s32.totalorder %s301, %s302
    %p311 = scmp.eq.s32.totalorder %s39, 0
    %p312 = por %p310, %p311
    %p313 = scmp.ne.s32.totalorder %s301, %s302
    %p314 = scmp.eq.s32.totalorder %s40, 1
    %p315 = por %p313, %p314
    %p317 = scmp.ne.s32.totalorder %s302, %s316
    %p318 = scmp.eq.s32.totalorder %s40, 0
    %p319 = por %p317, %p318
    %s321 = sadd.s32 %s320, 1
    %p324 = scmp.eq.s32.totalorder %s34, 1
    %p325 = scmp.ne.s32.totalorder %s320, %s322
    %p326 = scmp.eq.s32.totalorder %s34, 0
    %p327 = por %p325, %p326
    %p328 = scmp.ne.s32.totalorder %s320, %s322
    %p329 = scmp.eq.s32.totalorder %s39, 1
    %p330 = por %p328, %p329
    %p331 = scmp.ne.s32.totalorder %s322, %s323
    %p332 = scmp.eq.s32.totalorder %s39, 0
    %p333 = por %p331, %p332
    %p334 = scmp.ne.s32.totalorder %s322, %s323
    %p335 = scmp.eq.s32.totalorder %s40, 1
    %p336 = por %p334, %p335
    %p338 = scmp.ne.s32.totalorder %s323, %s337
    %p339 = scmp.eq.s32.totalorder %s40, 0
    %p340 = por %p338, %p339
    %s342 = sadd.s32 %s341, 1
    %p345 = scmp.eq.s32.totalorder %s34, 1
    %p346 = scmp.ne.s32.totalorder %s341, %s343
    %p347 = scmp.eq.s32.totalorder %s34, 0
    %p348 = por %p346, %p347
    %p349 = scmp.ne.s32.totalorder %s341, %s343
    %p350 = scmp.eq.s32.totalorder %s39, 1
    %p351 = por %p349, %p350
    %p352 = scmp.ne.s32.totalorder %s343, %s344
    %p353 = scmp.eq.s32.totalorder %s39, 0
    %p354 = por %p352, %p353
    %p355 = scmp.ne.s32.totalorder %s343, %s344
    %p356 = scmp.eq.s32.totalorder %s40, 1
    %p357 = por %p355, %p356
    %p359 = scmp.ne.s32.totalorder %s344, %s358
    %p360 = scmp.eq.s32.totalorder %s40, 0
    %p361 = por %p359, %p360
    %s363 = sadd.s32 %s362, 1
    %p366 = scmp.eq.s32.totalorder %s34, 1
    %p367 = scmp.ne.s32.totalorder %s362, %s364
    %p368 = scmp.eq.s32.totalorder %s34, 0
    %p369 = por %p367, %p368
    %p370 = scmp.ne.s32.totalorder %s362, %s364
    %p371 = scmp.eq.s32.totalorder %s39, 1
    %p372 = por %p370, %p371
    %p373 = scmp.ne.s32.totalorder %s364, %s365
    %p374 = scmp.eq.s32.totalorder %s39, 0
    %p375 = por %p373, %p374
    %p376 = scmp.ne.s32.totalorder %s364, %s365
    %p377 = scmp.eq.s32.totalorder %s40, 1
    %p378 = por %p376, %p377
    %p380 = scmp.ne.s32.totalorder %s365, %s379
    %p381 = scmp.eq.s32.totalorder %s40, 0
    %p382 = por %p380, %p381
    %s384 = sadd.s32 %s383, 1
    %p387 = scmp.eq.s32.totalorder %s34, 1
    %p388 = scmp.ne.s32.totalorder %s383, %s385
    %p389 = scmp.eq.s32.totalorder %s34, 0
    %p390 = por %p388, %p389
    %p391 = scmp.ne.s32.totalorder %s383, %s385
    %p392 = scmp.eq.s32.totalorder %s39, 1
    %p393 = por %p391, %p392
    %p394 = scmp.ne.s32.totalorder %s385, %s386
    %p395 = scmp.eq.s32.totalorder %s39, 0
    %p396 = por %p394, %p395
    %p397 = scmp.ne.s32.totalorder %s385, %s386
    %p398 = scmp.eq.s32.totalorder %s40, 1
    %p399 = por %p397, %p398
    %p401 = scmp.ne.s32.totalorder %s386, %s400
    %p402 = scmp.eq.s32.totalorder %s40, 0
    %p403 = por %p401, %p402
    %s405 = sadd.s32 %s404, 1
    %p408 = scmp.eq.s32.totalorder %s34, 1
    %p409 = scmp.ne.s32.totalorder %s404, %s406
    %p410 = scmp.eq.s32.totalorder %s34, 0
    %p411 = por %p409, %p410
    %p412 = scmp.ne.s32.totalorder %s404, %s406
    %p413 = scmp.eq.s32.totalorder %s39, 1
    %p414 = por %p412, %p413
    %p415 = scmp.ne.s32.totalorder %s406, %s407
    %p416 = scmp.eq.s32.totalorder %s39, 0
    %p417 = por %p415, %p416
    %p418 = scmp.ne.s32.totalorder %s406, %s407
    %p419 = scmp.eq.s32.totalorder %s40, 1
    %p420 = por %p418, %p419
    %p422 = scmp.ne.s32.totalorder %s407, %s421
    %p423 = scmp.eq.s32.totalorder %s40, 0
    %p424 = por %p422, %p423
    %s426 = sadd.s32 %s425, 1
    %p429 = scmp.eq.s32.totalorder %s34, 1
    %p430 = scmp.ne.s32.totalorder %s425, %s427
    %p431 = scmp.eq.s32.totalorder %s34, 0
    %p432 = por %p430, %p431
    %p433 = scmp.ne.s32.totalorder %s425, %s427
    %p434 = scmp.eq.s32.totalorder %s39, 1
    %p435 = por %p433, %p434
    %p436 = scmp.ne.s32.totalorder %s427, %s428
    %p437 = scmp.eq.s32.totalorder %s39, 0
    %p438 = por %p436, %p437
    %p439 = scmp.ne.s32.totalorder %s427, %s428
    %p440 = scmp.eq.s32.totalorder %s40, 1
    %p441 = por %p439, %p440
    %p443 = scmp.ne.s32.totalorder %s428, %s442
    %p444 = scmp.eq.s32.totalorder %s40, 0
    %p445 = por %p443, %p444
    %s447 = sadd.s32 %s446, 1
    %p450 = scmp.eq.s32.totalorder %s34, 1
    %p451 = scmp.ne.s32.totalorder %s446, %s448
    %p452 = scmp.eq.s32.totalorder %s34, 0
    %p453 = por %p451, %p452
    %p454 = scmp.ne.s32.totalorder %s446, %s448
    %p455 = scmp.eq.s32.totalorder %s39, 1
    %p456 = por %p454, %p455
    %p457 = scmp.ne.s32.totalorder %s448, %s449
    %p458 = scmp.eq.s32.totalorder %s39, 0
    %p459 = por %p457, %p458
    %p460 = scmp.ne.s32.totalorder %s448, %s449
    %p461 = scmp.eq.s32.totalorder %s40, 1
    %p462 = por %p460, %p461
    %p464 = scmp.ne.s32.totalorder %s449, %s463
    %p465 = scmp.eq.s32.totalorder %s40, 0
    %p466 = por %p464, %p465
    %s468 = sadd.s32 %s467, 1
    %p471 = scmp.eq.s32.totalorder %s34, 1
    %p472 = scmp.ne.s32.totalorder %s467, %s469
    %p473 = scmp.eq.s32.totalorder %s34, 0
    %p474 = por %p472, %p473
    %p475 = scmp.ne.s32.totalorder %s467, %s469
    %p476 = scmp.eq.s32.totalorder %s39, 1
    %p477 = por %p475, %p476
    %p478 = scmp.ne.s32.totalorder %s469, %s470
    %p479 = scmp.eq.s32.totalorder %s39, 0
    %p480 = por %p478, %p479
    %p481 = scmp.ne.s32.totalorder %s469, %s470
    %p482 = scmp.eq.s32.totalorder %s40, 1
    %p483 = por %p481, %p482
    %p485 = scmp.ne.s32.totalorder %s470, %s484
    %p486 = scmp.eq.s32.totalorder %s40, 0
    %p487 = por %p485, %p486
    %s489 = sadd.s32 %s488, 1
    %p492 = scmp.eq.s32.totalorder %s34, 1
    %p493 = scmp.ne.s32.totalorder %s488, %s490
    %p494 = scmp.eq.s32.totalorder %s34, 0
    %p495 = por %p493, %p494
    %p496 = scmp.ne.s32.totalorder %s488, %s490
    %p497 = scmp.eq.s32.totalorder %s39, 1
    %p498 = por %p496, %p497
    %p499 = scmp.ne.s32.totalorder %s490, %s491
    %p500 = scmp.eq.s32.totalorder %s39, 0
    %p501 = por %p499, %p500
    %p502 = scmp.ne.s32.totalorder %s490, %s491
    %p503 = scmp.eq.s32.totalorder %s40, 1
    %p504 = por %p502, %p503
    %p506 = scmp.ne.s32.totalorder %s491, %s505
    %p507 = scmp.eq.s32.totalorder %s40, 0
    %p508 = por %p506, %p507
    %s510 = sadd.s32 %s509, 1
    %p513 = scmp.eq.s32.totalorder %s34, 1
    %p514 = scmp.ne.s32.totalorder %s509, %s511
    %p515 = scmp.eq.s32.totalorder %s34, 0
    %p516 = por %p514, %p515
    %p517 = scmp.ne.s32.totalorder %s509, %s511
    %p518 = scmp.eq.s32.totalorder %s39, 1
    %p519 = por %p517, %p518
    %p520 = scmp.ne.s32.totalorder %s511, %s512
    %p521 = scmp.eq.s32.totalorder %s39, 0
    %p522 = por %p520, %p521
    %p523 = scmp.ne.s32.totalorder %s511, %s512
    %p524 = scmp.eq.s32.totalorder %s40, 1
    %p525 = por %p523, %p524
    %p527 = scmp.ne.s32.totalorder %s512, %s526
    %p528 = scmp.eq.s32.totalorder %s40, 0
    %p529 = por %p527, %p528
    %s530 = ssub.s32 %s34, %s41
    %p531 = scmp.eq.s32.totalorder %s530, 0
    %s533 = sadd.s32 %s532, 1
    %s534 = scalar_select %p531, %s532, %s533
    %p537 = pneg %p531
    %p538 = scmp.eq.s32.totalorder %s34, 1
    %p539 = por %p537, %p538
    %p540 = scmp.ne.s32.totalorder %s532, %s535
    %p541 = scmp.eq.s32.totalorder %s34, 0
    %p542 = por %p540, %p541
    %p543 = scmp.ne.s32.totalorder %s532, %s535
    %p544 = scmp.eq.s32.totalorder %s39, 1
    %p545 = por %p543, %p544
    %p546 = scmp.ne.s32.totalorder %s535, %s536
    %p547 = scmp.eq.s32.totalorder %s39, 0
    %p548 = por %p546, %p547
    %p549 = scmp.ne.s32.totalorder %s535, %s536
    %p550 = scmp.eq.s32.totalorder %s40, 1
    %p551 = por %p549, %p550
    %p553 = scmp.ne.s32.totalorder %s536, %s552
    %p554 = scmp.eq.s32.totalorder %s40, 0
    %p555 = por %p553, %p554
    %s556 = ssub.s32 %s34, %s41
    %p557 = scmp.eq.s32.totalorder %s556, 0
    %s559 = sadd.s32 %s558, 1
    %s560 = scalar_select %p557, %s558, %s559
    %p563 = pneg %p557
    %p564 = scmp.eq.s32.totalorder %s34, 1
    %p565 = por %p563, %p564
    %p566 = scmp.ne.s32.totalorder %s558, %s561
    %p567 = scmp.eq.s32.totalorder %s34, 0
    %p568 = por %p566, %p567
    %p569 = scmp.ne.s32.totalorder %s558, %s561
    %p570 = scmp.eq.s32.totalorder %s39, 1
    %p571 = por %p569, %p570
    %p572 = scmp.ne.s32.totalorder %s561, %s562
    %p573 = scmp.eq.s32.totalorder %s39, 0
    %p574 = por %p572, %p573
    %p575 = scmp.ne.s32.totalorder %s561, %s562
    %p576 = scmp.eq.s32.totalorder %s40, 1
    %p577 = por %p575, %p576
    %p579 = scmp.ne.s32.totalorder %s562, %s578
    %p580 = scmp.eq.s32.totalorder %s40, 0
    %p581 = por %p579, %p580
    %s582 = ssub.s32 %s34, %s41
    %p583 = scmp.eq.s32.totalorder %s582, 0
    %s585 = sadd.s32 %s584, 1
    %s586 = scalar_select %p583, %s584, %s585
    %p589 = pneg %p583
    %p590 = scmp.eq.s32.totalorder %s34, 1
    %p591 = por %p589, %p590
    %p592 = scmp.ne.s32.totalorder %s584, %s587
    %p593 = scmp.eq.s32.totalorder %s34, 0
    %p594 = por %p592, %p593
    %p595 = scmp.ne.s32.totalorder %s584, %s587
    %p596 = scmp.eq.s32.totalorder %s39, 1
    %p597 = por %p595, %p596
    %p598 = scmp.ne.s32.totalorder %s587, %s588
    %p599 = scmp.eq.s32.totalorder %s39, 0
    %p600 = por %p598, %p599
    %p601 = scmp.ne.s32.totalorder %s587, %s588
    %p602 = scmp.eq.s32.totalorder %s40, 1
    %p603 = por %p601, %p602
    %p605 = scmp.ne.s32.totalorder %s588, %s604
    %p606 = scmp.eq.s32.totalorder %s40, 0
    %p607 = por %p605, %p606
    %s608 = ssub.s32 %s34, %s41
    %p609 = scmp.eq.s32.totalorder %s608, 0
    %s611 = sadd.s32 %s610, 1
    %s612 = scalar_select %p609, %s610, %s611
    %p615 = pneg %p609
    %p616 = scmp.eq.s32.totalorder %s34, 1
    %p617 = por %p615, %p616
    %p618 = scmp.ne.s32.totalorder %s610, %s613
    %p619 = scmp.eq.s32.totalorder %s34, 0
    %p620 = por %p618, %p619
    %p621 = scmp.ne.s32.totalorder %s610, %s613
    %p622 = scmp.eq.s32.totalorder %s39, 1
    %p623 = por %p621, %p622
    %p624 = scmp.ne.s32.totalorder %s613, %s614
    %p625 = scmp.eq.s32.totalorder %s39, 0
    %p626 = por %p624, %p625
    %p627 = scmp.ne.s32.totalorder %s613, %s614
    %p628 = scmp.eq.s32.totalorder %s40, 1
    %p629 = por %p627, %p628
    %p631 = scmp.ne.s32.totalorder %s614, %s630
    %p632 = scmp.eq.s32.totalorder %s40, 0
    %p633 = por %p631, %p632
    %s634 = ssub.s32 %s34, %s41
    %p635 = scmp.eq.s32.totalorder %s634, 0
    %s637 = sadd.s32 %s636, 1
    %s638 = scalar_select %p635, %s636, %s637
    %p641 = pneg %p635
    %p642 = scmp.eq.s32.totalorder %s34, 1
    %p643 = por %p641, %p642
    %p644 = scmp.ne.s32.totalorder %s636, %s639
    %p645 = scmp.eq.s32.totalorder %s34, 0
    %p646 = por %p644, %p645
    %p647 = scmp.ne.s32.totalorder %s636, %s639
    %p648 = scmp.eq.s32.totalorder %s39, 1
    %p649 = por %p647, %p648
    %p650 = scmp.ne.s32.totalorder %s639, %s640
    %p651 = scmp.eq.s32.totalorder %s39, 0
    %p652 = por %p650, %p651
    %p653 = scmp.ne.s32.totalorder %s639, %s640
    %p654 = scmp.eq.s32.totalorder %s40, 1
    %p655 = por %p653, %p654
    %p657 = scmp.ne.s32.totalorder %s640, %s656
    %p658 = scmp.eq.s32.totalorder %s40, 0
    %p659 = por %p657, %p658
    %p660 = scmp.le.s32.totalorder 1, %s34
    %p661 = scmp.lt.s32.totalorder %s34, 3
    %p662 = pnand %p660, %p661
    %p663 = pneg %p662
    // Predicated region
    $region9: #{bcm_block.1} parent=5 // pred_check
      _
    $region10: #{bcm_block.1} parent=5 // pred_check_branch
      %665 = sbr.rel (%p662) target = $region12
    $region11: #{bcm_block.1} parent=5 // pred_region
      %s666 = ssub.s32 %s34, 1
      // Predicated region
      $region13: #{bcm_block.1} parent=11 // pred_check
        %p667 = pneg %p81
      $region14: #{bcm_block.1} parent=11 // pred_check_branch
        %669 = sbr.rel (%p667) target = $region16
      $region15: #{bcm_block.1} parent=11 // pred_region
        _
      $region16: #{bcm_block.1} parent=11 // pred_fallthru
        _
      // Predicated region
      $region17: #{bcm_block.1} parent=11 // pred_check
        %p670 = pneg %p102
      $region18: #{bcm_block.1} parent=11 // pred_check_branch
        %672 = sbr.rel (%p670) target = $region20
      $region19: #{bcm_block.1} parent=11 // pred_region
        _
      $region20: #{bcm_block.1} parent=11 // pred_fallthru
        _
      // Predicated region
      $region21: #{bcm_block.1} parent=11 // pred_check
        %p673 = pneg %p123
      $region22: #{bcm_block.1} parent=11 // pred_check_branch
        %675 = sbr.rel (%p673) target = $region24
      $region23: #{bcm_block.1} parent=11 // pred_region
        _
      $region24: #{bcm_block.1} parent=11 // pred_fallthru
        _
      // Predicated region
      $region25: #{bcm_block.1} parent=11 // pred_check
        %p676 = pneg %p144
      $region26: #{bcm_block.1} parent=11 // pred_check_branch
        %678 = sbr.rel (%p676) target = $region28
      $region27: #{bcm_block.1} parent=11 // pred_region
        _
      $region28: #{bcm_block.1} parent=11 // pred_fallthru
        _
      // Predicated region
      $region29: #{bcm_block.1} parent=11 // pred_check
        %p679 = pneg %p165
      $region30: #{bcm_block.1} parent=11 // pred_check_branch
        %681 = sbr.rel (%p679) target = $region32
      $region31: #{bcm_block.1} parent=11 // pred_region
        _
      $region32: #{bcm_block.1} parent=11 // pred_fallthru
        _
      // Predicated region
      $region33: #{bcm_block.1} parent=11 // pred_check
        %p682 = pneg %p186
      $region34: #{bcm_block.1} parent=11 // pred_check_branch
        %684 = sbr.rel (%p682) target = $region36
      $region35: #{bcm_block.1} parent=11 // pred_region
        _
      $region36: #{bcm_block.1} parent=11 // pred_fallthru
        _
      // Predicated region
      $region37: #{bcm_block.1} parent=11 // pred_check
        %p685 = pneg %p207
      $region38: #{bcm_block.1} parent=11 // pred_check_branch
        %687 = sbr.rel (%p685) target = $region40
      $region39: #{bcm_block.1} parent=11 // pred_region
        _
      $region40: #{bcm_block.1} parent=11 // pred_fallthru
        _
      // Predicated region
      $region41: #{bcm_block.1} parent=11 // pred_check
        %p688 = pneg %p228
      $region42: #{bcm_block.1} parent=11 // pred_check_branch
        %690 = sbr.rel (%p688) target = $region44
      $region43: #{bcm_block.1} parent=11 // pred_region
        _
      $region44: #{bcm_block.1} parent=11 // pred_fallthru
        _
      // Predicated region
      $region45: #{bcm_block.1} parent=11 // pred_check
        %p691 = pneg %p249
      $region46: #{bcm_block.1} parent=11 // pred_check_branch
        %693 = sbr.rel (%p691) target = $region48
      $region47: #{bcm_block.1} parent=11 // pred_region
        _
      $region48: #{bcm_block.1} parent=11 // pred_fallthru
        _
      // Predicated region
      $region49: #{bcm_block.1} parent=11 // pred_check
        %p694 = pneg %p270
      $region50: #{bcm_block.1} parent=11 // pred_check_branch
        %696 = sbr.rel (%p694) target = $region52
      $region51: #{bcm_block.1} parent=11 // pred_region
        _
      $region52: #{bcm_block.1} parent=11 // pred_fallthru
        _
      // Predicated region
      $region53: #{bcm_block.1} parent=11 // pred_check
        %p697 = pneg %p291
      $region54: #{bcm_block.1} parent=11 // pred_check_branch
        %699 = sbr.rel (%p697) target = $region56
      $region55: #{bcm_block.1} parent=11 // pred_region
        _
      $region56: #{bcm_block.1} parent=11 // pred_fallthru
        _
      // Predicated region
      $region57: #{bcm_block.1} parent=11 // pred_check
        %p700 = pneg %p312
      $region58: #{bcm_block.1} parent=11 // pred_check_branch
        %702 = sbr.rel (%p700) target = $region60
      $region59: #{bcm_block.1} parent=11 // pred_region
        _
      $region60: #{bcm_block.1} parent=11 // pred_fallthru
        _
      // Predicated region
      $region61: #{bcm_block.1} parent=11 // pred_check
        %p703 = pneg %p333
      $region62: #{bcm_block.1} parent=11 // pred_check_branch
        %705 = sbr.rel (%p703) target = $region64
      $region63: #{bcm_block.1} parent=11 // pred_region
        _
      $region64: #{bcm_block.1} parent=11 // pred_fallthru
        _
      // Predicated region
      $region65: #{bcm_block.1} parent=11 // pred_check
        %p706 = pneg %p354
      $region66: #{bcm_block.1} parent=11 // pred_check_branch
        %708 = sbr.rel (%p706) target = $region68
      $region67: #{bcm_block.1} parent=11 // pred_region
        _
      $region68: #{bcm_block.1} parent=11 // pred_fallthru
        _
      // Predicated region
      $region69: #{bcm_block.1} parent=11 // pred_check
        %p709 = pneg %p375
      $region70: #{bcm_block.1} parent=11 // pred_check_branch
        %711 = sbr.rel (%p709) target = $region72
      $region71: #{bcm_block.1} parent=11 // pred_region
        _
      $region72: #{bcm_block.1} parent=11 // pred_fallthru
        _
      // Predicated region
      $region73: #{bcm_block.1} parent=11 // pred_check
        %p712 = pneg %p396
      $region74: #{bcm_block.1} parent=11 // pred_check_branch
        %714 = sbr.rel (%p712) target = $region76
      $region75: #{bcm_block.1} parent=11 // pred_region
        _
      $region76: #{bcm_block.1} parent=11 // pred_fallthru
        _
      // Predicated region
      $region77: #{bcm_block.1} parent=11 // pred_check
        %p715 = pneg %p417
      $region78: #{bcm_block.1} parent=11 // pred_check_branch
        %717 = sbr.rel (%p715) target = $region80
      $region79: #{bcm_block.1} parent=11 // pred_region
        _
      $region80: #{bcm_block.1} parent=11 // pred_fallthru
        _
      // Predicated region
      $region81: #{bcm_block.1} parent=11 // pred_check
        %p718 = pneg %p438
      $region82: #{bcm_block.1} parent=11 // pred_check_branch
        %720 = sbr.rel (%p718) target = $region84
      $region83: #{bcm_block.1} parent=11 // pred_region
        _
      $region84: #{bcm_block.1} parent=11 // pred_fallthru
        _
      // Predicated region
      $region85: #{bcm_block.1} parent=11 // pred_check
        %p721 = pneg %p459
      $region86: #{bcm_block.1} parent=11 // pred_check_branch
        %723 = sbr.rel (%p721) target = $region88
      $region87: #{bcm_block.1} parent=11 // pred_region
        _
      $region88: #{bcm_block.1} parent=11 // pred_fallthru
        _
      // Predicated region
      $region89: #{bcm_block.1} parent=11 // pred_check
        %p724 = pneg %p480
      $region90: #{bcm_block.1} parent=11 // pred_check_branch
        %726 = sbr.rel (%p724) target = $region92
      $region91: #{bcm_block.1} parent=11 // pred_region
        _
      $region92: #{bcm_block.1} parent=11 // pred_fallthru
        _
      // Predicated region
      $region93: #{bcm_block.1} parent=11 // pred_check
        %p727 = pneg %p501
      $region94: #{bcm_block.1} parent=11 // pred_check_branch
        %729 = sbr.rel (%p727) target = $region96
      $region95: #{bcm_block.1} parent=11 // pred_region
        _
      $region96: #{bcm_block.1} parent=11 // pred_fallthru
        _
      // Predicated region
      $region97: #{bcm_block.1} parent=11 // pred_check
        %p730 = pneg %p522
      $region98: #{bcm_block.1} parent=11 // pred_check_branch
        %732 = sbr.rel (%p730) target = $region100
      $region99: #{bcm_block.1} parent=11 // pred_region
        _
      $region100: #{bcm_block.1} parent=11 // pred_fallthru
        _
    $region12: #{bcm_block.1} parent=5 // pred_fallthru
      _
    %p733 = scmp.lt.s32.totalorder %s34, 2
    // Predicated region
    $region101: #{bcm_block.1} parent=5 // pred_check
      %p734 = pneg %p733
    $region102: #{bcm_block.1} parent=5 // pred_check_branch
      %736 = sbr.rel (%p734) target = $region104
    $region103: #{bcm_block.1} parent=5 // pred_region
      // Predicated region
      $region105: #{bcm_block.1} parent=103 // pred_check
        %p737 = pneg %p54
      $region106: #{bcm_block.1} parent=103 // pred_check_branch
        %739 = sbr.rel (%p737) target = $region108
      $region107: #{bcm_block.1} parent=103 // pred_region
        %p740 = scmp.lt.s32.totalorder %s34, 1
        %s741 = scalar_select %p740, %s34, 1
        %s742 = smul.addr %s741, 2
        %s743 = smul.addr %s742, 4
        %s744 = scalar_lea.vmem %s0, %s743
      $region108: #{bcm_block.1} parent=103 // pred_fallthru
        _
    $region104: #{bcm_block.1} parent=5 // pred_fallthru
      _
    %p745 = scmp.le.s32.totalorder 1, %s34
    %p746 = scmp.lt.s32.totalorder %s34, 3
    %p747 = pnand %p745, %p746
    %p748 = pneg %p747
    // Predicated region
    $region109: #{bcm_block.1} parent=5 // pred_check
      _
    $region110: #{bcm_block.1} parent=5 // pred_check_branch
      %750 = sbr.rel (%p747) target = $region112
    $region111: #{bcm_block.1} parent=5 // pred_region
      %s751 = ssub.s32 %s34, 1
      %p752 = scmp.lt.s32.totalorder %s39, 1
      %s753 = scalar_select %p752, %s39, 1
      %s754 = smul.addr %s753, 2
      %s755 = smul.addr %s754, 4
      %s756 = scalar_lea.vmem %s0, %s755
      %p757 = pneg %p60
      %p758 = pneg %p57
      %p759 = pneg %p81
      %p760 = pneg %p78
      %p761 = pneg %p102
      %p762 = pneg %p99
      %p763 = pneg %p123
      %p764 = pneg %p120
      %p765 = pneg %p144
      %p766 = pneg %p141
      %p767 = pneg %p165
      %p768 = pneg %p162
      %p769 = pneg %p186
      %p770 = pneg %p183
      %p771 = pneg %p207
      %p772 = pneg %p204
      %p773 = pneg %p228
      %p774 = pneg %p225
      %p775 = pneg %p249
      %p776 = pneg %p246
      %p777 = pneg %p270
      %p778 = pneg %p267
      %p779 = pneg %p291
      %p780 = pneg %p288
      %p781 = pneg %p312
      %p782 = pneg %p309
      %p783 = pneg %p333
      %p784 = pneg %p330
      %p785 = pneg %p354
      %p786 = pneg %p351
      %p787 = pneg %p375
      %p788 = pneg %p372
      %p789 = pneg %p396
      %p790 = pneg %p393
      %p791 = pneg %p417
      %p792 = pneg %p414
      %p793 = pneg %p438
      %p794 = pneg %p435
      %p795 = pneg %p459
      %p796 = pneg %p456
      %p797 = pneg %p480
      %p798 = pneg %p477
      %p799 = pneg %p501
      %p800 = pneg %p498
      %p801 = pneg %p522
      %p802 = pneg %p519
      %p803 = pneg %p548
      %p804 = pneg %p545
      %p805 = scmp.lt.s32.totalorder %s39, 1
      %s806 = scalar_select %p805, %s39, 1
      %s807 = smul.addr %s806, 2
      %s808 = smul.addr %s807, 4
      %s809 = scalar_lea.vmem %s23, %s808
      %p810 = pneg %p574
      %p811 = pneg %p571
      %p812 = scmp.lt.s32.totalorder %s39, 1
      %s813 = scalar_select %p812, %s39, 1
      %s814 = smul.addr %s813, 4
      %s815 = smul.addr %s814, 8
      %s816 = scalar_lea.vmem %s24, %s815
      %p817 = pneg %p600
      %p818 = pneg %p597
      %p819 = scmp.lt.s32.totalorder %s39, 1
      %s820 = scalar_select %p819, %s39, 1
      %s821 = smul.addr %s820, 2
      %s822 = smul.addr %s821, 4
      %s823 = scalar_lea.vmem %s25, %s822
      %p824 = pneg %p626
      %p825 = pneg %p623
      %p826 = scmp.lt.s32.totalorder %s39, 1
      %s827 = scalar_select %p826, %s39, 1
      %s828 = smul.addr %s827, 2
      %s829 = smul.addr %s828, 4
      %s830 = scalar_lea.vmem %s26, %s829
      %p831 = pneg %p652
      %p832 = pneg %p649
      %p833 = scmp.lt.s32.totalorder %s39, 1
      %s834 = scalar_select %p833, %s39, 1
      %s835 = smul.addr %s834, 2
      %s836 = smul.addr %s835, 4
      %s837 = scalar_lea.vmem %s27, %s836
      %p838 = scmp.lt.s32.totalorder %s39, 1
      %s839 = scalar_select %p838, %s39, 1
      %s840 = smul.addr %s839, 2
      %s841 = smul.addr %s840, 4
      %s842 = scalar_lea.vmem %s0, %s841
      %p843 = scmp.lt.s32.totalorder %s39, 1
      %s844 = scalar_select %p843, %s39, 1
      %s845 = smul.addr %s844, 2
      %s846 = smul.addr %s845, 4
      %s847 = scalar_lea.vmem %s23, %s846
      %p848 = scmp.lt.s32.totalorder %s39, 1
      %s849 = scalar_select %p848, %s39, 1
      %s850 = smul.addr %s849, 4
      %s851 = smul.addr %s850, 8
      %s852 = scalar_lea.vmem %s24, %s851
      %p853 = scmp.lt.s32.totalorder %s39, 1
      %s854 = scalar_select %p853, %s39, 1
      %s855 = smul.addr %s854, 2
      %s856 = smul.addr %s855, 4
      %s857 = scalar_lea.vmem %s25, %s856
      %p858 = scmp.lt.s32.totalorder %s39, 1
      %s859 = scalar_select %p858, %s39, 1
      %s860 = smul.addr %s859, 2
      %s861 = smul.addr %s860, 4
      %s862 = scalar_lea.vmem %s26, %s861
      %p863 = scmp.lt.s32.totalorder %s39, 1
      %s864 = scalar_select %p863, %s39, 1
      %s865 = smul.addr %s864, 2
      %s866 = smul.addr %s865, 4
      %s867 = scalar_lea.vmem %s27, %s866
      %868 = vst [vmem:[#allocation2] sm:$0xff] 0.0
      %vm869 = vcmask 1043456
      %vm870 = vcmask 138244
      %vm871 = vmor %vm870, %vm869
      %872 = vst.msk [vmem:[#allocation2 + $0x8] sm:$0xff] %vm871, 0.0
      %873 = vst.msk [vmem:[#allocation4] sm:$0xff] %vm871, 0.0
      %874 = vst.msk [vmem:[#allocation6] sm:$0xff] %vm871, 0.0
      %v875 = vld [vmem:[%s842] sm:$0xff]
      %v876 = vld [vmem:[%s5] sm:$0x3]
      %v877 = vld [vmem:[%s6] sm:$0x3]
      %v878 = vld [vmem:[%s7] sm:$0xf]
      %v879 = vld [vmem:[%s8] sm:$0xf]
      %880 = vst [vmem:[#allocation2 + $0x4] sm:$0xff] %v875
      %v881 = vld [vmem:[#allocation2] sm:$0xff]
      %v882 = vld [vmem:[#allocation2 + $0x8] sm:$0xf]
      %v884 = vperm.slane %v876, 0
      %v885 = vperm.slane %v876, 1
      %v886 = vrot.slane %v885, 4
      %v887 = vsel %vm869, %v884, %v886
      %888 = vrot.lane.b32.xlu0 %v887, 111
      %v889 = vpop.permute.xlu0 %888
      %v890 = vrot.slane %v889, 4
      %vm891 = vcmask 908288
      %v892 = vsel %vm891, %v890, %v889
      %v895 = vmul.f32 %v881, %v892
      %v896 = vmul.f32 %v882, %v890
      %899 = vst [vmem:[#allocation1] ss:$2 sm:$0xff] %v895
      %s900 = scalar_lea.vmem [#allocation1], 16
      %901 = vst [vmem:[%s900] ss:$2 sm:$0xff] %v896
      %v902 = vld.sshfl [vmem:[#allocation1] sm:$0xff pattern:$0x75316420]
      %v903 = vld.sshfl [vmem:[#allocation1 + $0x8] sm:$0xff pattern:$0x75316420]
      %v904 = vld.sshfl [vmem:[#allocation1 + $0x10] sm:$0xff pattern:$0x75316420]
      %905 = vrot.lane.b32.xlu0 %v902, 17
      %v906 = vpop.permute.xlu0 %905
      %907 = vrot.lane.b32.xlu0 %v903, 17
      %v908 = vpop.permute.xlu0 %907
      %909 = vrot.lane.b32.xlu0 %v904, 17
      %v910 = vpop.permute.xlu0 %909
      %vm911 = vcmask 138240
      %v912 = vsel %vm911, %v906, %v908
      %v913 = vsel %vm911, %v908, %v910
      %916 = vst [vmem:[#allocation3] sm:$0xf] %v912
      %917 = vst [vmem:[#allocation3 + $0x8] sm:$0xf] %v913
      %v918 = vld [vmem:[#allocation2] sm:$0xff]
      %v919 = vld [vmem:[#allocation2 + $0x8] sm:$0xf]
      %s922 = scalar_lea.vmem [#allocation1], 1
      %923 = vst [vmem:[%s922] ss:$2 sm:$0xff] %v918
      %s924 = scalar_lea.vmem [#allocation1], 17
      %925 = vst [vmem:[%s924] ss:$2 sm:$0xff] %v919
      %v926 = vld.sshfl [vmem:[#allocation1] sm:$0xff pattern:$0x75316420]
      %v927 = vld.sshfl [vmem:[#allocation1 + $0x8] sm:$0xff pattern:$0x75316420]
      %v928 = vld.sshfl [vmem:[#allocation1 + $0x10] sm:$0xff pattern:$0x75316420]
      %929 = vrot.lane.b32.xlu0 %v926, 16
      %v930 = vpop.permute.xlu0 %929
      %931 = vrot.lane.b32.xlu0 %v927, 16
      %v932 = vpop.permute.xlu0 %931
      %933 = vrot.lane.b32.xlu0 %v928, 16
      %v934 = vpop.permute.xlu0 %933
      %vm935 = vcmask 130048
      %v936 = vsel %vm935, %v930, %v932
      %v937 = vsel %vm935, %v932, %v934
      %940 = vst [vmem:[#allocation3] sm:$0xf0] %v936
      %941 = vst [vmem:[#allocation3 + $0x8] sm:$0xf0] %v937
      %v942 = vld [vmem:[#allocation2] sm:$0xff]
      %v943 = vld [vmem:[#allocation2 + $0x8] sm:$0xf]
      %v945 = vperm.slane %v877, 0
      %v946 = vperm.slane %v877, 1
      %v947 = vrot.slane %v946, 4
      %v948 = vsel %vm869, %v945, %v947
      %949 = vrot.lane.b32.xlu0 %v948, 113
      %v950 = vpop.permute.xlu0 %949
      %v951 = vrot.slane %v950, 4
      %vm952 = vcmask 924672
      %v953 = vsel %vm952, %v951, %v950
      %v956 = vmul.f32 %v942, %v953
      %v957 = vmul.f32 %v943, %v951
      %960 = vst [vmem:[#allocation1] ss:$2 sm:$0xff] %v956
      %s961 = scalar_lea.vmem [#allocation1], 16
      %962 = vst [vmem:[%s961] ss:$2 sm:$0xff] %v957
      %v963 = vld.sshfl [vmem:[#allocation1] sm:$0xff pattern:$0x75316420]
      %v964 = vld.sshfl [vmem:[#allocation1 + $0x8] sm:$0xff pattern:$0x75316420]
      %v965 = vld.sshfl [vmem:[#allocation1 + $0x10] sm:$0xff pattern:$0x75316420]
      %966 = vrot.lane.b32.xlu0 %v963, 15
      %v967 = vpop.permute.xlu0 %966
      %968 = vrot.lane.b32.xlu0 %v964, 15
      %v969 = vpop.permute.xlu0 %968
      %970 = vrot.lane.b32.xlu0 %v965, 15
      %v971 = vpop.permute.xlu0 %970
      %vm972 = vcmask 121856
      %v973 = vsel %vm972, %v967, %v969
      %v974 = vsel %vm972, %v969, %v971
      %977 = vst [vmem:[#allocation3 + $0x10] sm:$0xf] %v973
      %978 = vst [vmem:[#allocation3 + $0x18] sm:$0xf] %v974
      %v979 = vld [vmem:[#allocation2] sm:$0xff]
      %v980 = vld [vmem:[#allocation2 + $0x8] sm:$0xf]
      %981 = vrot.lane.b32.xlu0 %v887, 127
      %v982 = vpop.permute.xlu0 %981
      %v983 = vrot.slane %v982, 4
      %vm984 = vcmask 1039360
      %v985 = vsel %vm984, %v983, %v982
      %v988 = vmul.f32 %v979, %v985
      %v989 = vmul.f32 %v980, %v983
      %s992 = scalar_lea.vmem [#allocation1], 1
      %993 = vst [vmem:[%s992] ss:$2 sm:$0xff] %v988
      %s994 = scalar_lea.vmem [#allocation1], 17
      %995 = vst [vmem:[%s994] ss:$2 sm:$0xff] %v989
      %v996 = vld.sshfl [vmem:[#allocation1] sm:$0xff pattern:$0x75316420]
      %v997 = vld.sshfl [vmem:[#allocation1 + $0x8] sm:$0xff pattern:$0x75316420]
      %v998 = vld.sshfl [vmem:[#allocation1 + $0x10] sm:$0xff pattern:$0x75316420]
      %999 = vrot.lane.b32.xlu0 %v996, 1
      %v1000 = vpop.permute.xlu0 %999
      %1001 = vrot.lane.b32.xlu0 %v997, 1
      %v1002 = vpop.permute.xlu0 %1001
      %1003 = vrot.lane.b32.xlu0 %v998, 1
      %v1004 = vpop.permute.xlu0 %1003
      %vm1005 = vcmask 7168
      %v1006 = vsel %vm1005, %v1000, %v1002
      %v1007 = vsel %vm1005, %v1002, %v1004
      %1010 = vst [vmem:[#allocation3 + $0x10] sm:$0xf0] %v1006
      %1011 = vst [vmem:[#allocation3 + $0x18] sm:$0xf0] %v1007
      %v1012 = vld [vmem:[#allocation2 + $0x4] sm:$0xff]
      %1014 = vst [vmem:[#allocation1] ss:$2 sm:$0xff] %v1012
      %v1015 = vld.sshfl [vmem:[#allocation1] sm:$0xff pattern:$0x75316420]
      %v1016 = vld.sshfl [vmem:[#allocation1 + $0x8] sm:$0xff pattern:$0x75316420]
      %1019 = vst [vmem:[#allocation3 + $0x20] sm:$0xf] %v1015
      %1020 = vst [vmem:[#allocation3 + $0x28] sm:$0xf] %v1016
      %v1021 = vld [vmem:[#allocation2 + $0x4] sm:$0xff]
      %v1022 = vld [vmem:[#allocation2 + $0xc] sm:$0xf]
      %1023 = vrot.lane.b32.xlu0 %v948, 1
      %v1024 = vpop.permute.xlu0 %1023
      %v1025 = vrot.slane %v1024, 4
      %v1026 = vsel %vm1005, %v1025, %v1024
      %v1029 = vmul.f32 %v1021, %v1026
      %v1030 = vmul.f32 %v1022, %v1025
      %s1033 = scalar_lea.vmem [#allocation1], 1
      %1034 = vst [vmem:[%s1033] ss:$2 sm:$0xff] %v1029
      %s1035 = scalar_lea.vmem [#allocation1], 17
      %1036 = vst [vmem:[%s1035] ss:$2 sm:$0xff] %v1030
      %v1037 = vld.sshfl [vmem:[#allocation1] sm:$0xff pattern:$0x75316420]
      %v1038 = vld.sshfl [vmem:[#allocation1 + $0x8] sm:$0xff pattern:$0x75316420]
      %v1039 = vld.sshfl [vmem:[#allocation1 + $0x10] sm:$0xff pattern:$0x75316420]
      %1040 = vrot.lane.b32.xlu0 %v1037, 127
      %v1041 = vpop.permute.xlu0 %1040
      %1042 = vrot.lane.b32.xlu0 %v1038, 127
      %v1043 = vpop.permute.xlu0 %1042
      %1044 = vrot.lane.b32.xlu0 %v1039, 127
      %v1045 = vpop.permute.xlu0 %1044
      %v1046 = vsel %vm984, %v1041, %v1043
      %v1047 = vsel %vm984, %v1043, %v1045
      %1050 = vst [vmem:[#allocation3 + $0x20] sm:$0xf0] %v1046
      %1051 = vst [vmem:[#allocation3 + $0x28] sm:$0xf0] %v1047
      %v1052 = vld [vmem:[#allocation2 + $0x4] sm:$0xff]
      %v1053 = vld [vmem:[#allocation2 + $0xc] sm:$0xf]
      %1054 = vrot.lane.b32.xlu0 %v887, 15
      %v1055 = vpop.permute.xlu0 %1054
      %v1056 = vrot.slane %v1055, 4
      %v1057 = vsel %vm972, %v1056, %v1055
      %v1060 = vmul.f32 %v1052, %v1057
      %v1061 = vmul.f32 %v1053, %v1056
      %1064 = vst [vmem:[#allocation1] ss:$2 sm:$0xff] %v1060
      %s1065 = scalar_lea.vmem [#allocation1], 16
      %1066 = vst [vmem:[%s1065] ss:$2 sm:$0xff] %v1061
      %v1067 = vld.sshfl [vmem:[#allocation1] sm:$0xff pattern:$0x75316420]
      %v1068 = vld.sshfl [vmem:[#allocation1 + $0x8] sm:$0xff pattern:$0x75316420]
      %v1069 = vld.sshfl [vmem:[#allocation1 + $0x10] sm:$0xff pattern:$0x75316420]
      %1070 = vrot.lane.b32.xlu0 %v1067, 113
      %v1071 = vpop.permute.xlu0 %1070
      %1072 = vrot.lane.b32.xlu0 %v1068, 113
      %v1073 = vpop.permute.xlu0 %1072
      %1074 = vrot.lane.b32.xlu0 %v1069, 113
      %v1075 = vpop.permute.xlu0 %1074
      %v1076 = vsel %vm952, %v1071, %v1073
      %v1077 = vsel %vm952, %v1073, %v1075
      %1080 = vst [vmem:[#allocation3 + $0x30] sm:$0xf] %v1076
      %1081 = vst [vmem:[#allocation3 + $0x38] sm:$0xf] %v1077
      %v1082 = vld [vmem:[#allocation2 + $0x4] sm:$0xff]
      %v1083 = vld [vmem:[#allocation2 + $0xc] sm:$0xf]
      %s1086 = scalar_lea.vmem [#allocation1], 1
      %1087 = vst [vmem:[%s1086] ss:$2 sm:$0xff] %v1082
      %s1088 = scalar_lea.vmem [#allocation1], 17
      %1089 = vst [vmem:[%s1088] ss:$2 sm:$0xff] %v1083
      %v1090 = vld.sshfl [vmem:[#allocation1] sm:$0xff pattern:$0x75316420]
      %v1091 = vld.sshfl [vmem:[#allocation1 + $0x8] sm:$0xff pattern:$0x75316420]
      %v1092 = vld.sshfl [vmem:[#allocation1 + $0x10] sm:$0xff pattern:$0x75316420]
      %1093 = vrot.lane.b32.xlu0 %v1090, 112
      %v1094 = vpop.permute.xlu0 %1093
      %1095 = vrot.lane.b32.xlu0 %v1091, 112
      %v1096 = vpop.permute.xlu0 %1095
      %1097 = vrot.lane.b32.xlu0 %v1092, 112
      %v1098 = vpop.permute.xlu0 %1097
      %vm1099 = vcmask 916480
      %v1100 = vsel %vm1099, %v1094, %v1096
      %v1101 = vsel %vm1099, %v1096, %v1098
      %1104 = vst [vmem:[#allocation3 + $0x30] sm:$0xf0] %v1100
      %1105 = vst [vmem:[#allocation3 + $0x38] sm:$0xf0] %v1101
      %v1106 = vld [vmem:[#allocation2 + $0x4] sm:$0xff]
      %v1107 = vld [vmem:[#allocation2 + $0xc] sm:$0xf]
      %1108 = vrot.lane.b32.xlu0 %v948, 17
      %v1109 = vpop.permute.xlu0 %1108
      %v1110 = vrot.slane %v1109, 4
      %v1111 = vsel %vm911, %v1110, %v1109
      %v1114 = vmul.f32 %v1106, %v1111
      %v1115 = vmul.f32 %v1107, %v1110
      %1118 = vst [vmem:[#allocation1] ss:$2 sm:$0xff] %v1114
      %s1119 = scalar_lea.vmem [#allocation1], 16
      %1120 = vst [vmem:[%s1119] ss:$2 sm:$0xff] %v1115
      %v1121 = vld.sshfl [vmem:[#allocation1] sm:$0xff pattern:$0x75316420]
      %v1122 = vld.sshfl [vmem:[#allocation1 + $0x8] sm:$0xff pattern:$0x75316420]
      %v1123 = vld.sshfl [vmem:[#allocation1 + $0x10] sm:$0xff pattern:$0x75316420]
      %1124 = vrot.lane.b32.xlu0 %v1121, 111
      %v1125 = vpop.permute.xlu0 %1124
      %1126 = vrot.lane.b32.xlu0 %v1122, 111
      %v1127 = vpop.permute.xlu0 %1126
      %1128 = vrot.lane.b32.xlu0 %v1123, 111
      %v1129 = vpop.permute.xlu0 %1128
      %v1130 = vsel %vm891, %v1125, %v1127
      %v1131 = vsel %vm891, %v1127, %v1129
      %1134 = vst [vmem:[#allocation3 + $0x40] sm:$0xf] %v1130
      %1135 = vst [vmem:[#allocation3 + $0x48] sm:$0xf] %v1131
      %v1136 = vld [vmem:[#allocation3] sm:$0xff]
      %v1137 = vld [vmem:[#allocation3 + $0x8] sm:$0xff]
      %v1138 = vld [vmem:[#allocation3 + $0x10] sm:$0xff]
      %v1139 = vld [vmem:[#allocation3 + $0x18] sm:$0xff]
      %v1140 = vld [vmem:[#allocation3 + $0x20] sm:$0xff]
      %v1141 = vld [vmem:[#allocation3 + $0x28] sm:$0xff]
      %v1142 = vld [vmem:[#allocation3 + $0x30] sm:$0xff]
      %v1143 = vld [vmem:[#allocation3 + $0x38] sm:$0xff]
      %v1144 = vld [vmem:[#allocation3 + $0x40] sm:$0xf]
      %v1145 = vld [vmem:[#allocation3 + $0x48] sm:$0xf]
      %1147 = vset.pattern.permute.xlu0 0
      %1148 = vperm.xlu0 %1147, %v879
      %v1149 = vpop.permute.xlu0 %1148
      %vm1151 = vcmask 293888
      %v1153 = vsel %vm1151, %v878, 0
      %v1156 = vsel %vm869, %v1144, 0
      %v1159 = vsel %vm869, %v1145, 0
      %1161 = vmatpush.msra.mxu0 0.0
      %1162 = vmatpush.msra.mxu0 0.0
      %1163 = vmatpush.msra.mxu0 0.0
      %1164 = vmatpush.msra.mxu0 0.0
      %1165 = vmatpush.msra.mxu0 0.0
      %1166 = vmatpush.msra.mxu0 0.0
      %1167 = vmatpush.msra.mxu0 0.0
      %1168 = vmatpush.msra.mxu0 0.0
      %1169 = vmatpush.msra.mxu0 0.0
      %1170 = vmatpush.msra.mxu0 0.0
      %1171 = vmatpush.msra.mxu0 0.0
      %1172 = vmatpush.msra.mxu0 %v1156
      %1173 = vmatpush.msra.mxu0 %v1142
      %1174 = vmatpush.msra.mxu0 %v1140
      %1175 = vmatpush.msra.mxu0 %v1138
      %1176 = vmatpush.msra.mxu0 %v1136
      %1177 = vmatmul.f32.gmra.mxu0 %v1153
      %v1178 = vpop.f32.mrf.mxu0
      %v1179 = vadd.f32 %v1149, %v1178
      %1180 = vdwg.mxu0
      %1181 = vmatpush.msra.mxu0 0.0
      %1182 = vmatpush.msra.mxu0 0.0
      %1183 = vmatpush.msra.mxu0 0.0
      %1184 = vmatpush.msra.mxu0 0.0
      %1185 = vmatpush.msra.mxu0 0.0
      %1186 = vmatpush.msra.mxu0 0.0
      %1187 = vmatpush.msra.mxu0 0.0
      %1188 = vmatpush.msra.mxu0 0.0
      %1189 = vmatpush.msra.mxu0 0.0
      %1190 = vmatpush.msra.mxu0 0.0
      %1191 = vmatpush.msra.mxu0 0.0
      %1192 = vmatpush.msra.mxu0 %v1159
      %1193 = vmatpush.msra.mxu0 %v1143
      %1194 = vmatpush.msra.mxu0 %v1141
      %1195 = vmatpush.msra.mxu0 %v1139
      %1196 = vmatpush.msra.mxu0 %v1137
      %1197 = vmatmul.f32.gmra.mxu0 %v1153
      %v1198 = vpop.f32.mrf.mxu0
      %v1199 = vadd.f32 %v1149, %v1198
      %1200 = vdwg.mxu0
      %v1201 = vmax.f32 %v1179, 0.0
      %v1202 = vmax.f32 %v1199, 0.0
      %v1203 = vld [vmem:[%s9] sm:$0xf]
      %v1204 = vld [vmem:[%s10] sm:$0xf]
      %v1207 = vrot.slane %v1202, 4
      %v1208 = vsel %vm869, %v1201, %v1207
      %1210 = vst [vmem:[#allocation2 + $0x4] sm:$0xff] %v1208
      %v1211 = vld [vmem:[#allocation2] sm:$0xff]
      %v1212 = vld [vmem:[#allocation2 + $0x8] sm:$0xf]
      %v1213 = vmul.f32 %v1211, %v892
      %v1214 = vmul.f32 %v1212, %v890
      %1217 = vst [vmem:[#allocation1] ss:$2 sm:$0xff] %v1213
      %s1218 = scalar_lea.vmem [#allocation1], 16
      %1219 = vst [vmem:[%s1218] ss:$2 sm:$0xff] %v1214
      %v1220 = vld.sshfl [vmem:[#allocation1] sm:$0xff pattern:$0x75316420]
      %v1221 = vld.sshfl [vmem:[#allocation1 + $0x8] sm:$0xff pattern:$0x75316420]
      %v1222 = vld.sshfl [vmem:[#allocation1 + $0x10] sm:$0xff pattern:$0x75316420]
      %1223 = vrot.lane.b32.xlu0 %v1220, 17
      %v1224 = vpop.permute.xlu0 %1223
      %1225 = vrot.lane.b32.xlu0 %v1221, 17
      %v1226 = vpop.permute.xlu0 %1225
      %1227 = vrot.lane.b32.xlu0 %v1222, 17
      %v1228 = vpop.permute.xlu0 %1227
      %v1229 = vsel %vm911, %v1224, %v1226
      %v1230 = vsel %vm911, %v1226, %v1228
      %1233 = vst [vmem:[#allocation3] sm:$0xf] %v1229
      %1234 = vst [vmem:[#allocation3 + $0x8] sm:$0xf] %v1230
      %v1235 = vld [vmem:[#allocation2] sm:$0xff]
      %v1236 = vld [vmem:[#allocation2 + $0x8] sm:$0xf]
      %s1239 = scalar_lea.vmem [#allocation1], 1
      %1240 = vst [vmem:[%s1239] ss:$2 sm:$0xff] %v1235
      %s1241 = scalar_lea.vmem [#allocation1], 17
      %1242 = vst [vmem:[%s1241] ss:$2 sm:$0xff] %v1236
      %v1243 = vld.sshfl [vmem:[#allocation1] sm:$0xff pattern:$0x75316420]
      %v1244 = vld.sshfl [vmem:[#allocation1 + $0x8] sm:$0xff pattern:$0x75316420]
      %v1245 = vld.sshfl [vmem:[#allocation1 + $0x10] sm:$0xff pattern:$0x75316420]
      %1246 = vrot.lane.b32.xlu0 %v1243, 16
      %v1247 = vpop.permute.xlu0 %1246
      %1248 = vrot.lane.b32.xlu0 %v1244, 16
      %v1249 = vpop.permute.xlu0 %1248
      %1250 = vrot.lane.b32.xlu0 %v1245, 16
      %v1251 = vpop.permute.xlu0 %1250
      %v1252 = vsel %vm935, %v1247, %v1249
      %v1253 = vsel %vm935, %v1249, %v1251
      %1256 = vst [vmem:[#allocation3] sm:$0xf0] %v1252
      %1257 = vst [vmem:[#allocation3 + $0x8] sm:$0xf0] %v1253
      %v1258 = vld [vmem:[#allocation2] sm:$0xff]
      %v1259 = vld [vmem:[#allocation2 + $0x8] sm:$0xf]
      %v1260 = vmul.f32 %v1258, %v953
      %v1261 = vmul.f32 %v1259, %v951
      %1264 = vst [vmem:[#allocation1] ss:$2 sm:$0xff] %v1260
      %s1265 = scalar_lea.vmem [#allocation1], 16
      %1266 = vst [vmem:[%s1265] ss:$2 sm:$0xff] %v1261
      %v1267 = vld.sshfl [vmem:[#allocation1] sm:$0xff pattern:$0x75316420]
      %v1268 = vld.sshfl [vmem:[#allocation1 + $0x8] sm:$0xff pattern:$0x75316420]
      %v1269 = vld.sshfl [vmem:[#allocation1 + $0x10] sm:$0xff pattern:$0x75316420]
      %1270 = vrot.lane.b32.xlu0 %v1267, 15
      %v1271 = vpop.permute.xlu0 %1270
      %1272 = vrot.lane.b32.xlu0 %v1268, 15
      %v1273 = vpop.permute.xlu0 %1272
      %1274 = vrot.lane.b32.xlu0 %v1269, 15
      %v1275 = vpop.permute.xlu0 %1274
      %v1276 = vsel %vm972, %v1271, %v1273
      %v1277 = vsel %vm972, %v1273, %v1275
      %1280 = vst [vmem:[#allocation3 + $0x10] sm:$0xf] %v1276
      %1281 = vst [vmem:[#allocation3 + $0x18] sm:$0xf] %v1277
      %v1282 = vld [vmem:[#allocation2] sm:$0xff]
      %v1283 = vld [vmem:[#allocation2 + $0x8] sm:$0xf]
      %v1284 = vmul.f32 %v1282, %v985
      %v1285 = vmul.f32 %v1283, %v983
      %s1288 = scalar_lea.vmem [#allocation1], 1
      %1289 = vst [vmem:[%s1288] ss:$2 sm:$0xff] %v1284
      %s1290 = scalar_lea.vmem [#allocation1], 17
      %1291 = vst [vmem:[%s1290] ss:$2 sm:$0xff] %v1285
      %v1292 = vld.sshfl [vmem:[#allocation1] sm:$0xff pattern:$0x75316420]
      %v1293 = vld.sshfl [vmem:[#allocation1 + $0x8] sm:$0xff pattern:$0x75316420]
      %v1294 = vld.sshfl [vmem:[#allocation1 + $0x10] sm:$0xff pattern:$0x75316420]
      %1295 = vrot.lane.b32.xlu0 %v1292, 1
      %v1296 = vpop.permute.xlu0 %1295
      %1297 = vrot.lane.b32.xlu0 %v1293, 1
      %v1298 = vpop.permute.xlu0 %1297
      %1299 = vrot.lane.b32.xlu0 %v1294, 1
      %v1300 = vpop.permute.xlu0 %1299
      %v1301 = vsel %vm1005, %v1296, %v1298
      %v1302 = vsel %vm1005, %v1298, %v1300
      %1305 = vst [vmem:[#allocation3 + $0x10] sm:$0xf0] %v1301
      %1306 = vst [vmem:[#allocation3 + $0x18] sm:$0xf0] %v1302
      %v1307 = vld [vmem:[#allocation2 + $0x4] sm:$0xff]
      %1309 = vst [vmem:[#allocation1] ss:$2 sm:$0xff] %v1307
      %v1310 = vld.sshfl [vmem:[#allocation1] sm:$0xff pattern:$0x75316420]
      %v1311 = vld.sshfl [vmem:[#allocation1 + $0x8] sm:$0xff pattern:$0x75316420]
      %1314 = vst [vmem:[#allocation3 + $0x20] sm:$0xf] %v1310
      %1315 = vst [vmem:[#allocation3 + $0x28] sm:$0xf] %v1311
      %v1316 = vld [vmem:[#allocation2 + $0x4] sm:$0xff]
      %v1317 = vld [vmem:[#allocation2 + $0xc] sm:$0xf]
      %v1318 = vmul.f32 %v1316, %v1026
      %v1319 = vmul.f32 %v1317, %v1025
      %s1322 = scalar_lea.vmem [#allocation1], 1
      %1323 = vst [vmem:[%s1322] ss:$2 sm:$0xff] %v1318
      %s1324 = scalar_lea.vmem [#allocation1], 17
      %1325 = vst [vmem:[%s1324] ss:$2 sm:$0xff] %v1319
      %v1326 = vld.sshfl [vmem:[#allocation1] sm:$0xff pattern:$0x75316420]
      %v1327 = vld.sshfl [vmem:[#allocation1 + $0x8] sm:$0xff pattern:$0x75316420]
      %v1328 = vld.sshfl [vmem:[#allocation1 + $0x10] sm:$0xff pattern:$0x75316420]
      %1329 = vrot.lane.b32.xlu0 %v1326, 127
      %v1330 = vpop.permute.xlu0 %1329
      %1331 = vrot.lane.b32.xlu0 %v1327, 127
      %v1332 = vpop.permute.xlu0 %1331
      %1333 = vrot.lane.b32.xlu0 %v1328, 127
      %v1334 = vpop.permute.xlu0 %1333
      %v1335 = vsel %vm984, %v1330, %v1332
      %v1336 = vsel %vm984, %v1332, %v1334
      %1339 = vst [vmem:[#allocation3 + $0x20] sm:$0xf0] %v1335
      %1340 = vst [vmem:[#allocation3 + $0x28] sm:$0xf0] %v1336
      %v1341 = vld [vmem:[#allocation2 + $0x4] sm:$0xff]
      %v1342 = vld [vmem:[#allocation2 + $0xc] sm:$0xf]
      %v1343 = vmul.f32 %v1341, %v1057
      %v1344 = vmul.f32 %v1342, %v1056
      %1347 = vst [vmem:[#allocation1] ss:$2 sm:$0xff] %v1343
      %s1348 = scalar_lea.vmem [#allocation1], 16
      %1349 = vst [vmem:[%s1348] ss:$2 sm:$0xff] %v1344
      %v1350 = vld.sshfl [vmem:[#allocation1] sm:$0xff pattern:$0x75316420]
      %v1351 = vld.sshfl [vmem:[#allocation1 + $0x8] sm:$0xff pattern:$0x75316420]
      %v1352 = vld.sshfl [vmem:[#allocation1 + $0x10] sm:$0xff pattern:$0x75316420]
      %1353 = vrot.lane.b32.xlu0 %v1350, 113
      %v1354 = vpop.permute.xlu0 %1353
      %1355 = vrot.lane.b32.xlu0 %v1351, 113
      %v1356 = vpop.permute.xlu0 %1355
      %1357 = vrot.lane.b32.xlu0 %v1352, 113
      %v1358 = vpop.permute.xlu0 %1357
      %v1359 = vsel %vm952, %v1354, %v1356
      %v1360 = vsel %vm952, %v1356, %v1358
      %1363 = vst [vmem:[#allocation3 + $0x30] sm:$0xf] %v1359
      %1364 = vst [vmem:[#allocation3 + $0x38] sm:$0xf] %v1360
      %v1365 = vld [vmem:[#allocation2 + $0x4] sm:$0xff]
      %v1366 = vld [vmem:[#allocation2 + $0xc] sm:$0xf]
      %s1369 = scalar_lea.vmem [#allocation1], 1
      %1370 = vst [vmem:[%s1369] ss:$2 sm:$0xff] %v1365
      %s1371 = scalar_lea.vmem [#allocation1], 17
      %1372 = vst [vmem:[%s1371] ss:$2 sm:$0xff] %v1366
      %v1373 = vld.sshfl [vmem:[#allocation1] sm:$0xff pattern:$0x75316420]
      %v1374 = vld.sshfl [vmem:[#allocation1 + $0x8] sm:$0xff pattern:$0x75316420]
      %v1375 = vld.sshfl [vmem:[#allocation1 + $0x10] sm:$0xff pattern:$0x75316420]
      %1376 = vrot.lane.b32.xlu0 %v1373, 112
      %v1377 = vpop.permute.xlu0 %1376
      %1378 = vrot.lane.b32.xlu0 %v1374, 112
      %v1379 = vpop.permute.xlu0 %1378
      %1380 = vrot.lane.b32.xlu0 %v1375, 112
      %v1381 = vpop.permute.xlu0 %1380
      %v1382 = vsel %vm1099, %v1377, %v1379
      %v1383 = vsel %vm1099, %v1379, %v1381
      %1386 = vst [vmem:[#allocation3 + $0x30] sm:$0xf0] %v1382
      %1387 = vst [vmem:[#allocation3 + $0x38] sm:$0xf0] %v1383
      %v1388 = vld [vmem:[#allocation2 + $0x4] sm:$0xff]
      %v1389 = vld [vmem:[#allocation2 + $0xc] sm:$0xf]
      %v1390 = vmul.f32 %v1388, %v1111
      %v1391 = vmul.f32 %v1389, %v1110
      %1394 = vst [vmem:[#allocation1] ss:$2 sm:$0xff] %v1390
      %s1395 = scalar_lea.vmem [#allocation1], 16
      %1396 = vst [vmem:[%s1395] ss:$2 sm:$0xff] %v1391
      %v1397 = vld.sshfl [vmem:[#allocation1] sm:$0xff pattern:$0x75316420]
      %v1398 = vld.sshfl [vmem:[#allocation1 + $0x8] sm:$0xff pattern:$0x75316420]
      %v1399 = vld.sshfl [vmem:[#allocation1 + $0x10] sm:$0xff pattern:$0x75316420]
      %1400 = vrot.lane.b32.xlu0 %v1397, 111
      %v1401 = vpop.permute.xlu0 %1400
      %1402 = vrot.lane.b32.xlu0 %v1398, 111
      %v1403 = vpop.permute.xlu0 %1402
      %1404 = vrot.lane.b32.xlu0 %v1399, 111
      %v1405 = vpop.permute.xlu0 %1404
      %v1406 = vsel %vm891, %v1401, %v1403
      %v1407 = vsel %vm891, %v1403, %v1405
      %1410 = vst [vmem:[#allocation3 + $0x40] sm:$0xf] %v1406
      %1411 = vst [vmem:[#allocation3 + $0x48] sm:$0xf] %v1407
      %v1412 = vld [vmem:[#allocation3] sm:$0xff]
      %v1413 = vld [vmem:[#allocation3 + $0x8] sm:$0xff]
      %v1414 = vld [vmem:[#allocation3 + $0x10] sm:$0xff]
      %v1415 = vld [vmem:[#allocation3 + $0x18] sm:$0xff]
      %v1416 = vld [vmem:[#allocation3 + $0x20] sm:$0xff]
      %v1417 = vld [vmem:[#allocation3 + $0x28] sm:$0xff]
      %v1418 = vld [vmem:[#allocation3 + $0x30] sm:$0xff]
      %v1419 = vld [vmem:[#allocation3 + $0x38] sm:$0xff]
      %v1420 = vld [vmem:[#allocation3 + $0x40] sm:$0xf]
      %v1421 = vld [vmem:[#allocation3 + $0x48] sm:$0xf]
      %1423 = vset.pattern.permute.xlu0 0
      %1424 = vperm.xlu0 %1423, %v1204
      %v1425 = vpop.permute.xlu0 %1424
      %v1428 = vsel %vm1151, %v1203, 0
      %v1431 = vsel %vm869, %v1420, 0
      %v1434 = vsel %vm869, %v1421, 0
      %1436 = vmatpush.msra.mxu0 0.0
      %1437 = vmatpush.msra.mxu0 0.0
      %1438 = vmatpush.msra.mxu0 0.0
      %1439 = vmatpush.msra.mxu0 0.0
      %1440 = vmatpush.msra.mxu0 0.0
      %1441 = vmatpush.msra.mxu0 0.0
      %1442 = vmatpush.msra.mxu0 0.0
      %1443 = vmatpush.msra.mxu0 0.0
      %1444 = vmatpush.msra.mxu0 0.0
      %1445 = vmatpush.msra.mxu0 0.0
      %1446 = vmatpush.msra.mxu0 0.0
      %1447 = vmatpush.msra.mxu0 %v1431
      %1448 = vmatpush.msra.mxu0 %v1418
      %1449 = vmatpush.msra.mxu0 %v1416
      %1450 = vmatpush.msra.mxu0 %v1414
      %1451 = vmatpush.msra.mxu0 %v1412
      %1452 = vmatmul.f32.gmra.mxu0 %v1428
      %v1453 = vpop.f32.mrf.mxu0
      %v1454 = vadd.f32 %v1425, %v1453
      %1455 = vdwg.mxu0
      %1456 = vmatpush.msra.mxu0 0.0
      %1457 = vmatpush.msra.mxu0 0.0
      %1458 = vmatpush.msra.mxu0 0.0
      %1459 = vmatpush.msra.mxu0 0.0
      %1460 = vmatpush.msra.mxu0 0.0
      %1461 = vmatpush.msra.mxu0 0.0
      %1462 = vmatpush.msra.mxu0 0.0
      %1463 = vmatpush.msra.mxu0 0.0
      %1464 = vmatpush.msra.mxu0 0.0
      %1465 = vmatpush.msra.mxu0 0.0
      %1466 = vmatpush.msra.mxu0 0.0
      %1467 = vmatpush.msra.mxu0 %v1434
      %1468 = vmatpush.msra.mxu0 %v1419
      %1469 = vmatpush.msra.mxu0 %v1417
      %1470 = vmatpush.msra.mxu0 %v1415
      %1471 = vmatpush.msra.mxu0 %v1413
      %1472 = vmatmul.f32.gmra.mxu0 %v1428
      %v1473 = vpop.f32.mrf.mxu0
      %v1474 = vadd.f32 %v1425, %v1473
      %1475 = vdwg.mxu0
      %1477 = vst [vmem:[#allocation1] ss:$2 sm:$0xff] %v875
      %v1478 = vld.sshfl [vmem:[#allocation1] sm:$0xff pattern:$0x75316420]
      %v1479 = vld.sshfl [vmem:[#allocation1 + $0x8] sm:$0xff pattern:$0x75316420]
      %v1482 = vadd.f32 %v1454, %v1478
      %v1483 = vadd.f32 %v1474, %v1479
      %v1486 = vrot.slane %v1483, 4
      %v1487 = vsel %vm869, %v1482, %v1486
      %1489 = vst [vmem:[%s862] sm:$0xff] %v1487
      %v1490 = vld [vmem:[%s11] sm:$0xf]
      %v1491 = vld [vmem:[%s12] sm:$0xf]
      %1493 = vset.pattern.permute.xlu0 0
      %1494 = vperm.xlu0 %1493, %v1491
      %v1495 = vpop.permute.xlu0 %1494
      %vm1497 = vcmask 31744
      %v1499 = vsel %vm1497, %v1490, 0
      %v1501 = vsel %vm869, %v1482, 0
      %v1503 = vsel %vm869, %v1483, 0
      %1505 = vmatpush.msra.mxu0 0.0
      %1506 = vmatpush.msra.mxu0 0.0
      %1507 = vmatpush.msra.mxu0 0.0
      %1508 = vmatpush.msra.mxu0 0.0
      %1509 = vmatpush.msra.mxu0 0.0
      %1510 = vmatpush.msra.mxu0 0.0
      %1511 = vmatpush.msra.mxu0 0.0
      %1512 = vmatpush.msra.mxu0 0.0
      %1513 = vmatpush.msra.mxu0 0.0
      %1514 = vmatpush.msra.mxu0 0.0
      %1515 = vmatpush.msra.mxu0 0.0
      %1516 = vmatpush.msra.mxu0 0.0
      %1517 = vmatpush.msra.mxu0 0.0
      %1518 = vmatpush.msra.mxu0 0.0
      %1519 = vmatpush.msra.mxu0 0.0
      %1520 = vmatpush.msra.mxu0 %v1501
      %1521 = vmatmul.f32.gmra.mxu0 %v1499
      %v1522 = vpop.f32.mrf.mxu0
      %v1523 = vadd.f32 %v1495, %v1522
      %1524 = vdwg.mxu0
      %1525 = vmatpush.msra.mxu0 0.0
      %1526 = vmatpush.msra.mxu0 0.0
      %1527 = vmatpush.msra.mxu0 0.0
      %1528 = vmatpush.msra.mxu0 0.0
      %1529 = vmatpush.msra.mxu0 0.0
      %1530 = vmatpush.msra.mxu0 0.0
      %1531 = vmatpush.msra.mxu0 0.0
      %1532 = vmatpush.msra.mxu0 0.0
      %1533 = vmatpush.msra.mxu0 0.0
      %1534 = vmatpush.msra.mxu0 0.0
      %1535 = vmatpush.msra.mxu0 0.0
      %1536 = vmatpush.msra.mxu0 0.0
      %1537 = vmatpush.msra.mxu0 0.0
      %1538 = vmatpush.msra.mxu0 0.0
      %1539 = vmatpush.msra.mxu0 0.0
      %1540 = vmatpush.msra.mxu0 %v1503
      %1541 = vmatmul.f32.gmra.mxu0 %v1499
      %v1542 = vpop.f32.mrf.mxu0
      %v1543 = vadd.f32 %v1495, %v1542
      %1544 = vdwg.mxu0
      %v1545 = vld [vmem:[%s1] sm:$0xff]
      %v1546 = vld [vmem:[%s1 + $0x8] sm:$0xff]
      %v1547 = vld [vmem:[%s1 + $0x10] sm:$0xff]
      %v1548 = vld [vmem:[%s1 + $0x18] sm:$0xff]
      %v1549 = vld [vmem:[%s1 + $0x20] sm:$0xff]
      %v1550 = vld [vmem:[%s1 + $0x28] sm:$0xff]
      %v1551 = vld [vmem:[%s1 + $0x30] sm:$0xff]
      %v1552 = vld [vmem:[%s1 + $0x38] sm:$0xff]
      %v1553 = vld [vmem:[%s1 + $0x40] sm:$0xff]
      %v1554 = vld [vmem:[%s1 + $0x48] sm:$0xff]
      %v1555 = vld [vmem:[%s1 + $0x50] sm:$0xff]
      %v1556 = vld [vmem:[%s1 + $0x58] sm:$0xff]
      %v1557 = vld [vmem:[%s1 + $0x60] sm:$0xff]
      %v1558 = vld [vmem:[%s1 + $0x68] sm:$0xff]
      %v1559 = vld [vmem:[%s1 + $0x70] sm:$0xff]
      %v1560 = vld [vmem:[%s1 + $0x78] sm:$0xff]
      %v1561 = vld [vmem:[%s1 + $0x80] sm:$0xff]
      %v1562 = vld [vmem:[%s1 + $0x88] sm:$0xff]
      %v1563 = vld [vmem:[%s1 + $0x90] sm:$0xff]
      %v1564 = vld [vmem:[%s1 + $0x98] sm:$0xff]
      %v1565 = vld [vmem:[%s1 + $0xa0] sm:$0xff]
      %v1566 = vld [vmem:[%s1 + $0xa8] sm:$0xff]
      %v1567 = vld [vmem:[%s1 + $0xb0] sm:$0xff]
      %v1568 = vld [vmem:[%s1 + $0xb8] sm:$0xff]
      %v1569 = vld [vmem:[%s1 + $0xc0] sm:$0xff]
      %v1570 = vld [vmem:[%s1 + $0xc8] sm:$0xff]
      %v1571 = vld [vmem:[%s1 + $0xd0] sm:$0xff]
      %v1572 = vld [vmem:[%s1 + $0xd8] sm:$0xff]
      %v1573 = vld [vmem:[%s1 + $0xe0] sm:$0xff]
      %v1574 = vld [vmem:[%s1 + $0xe8] sm:$0xff]
      %v1575 = vld [vmem:[%s1 + $0xf0] sm:$0xff]
      %v1576 = vld [vmem:[%s1 + $0xf8] sm:$0xff]
      %1577 = vmatpush.msra.mxu0 %v1560
      %1578 = vmatpush.msra.mxu0 %v1559
      %1579 = vmatpush.msra.mxu0 %v1558
      %1580 = vmatpush.msra.mxu0 %v1557
      %1581 = vmatpush.msra.mxu0 %v1556
      %1582 = vmatpush.msra.mxu0 %v1555
      %1583 = vmatpush.msra.mxu0 %v1554
      %1584 = vmatpush.msra.mxu0 %v1553
      %1585 = vmatpush.msra.mxu0 %v1552
      %1586 = vmatpush.msra.mxu0 %v1551
      %1587 = vmatpush.msra.mxu0 %v1550
      %1588 = vmatpush.msra.mxu0 %v1549
      %1589 = vmatpush.msra.mxu0 %v1548
      %1590 = vmatpush.msra.mxu0 %v1547
      %1591 = vmatpush.msra.mxu0 %v1546
      %1592 = vmatpush.msra.mxu0 %v1545
      %1593 = vmatmul.f32.gmra.mxu0 %v1523
      %v1594 = vpop.f32.mrf.mxu0
      %v1595 = vadd.f32 0.0, %v1594
      %1596 = vdwg.mxu0
      %1597 = vmatpush.msra.mxu0 %v1576
      %1598 = vmatpush.msra.mxu0 %v1575
      %1599 = vmatpush.msra.mxu0 %v1574
      %1600 = vmatpush.msra.mxu0 %v1573
      %1601 = vmatpush.msra.mxu0 %v1572
      %1602 = vmatpush.msra.mxu0 %v1571
      %1603 = vmatpush.msra.mxu0 %v1570
      %1604 = vmatpush.msra.mxu0 %v1569
      %1605 = vmatpush.msra.mxu0 %v1568
      %1606 = vmatpush.msra.mxu0 %v1567
      %1607 = vmatpush.msra.mxu0 %v1566
      %1608 = vmatpush.msra.mxu0 %v1565
      %1609 = vmatpush.msra.mxu0 %v1564
      %1610 = vmatpush.msra.mxu0 %v1563
      %1611 = vmatpush.msra.mxu0 %v1562
      %1612 = vmatpush.msra.mxu0 %v1561
      %1613 = vmatmul.f32.gmra.mxu0 %v1543
      %v1614 = vpop.f32.mrf.mxu0
      %v1615 = vadd.f32 %v1595, %v1614
      %1616 = vdwg.mxu0
      %v1617 = vld [vmem:[%s2] sm:$0xff]
      %v1618 = vld [vmem:[%s2 + $0x8] sm:$0xff]
      %v1619 = vld [vmem:[%s2 + $0x10] sm:$0xff]
      %v1620 = vld [vmem:[%s2 + $0x18] sm:$0xff]
      %v1621 = vld [vmem:[%s2 + $0x20] sm:$0xff]
      %v1622 = vld [vmem:[%s2 + $0x28] sm:$0xff]
      %v1623 = vld [vmem:[%s2 + $0x30] sm:$0xff]
      %v1624 = vld [vmem:[%s2 + $0x38] sm:$0xff]
      %v1625 = vld [vmem:[%s2 + $0x40] sm:$0xff]
      %v1626 = vld [vmem:[%s2 + $0x48] sm:$0xff]
      %v1627 = vld [vmem:[%s2 + $0x50] sm:$0xff]
      %v1628 = vld [vmem:[%s2 + $0x58] sm:$0xff]
      %v1629 = vld [vmem:[%s2 + $0x60] sm:$0xff]
      %v1630 = vld [vmem:[%s2 + $0x68] sm:$0xff]
      %v1631 = vld [vmem:[%s2 + $0x70] sm:$0xff]
      %v1632 = vld [vmem:[%s2 + $0x78] sm:$0xff]
      %v1633 = vld [vmem:[%s2 + $0x80] sm:$0xff]
      %v1634 = vld [vmem:[%s2 + $0x88] sm:$0xff]
      %v1635 = vld [vmem:[%s2 + $0x90] sm:$0xff]
      %v1636 = vld [vmem:[%s2 + $0x98] sm:$0xff]
      %v1637 = vld [vmem:[%s2 + $0xa0] sm:$0xff]
      %v1638 = vld [vmem:[%s2 + $0xa8] sm:$0xff]
      %v1639 = vld [vmem:[%s2 + $0xb0] sm:$0xff]
      %v1640 = vld [vmem:[%s2 + $0xb8] sm:$0xff]
      %v1641 = vld [vmem:[%s2 + $0xc0] sm:$0xff]
      %v1642 = vld [vmem:[%s2 + $0xc8] sm:$0xff]
      %v1643 = vld [vmem:[%s2 + $0xd0] sm:$0xff]
      %v1644 = vld [vmem:[%s2 + $0xd8] sm:$0xff]
      %v1645 = vld [vmem:[%s2 + $0xe0] sm:$0xff]
      %v1646 = vld [vmem:[%s2 + $0xe8] sm:$0xff]
      %v1647 = vld [vmem:[%s2 + $0xf0] sm:$0xff]
      %v1648 = vld [vmem:[%s2 + $0xf8] sm:$0xff]
      %1649 = vmatpush.msra.mxu0 %v1632
      %1650 = vmatpush.msra.mxu0 %v1631
      %1651 = vmatpush.msra.mxu0 %v1630
      %1652 = vmatpush.msra.mxu0 %v1629
      %1653 = vmatpush.msra.mxu0 %v1628
      %1654 = vmatpush.msra.mxu0 %v1627
      %1655 = vmatpush.msra.mxu0 %v1626
      %1656 = vmatpush.msra.mxu0 %v1625
      %1657 = vmatpush.msra.mxu0 %v1624
      %1658 = vmatpush.msra.mxu0 %v1623
      %1659 = vmatpush.msra.mxu0 %v1622
      %1660 = vmatpush.msra.mxu0 %v1621
      %1661 = vmatpush.msra.mxu0 %v1620
      %1662 = vmatpush.msra.mxu0 %v1619
      %1663 = vmatpush.msra.mxu0 %v1618
      %1664 = vmatpush.msra.mxu0 %v1617
      %1665 = vmatmul.f32.gmra.mxu0 %v1523
      %v1666 = vpop.f32.mrf.mxu0
      %v1667 = vadd.f32 0.0, %v1666
      %1668 = vdwg.mxu0
      %1669 = vmatpush.msra.mxu0 %v1648
      %1670 = vmatpush.msra.mxu0 %v1647
      %1671 = vmatpush.msra.mxu0 %v1646
      %1672 = vmatpush.msra.mxu0 %v1645
      %1673 = vmatpush.msra.mxu0 %v1644
      %1674 = vmatpush.msra.mxu0 %v1643
      %1675 = vmatpush.msra.mxu0 %v1642
      %1676 = vmatpush.msra.mxu0 %v1641
      %1677 = vmatpush.msra.mxu0 %v1640
      %1678 = vmatpush.msra.mxu0 %v1639
      %1679 = vmatpush.msra.mxu0 %v1638
      %1680 = vmatpush.msra.mxu0 %v1637
      %1681 = vmatpush.msra.mxu0 %v1636
      %1682 = vmatpush.msra.mxu0 %v1635
      %1683 = vmatpush.msra.mxu0 %v1634
      %1684 = vmatpush.msra.mxu0 %v1633
      %1685 = vmatmul.f32.gmra.mxu0 %v1543
      %v1686 = vpop.f32.mrf.mxu0
      %v1687 = vadd.f32 %v1667, %v1686
      %1688 = vdwg.mxu0
      %v1689 = vld [vmem:[%s13] sm:$0xf]
      %vm1690 = vcmask 125952
      %1691 = vst.msk [vmem:[#allocation4 + $0x4] sm:$0xf] %vm1690, %v1615
      %v1692 = vld [vmem:[#allocation4] sm:$0xff]
      %1694 = vst [vmem:[#allocation1] ss:$2 sm:$0xff] %v1692
      %v1695 = vld.sshfl [vmem:[#allocation1] sm:$0xff pattern:$0x75316420]
      %v1696 = vld.sshfl [vmem:[#allocation1 + $0x8] sm:$0xff pattern:$0x75316420]
      %1697 = vrot.lane.b32.xlu0 %v1695, 1
      %v1698 = vpop.permute.xlu0 %1697
      %1699 = vrot.lane.b32.xlu0 %v1696, 1
      %v1700 = vpop.permute.xlu0 %1699
      %v1701 = vsel %vm1005, %v1698, %v1700
      %1703 = vst.msk [vmem:[#allocation5] sm:$0xf] %vm1690, %v1701
      %v1704 = vld [vmem:[#allocation4 + $0x4] sm:$0xf]
      %1705 = vst.msk [vmem:[#allocation5 + $0x4] sm:$0xf] %vm1690, %v1704
      %v1706 = vld [vmem:[#allocation4 + $0x4] sm:$0xf]
      %1708 = vst [vmem:[#allocation1] ss:$2 sm:$0xff] %v1706
      %v1709 = vld.sshfl [vmem:[#allocation1] sm:$0xff pattern:$0x75316420]
      %1710 = vrot.lane.b32.xlu0 %v1709, 127
      %v1711 = vpop.permute.xlu0 %1710
      %1713 = vst.msk [vmem:[#allocation5 + $0x8] sm:$0xf] %vm1690, %v1711
      %v1714 = vld [vmem:[#allocation5] sm:$0xff]
      %v1715 = vld [vmem:[#allocation5 + $0x8] sm:$0xf]
      %vm1716 = vcmask 97280
      %v1718 = vsel %vm1716, %v1689, 0
      %v1721 = vsel %vm869, %v1715, 0
      %1723 = vmatpush.msra.mxu0 0.0
      %1724 = vmatpush.msra.mxu0 0.0
      %1725 = vmatpush.msra.mxu0 0.0
      %1726 = vmatpush.msra.mxu0 0.0
      %1727 = vmatpush.msra.mxu0 0.0
      %1728 = vmatpush.msra.mxu0 0.0
      %1729 = vmatpush.msra.mxu0 0.0
      %1730 = vmatpush.msra.mxu0 0.0
      %1731 = vmatpush.msra.mxu0 0.0
      %1732 = vmatpush.msra.mxu0 0.0
      %1733 = vmatpush.msra.mxu0 0.0
      %1734 = vmatpush.msra.mxu0 0.0
      %1735 = vmatpush.msra.mxu0 0.0
      %1736 = vmatpush.msra.mxu0 0.0
      %1737 = vmatpush.msra.mxu0 %v1721
      %1738 = vmatpush.msra.mxu0 %v1714
      %1739 = vmatmul.f32.gmra.mxu0 %v1718
      %v1740 = vpop.f32.mrf.mxu0
      %v1741 = vadd.f32 0.0, %v1740
      %1742 = vdwg.mxu0
      %v1743 = vld [vmem:[%s14] sm:$0xf]
      %1744 = vst.msk [vmem:[#allocation6 + $0x4] sm:$0xf] %vm1690, %v1687
      %v1745 = vld [vmem:[#allocation6] sm:$0xff]
      %1747 = vst [vmem:[#allocation1] ss:$2 sm:$0xff] %v1745
      %v1748 = vld.sshfl [vmem:[#allocation1] sm:$0xff pattern:$0x75316420]
      %v1749 = vld.sshfl [vmem:[#allocation1 + $0x8] sm:$0xff pattern:$0x75316420]
      %1750 = vrot.lane.b32.xlu0 %v1748, 1
      %v1751 = vpop.permute.xlu0 %1750
      %1752 = vrot.lane.b32.xlu0 %v1749, 1
      %v1753 = vpop.permute.xlu0 %1752
      %v1754 = vsel %vm1005, %v1751, %v1753
      %1756 = vst.msk [vmem:[#allocation7] sm:$0xf] %vm1690, %v1754
      %v1757 = vld [vmem:[#allocation6 + $0x4] sm:$0xf]
      %1758 = vst.msk [vmem:[#allocation7 + $0x4] sm:$0xf] %vm1690, %v1757
      %v1759 = vld [vmem:[#allocation6 + $0x4] sm:$0xf]
      %1761 = vst [vmem:[#allocation1] ss:$2 sm:$0xff] %v1759
      %v1762 = vld.sshfl [vmem:[#allocation1] sm:$0xff pattern:$0x75316420]
      %1763 = vrot.lane.b32.xlu0 %v1762, 127
      %v1764 = vpop.permute.xlu0 %1763
      %1766 = vst.msk [vmem:[#allocation7 + $0x8] sm:$0xf] %vm1690, %v1764
      %v1767 = vld [vmem:[#allocation7] sm:$0xff]
      %v1768 = vld [vmem:[#allocation7 + $0x8] sm:$0xf]
      %v1770 = vsel %vm1716, %v1743, 0
      %v1773 = vsel %vm869, %v1768, 0
      %1775 = vmatpush.msra.mxu0 0.0
      %1776 = vmatpush.msra.mxu0 0.0
      %1777 = vmatpush.msra.mxu0 0.0
      %1778 = vmatpush.msra.mxu0 0.0
      %1779 = vmatpush.msra.mxu0 0.0
      %1780 = vmatpush.msra.mxu0 0.0
      %1781 = vmatpush.msra.mxu0 0.0
      %1782 = vmatpush.msra.mxu0 0.0
      %1783 = vmatpush.msra.mxu0 0.0
      %1784 = vmatpush.msra.mxu0 0.0
      %1785 = vmatpush.msra.mxu0 0.0
      %1786 = vmatpush.msra.mxu0 0.0
      %1787 = vmatpush.msra.mxu0 0.0
      %1788 = vmatpush.msra.mxu0 0.0
      %1789 = vmatpush.msra.mxu0 %v1773
      %1790 = vmatpush.msra.mxu0 %v1767
      %1791 = vmatmul.f32.gmra.mxu0 %v1770
      %v1792 = vpop.f32.mrf.mxu0
      %v1793 = vadd.f32 0.0, %v1792
      %1794 = vdwg.mxu0
      %v1795 = vld [vmem:[%s3] sm:$0xff]
      %v1796 = vld [vmem:[%s3 + $0x8] sm:$0xff]
      %v1797 = vld [vmem:[%s3 + $0x10] sm:$0xff]
      %v1798 = vld [vmem:[%s3 + $0x18] sm:$0xff]
      %v1800 = vsel %vm935, %v1741, 0
      %1802 = vmatpush.msra.mxu0 0.0
      %1803 = vmatpush.msra.mxu0 0.0
      %1804 = vmatpush.msra.mxu0 0.0
      %1805 = vmatpush.msra.mxu0 0.0
      %1806 = vmatpush.msra.mxu0 0.0
      %1807 = vmatpush.msra.mxu0 0.0
      %1808 = vmatpush.msra.mxu0 0.0
      %1809 = vmatpush.msra.mxu0 0.0
      %1810 = vmatpush.msra.mxu0 0.0
      %1811 = vmatpush.msra.mxu0 0.0
      %1812 = vmatpush.msra.mxu0 0.0
      %1813 = vmatpush.msra.mxu0 0.0
      %1814 = vmatpush.msra.mxu0 0.0
      %1815 = vmatpush.msra.mxu0 0.0
      %1816 = vmatpush.msra.mxu0 %v1797
      %1817 = vmatpush.msra.mxu0 %v1795
      %1818 = vmatmul.f32.gmra.mxu0 %v1800
      %v1819 = vpop.f32.mrf.mxu0
      %v1820 = vadd.f32 0.0, %v1819
      %1821 = vdwg.mxu0
      %1822 = vmatpush.msra.mxu0 0.0
      %1823 = vmatpush.msra.mxu0 0.0
      %1824 = vmatpush.msra.mxu0 0.0
      %1825 = vmatpush.msra.mxu0 0.0
      %1826 = vmatpush.msra.mxu0 0.0
      %1827 = vmatpush.msra.mxu0 0.0
      %1828 = vmatpush.msra.mxu0 0.0
      %1829 = vmatpush.msra.mxu0 0.0
      %1830 = vmatpush.msra.mxu0 0.0
      %1831 = vmatpush.msra.mxu0 0.0
      %1832 = vmatpush.msra.mxu0 0.0
      %1833 = vmatpush.msra.mxu0 0.0
      %1834 = vmatpush.msra.mxu0 0.0
      %1835 = vmatpush.msra.mxu0 0.0
      %1836 = vmatpush.msra.mxu0 %v1798
      %1837 = vmatpush.msra.mxu0 %v1796
      %1838 = vmatmul.f32.gmra.mxu0 %v1800
      %v1839 = vpop.f32.mrf.mxu0
      %v1840 = vadd.f32 0.0, %v1839
      %1841 = vdwg.mxu0
      %v1842 = vld [vmem:[%s4] sm:$0xff]
      %v1843 = vld [vmem:[%s4 + $0x8] sm:$0xff]
      %v1844 = vld [vmem:[%s4 + $0x10] sm:$0xff]
      %v1845 = vld [vmem:[%s4 + $0x18] sm:$0xff]
      %v1847 = vsel %vm935, %v1793, 0
      %1849 = vmatpush.msra.mxu0 0.0
      %1850 = vmatpush.msra.mxu0 0.0
      %1851 = vmatpush.msra.mxu0 0.0
      %1852 = vmatpush.msra.mxu0 0.0
      %1853 = vmatpush.msra.mxu0 0.0
      %1854 = vmatpush.msra.mxu0 0.0
      %1855 = vmatpush.msra.mxu0 0.0
      %1856 = vmatpush.msra.mxu0 0.0
      %1857 = vmatpush.msra.mxu0 0.0
      %1858 = vmatpush.msra.mxu0 0.0
      %1859 = vmatpush.msra.mxu0 0.0
      %1860 = vmatpush.msra.mxu0 0.0
      %1861 = vmatpush.msra.mxu0 0.0
      %1862 = vmatpush.msra.mxu0 0.0
      %1863 = vmatpush.msra.mxu0 %v1844
      %1864 = vmatpush.msra.mxu0 %v1842
      %1865 = vmatmul.f32.gmra.mxu0 %v1847
      %v1866 = vpop.f32.mrf.mxu0
      %v1867 = vadd.f32 0.0, %v1866
      %1868 = vdwg.mxu0
      %1869 = vmatpush.msra.mxu0 0.0
      %1870 = vmatpush.msra.mxu0 0.0
      %1871 = vmatpush.msra.mxu0 0.0
      %1872 = vmatpush.msra.mxu0 0.0
      %1873 = vmatpush.msra.mxu0 0.0
      %1874 = vmatpush.msra.mxu0 0.0
      %1875 = vmatpush.msra.mxu0 0.0
      %1876 = vmatpush.msra.mxu0 0.0
      %1877 = vmatpush.msra.mxu0 0.0
      %1878 = vmatpush.msra.mxu0 0.0
      %1879 = vmatpush.msra.mxu0 0.0
      %1880 = vmatpush.msra.mxu0 0.0
      %1881 = vmatpush.msra.mxu0 0.0
      %1882 = vmatpush.msra.mxu0 0.0
      %1883 = vmatpush.msra.mxu0 %v1845
      %1884 = vmatpush.msra.mxu0 %v1843
      %1885 = vmatmul.f32.gmra.mxu0 %v1847
      %v1886 = vpop.f32.mrf.mxu0
      %v1887 = vadd.f32 0.0, %v1886
      %1888 = vdwg.mxu0
      %v1889 = vadd.f32 %v1523, %v1820
      %v1890 = vadd.f32 %v1543, %v1840
      %v1891 = vadd.f32 %v1889, %v1867
      %v1892 = vadd.f32 %v1890, %v1887
      %vm1893 = vcmp.gt.f32.partialorder %v1891, 0.0
      %vm1894 = vcmp.gt.f32.partialorder %v1892, 0.0
      %v1895 = vmul.f32 %v1891, 0.2
      %v1896 = vmul.f32 %v1892, 0.2
      %v1897 = vsel %vm1893, %v1891, %v1895
      %v1898 = vsel %vm1894, %v1892, %v1896
      %v1899 = vld [vmem:[%s15] sm:$0xf]
      %v1900 = vld [vmem:[%s16] sm:$0xf]
      %v1903 = vrot.slane %v1898, 4
      %v1904 = vsel %vm869, %v1897, %v1903
      %1906 = vst [vmem:[#allocation2 + $0x4] sm:$0xff] %v1904
      %v1907 = vld [vmem:[#allocation2] sm:$0xff]
      %v1908 = vld [vmem:[#allocation2 + $0x8] sm:$0xf]
      %v1909 = vmul.f32 %v1907, %v892
      %v1910 = vmul.f32 %v1908, %v890
      %1913 = vst [vmem:[#allocation1] ss:$2 sm:$0xff] %v1909
      %s1914 = scalar_lea.vmem [#allocation1], 16
      %1915 = vst [vmem:[%s1914] ss:$2 sm:$0xff] %v1910
      %v1916 = vld.sshfl [vmem:[#allocation1] sm:$0xff pattern:$0x75316420]
      %v1917 = vld.sshfl [vmem:[#allocation1 + $0x8] sm:$0xff pattern:$0x75316420]
      %v1918 = vld.sshfl [vmem:[#allocation1 + $0x10] sm:$0xff pattern:$0x75316420]
      %1919 = vrot.lane.b32.xlu0 %v1916, 17
      %v1920 = vpop.permute.xlu0 %1919
      %1921 = vrot.lane.b32.xlu0 %v1917, 17
      %v1922 = vpop.permute.xlu0 %1921
      %1923 = vrot.lane.b32.xlu0 %v1918, 17
      %v1924 = vpop.permute.xlu0 %1923
      %v1925 = vsel %vm911, %v1920, %v1922
      %v1926 = vsel %vm911, %v1922, %v1924
      %1929 = vst [vmem:[#allocation3] sm:$0xf] %v1925
      %1930 = vst [vmem:[#allocation3 + $0x8] sm:$0xf] %v1926
      %v1931 = vld [vmem:[#allocation2] sm:$0xff]
      %v1932 = vld [vmem:[#allocation2 + $0x8] sm:$0xf]
      %s1935 = scalar_lea.vmem [#allocation1], 1
      %1936 = vst [vmem:[%s1935] ss:$2 sm:$0xff] %v1931
      %s1937 = scalar_lea.vmem [#allocation1], 17
      %1938 = vst [vmem:[%s1937] ss:$2 sm:$0xff] %v1932
      %v1939 = vld.sshfl [vmem:[#allocation1] sm:$0xff pattern:$0x75316420]
      %v1940 = vld.sshfl [vmem:[#allocation1 + $0x8] sm:$0xff pattern:$0x75316420]
      %v1941 = vld.sshfl [vmem:[#allocation1 + $0x10] sm:$0xff pattern:$0x75316420]
      %1942 = vrot.lane.b32.xlu0 %v1939, 16
      %v1943 = vpop.permute.xlu0 %1942
      %1944 = vrot.lane.b32.xlu0 %v1940, 16
      %v1945 = vpop.permute.xlu0 %1944
      %1946 = vrot.lane.b32.xlu0 %v1941, 16
      %v1947 = vpop.permute.xlu0 %1946
      %v1948 = vsel %vm935, %v1943, %v1945
      %v1949 = vsel %vm935, %v1945, %v1947
      %1952 = vst [vmem:[#allocation3] sm:$0xf0] %v1948
      %1953 = vst [vmem:[#allocation3 + $0x8] sm:$0xf0] %v1949
      %v1954 = vld [vmem:[#allocation2] sm:$0xff]
      %v1955 = vld [vmem:[#allocation2 + $0x8] sm:$0xf]
      %v1956 = vmul.f32 %v1954, %v953
      %v1957 = vmul.f32 %v1955, %v951
      %1960 = vst [vmem:[#allocation1] ss:$2 sm:$0xff] %v1956
      %s1961 = scalar_lea.vmem [#allocation1], 16
      %1962 = vst [vmem:[%s1961] ss:$2 sm:$0xff] %v1957
      %v1963 = vld.sshfl [vmem:[#allocation1] sm:$0xff pattern:$0x75316420]
      %v1964 = vld.sshfl [vmem:[#allocation1 + $0x8] sm:$0xff pattern:$0x75316420]
      %v1965 = vld.sshfl [vmem:[#allocation1 + $0x10] sm:$0xff pattern:$0x75316420]
      %1966 = vrot.lane.b32.xlu0 %v1963, 15
      %v1967 = vpop.permute.xlu0 %1966
      %1968 = vrot.lane.b32.xlu0 %v1964, 15
      %v1969 = vpop.permute.xlu0 %1968
      %1970 = vrot.lane.b32.xlu0 %v1965, 15
      %v1971 = vpop.permute.xlu0 %1970
      %v1972 = vsel %vm972, %v1967, %v1969
      %v1973 = vsel %vm972, %v1969, %v1971
      %1976 = vst [vmem:[#allocation3 + $0x10] sm:$0xf] %v1972
      %1977 = vst [vmem:[#allocation3 + $0x18] sm:$0xf] %v1973
      %v1978 = vld [vmem:[#allocation2] sm:$0xff]
      %v1979 = vld [vmem:[#allocation2 + $0x8] sm:$0xf]
      %v1980 = vmul.f32 %v1978, %v985
      %v1981 = vmul.f32 %v1979, %v983
      %s1984 = scalar_lea.vmem [#allocation1], 1
      %1985 = vst [vmem:[%s1984] ss:$2 sm:$0xff] %v1980
      %s1986 = scalar_lea.vmem [#allocation1], 17
      %1987 = vst [vmem:[%s1986] ss:$2 sm:$0xff] %v1981
      %v1988 = vld.sshfl [vmem:[#allocation1] sm:$0xff pattern:$0x75316420]
      %v1989 = vld.sshfl [vmem:[#allocation1 + $0x8] sm:$0xff pattern:$0x75316420]
      %v1990 = vld.sshfl [vmem:[#allocation1 + $0x10] sm:$0xff pattern:$0x75316420]
      %1991 = vrot.lane.b32.xlu0 %v1988, 1
      %v1992 = vpop.permute.xlu0 %1991
      %1993 = vrot.lane.b32.xlu0 %v1989, 1
      %v1994 = vpop.permute.xlu0 %1993
      %1995 = vrot.lane.b32.xlu0 %v1990, 1
      %v1996 = vpop.permute.xlu0 %1995
      %v1997 = vsel %vm1005, %v1992, %v1994
      %v1998 = vsel %vm1005, %v1994, %v1996
      %2001 = vst [vmem:[#allocation3 + $0x10] sm:$0xf0] %v1997
      %2002 = vst [vmem:[#allocation3 + $0x18] sm:$0xf0] %v1998
      %v2003 = vld [vmem:[#allocation2 + $0x4] sm:$0xff]
      %2005 = vst [vmem:[#allocation1] ss:$2 sm:$0xff] %v2003
      %v2006 = vld.sshfl [vmem:[#allocation1] sm:$0xff pattern:$0x75316420]
      %v2007 = vld.sshfl [vmem:[#allocation1 + $0x8] sm:$0xff pattern:$0x75316420]
      %2010 = vst [vmem:[#allocation3 + $0x20] sm:$0xf] %v2006
      %2011 = vst [vmem:[#allocation3 + $0x28] sm:$0xf] %v2007
      %v2012 = vld [vmem:[#allocation2 + $0x4] sm:$0xff]
      %v2013 = vld [vmem:[#allocation2 + $0xc] sm:$0xf]
      %v2014 = vmul.f32 %v2012, %v1026
      %v2015 = vmul.f32 %v2013, %v1025
      %s2018 = scalar_lea.vmem [#allocation1], 1
      %2019 = vst [vmem:[%s2018] ss:$2 sm:$0xff] %v2014
      %s2020 = scalar_lea.vmem [#allocation1], 17
      %2021 = vst [vmem:[%s2020] ss:$2 sm:$0xff] %v2015
      %v2022 = vld.sshfl [vmem:[#allocation1] sm:$0xff pattern:$0x75316420]
      %v2023 = vld.sshfl [vmem:[#allocation1 + $0x8] sm:$0xff pattern:$0x75316420]
      %v2024 = vld.sshfl [vmem:[#allocation1 + $0x10] sm:$0xff pattern:$0x75316420]
      %2025 = vrot.lane.b32.xlu0 %v2022, 127
      %v2026 = vpop.permute.xlu0 %2025
      %2027 = vrot.lane.b32.xlu0 %v2023, 127
      %v2028 = vpop.permute.xlu0 %2027
      %2029 = vrot.lane.b32.xlu0 %v2024, 127
      %v2030 = vpop.permute.xlu0 %2029
      %v2031 = vsel %vm984, %v2026, %v2028
      %v2032 = vsel %vm984, %v2028, %v2030
      %2035 = vst [vmem:[#allocation3 + $0x20] sm:$0xf0] %v2031
      %2036 = vst [vmem:[#allocation3 + $0x28] sm:$0xf0] %v2032
      %v2037 = vld [vmem:[#allocation2 + $0x4] sm:$0xff]
      %v2038 = vld [vmem:[#allocation2 + $0xc] sm:$0xf]
      %v2039 = vmul.f32 %v2037, %v1057
      %v2040 = vmul.f32 %v2038, %v1056
      %2043 = vst [vmem:[#allocation1] ss:$2 sm:$0xff] %v2039
      %s2044 = scalar_lea.vmem [#allocation1], 16
      %2045 = vst [vmem:[%s2044] ss:$2 sm:$0xff] %v2040
      %v2046 = vld.sshfl [vmem:[#allocation1] sm:$0xff pattern:$0x75316420]
      %v2047 = vld.sshfl [vmem:[#allocation1 + $0x8] sm:$0xff pattern:$0x75316420]
      %v2048 = vld.sshfl [vmem:[#allocation1 + $0x10] sm:$0xff pattern:$0x75316420]
      %2049 = vrot.lane.b32.xlu0 %v2046, 113
      %v2050 = vpop.permute.xlu0 %2049
      %2051 = vrot.lane.b32.xlu0 %v2047, 113
      %v2052 = vpop.permute.xlu0 %2051
      %2053 = vrot.lane.b32.xlu0 %v2048, 113
      %v2054 = vpop.permute.xlu0 %2053
      %v2055 = vsel %vm952, %v2050, %v2052
      %v2056 = vsel %vm952, %v2052, %v2054
      %2059 = vst [vmem:[#allocation3 + $0x30] sm:$0xf] %v2055
      %2060 = vst [vmem:[#allocation3 + $0x38] sm:$0xf] %v2056
      %v2061 = vld [vmem:[#allocation2 + $0x4] sm:$0xff]
      %v2062 = vld [vmem:[#allocation2 + $0xc] sm:$0xf]
      %s2065 = scalar_lea.vmem [#allocation1], 1
      %2066 = vst [vmem:[%s2065] ss:$2 sm:$0xff] %v2061
      %s2067 = scalar_lea.vmem [#allocation1], 17
      %2068 = vst [vmem:[%s2067] ss:$2 sm:$0xff] %v2062
      %v2069 = vld.sshfl [vmem:[#allocation1] sm:$0xff pattern:$0x75316420]
      %v2070 = vld.sshfl [vmem:[#allocation1 + $0x8] sm:$0xff pattern:$0x75316420]
      %v2071 = vld.sshfl [vmem:[#allocation1 + $0x10] sm:$0xff pattern:$0x75316420]
      %2072 = vrot.lane.b32.xlu0 %v2069, 112
      %v2073 = vpop.permute.xlu0 %2072
      %2074 = vrot.lane.b32.xlu0 %v2070, 112
      %v2075 = vpop.permute.xlu0 %2074
      %2076 = vrot.lane.b32.xlu0 %v2071, 112
      %v2077 = vpop.permute.xlu0 %2076
      %v2078 = vsel %vm1099, %v2073, %v2075
      %v2079 = vsel %vm1099, %v2075, %v2077
      %2082 = vst [vmem:[#allocation3 + $0x30] sm:$0xf0] %v2078
      %2083 = vst [vmem:[#allocation3 + $0x38] sm:$0xf0] %v2079
      %v2084 = vld [vmem:[#allocation2 + $0x4] sm:$0xff]
      %v2085 = vld [vmem:[#allocation2 + $0xc] sm:$0xf]
      %v2086 = vmul.f32 %v2084, %v1111
      %v2087 = vmul.f32 %v2085, %v1110
      %2090 = vst [vmem:[#allocation1] ss:$2 sm:$0xff] %v2086
      %s2091 = scalar_lea.vmem [#allocation1], 16
      %2092 = vst [vmem:[%s2091] ss:$2 sm:$0xff] %v2087
      %v2093 = vld.sshfl [vmem:[#allocation1] sm:$0xff pattern:$0x75316420]
      %v2094 = vld.sshfl [vmem:[#allocation1 + $0x8] sm:$0xff pattern:$0x75316420]
      %v2095 = vld.sshfl [vmem:[#allocation1 + $0x10] sm:$0xff pattern:$0x75316420]
      %2096 = vrot.lane.b32.xlu0 %v2093, 111
      %v2097 = vpop.permute.xlu0 %2096
      %2098 = vrot.lane.b32.xlu0 %v2094, 111
      %v2099 = vpop.permute.xlu0 %2098
      %2100 = vrot.lane.b32.xlu0 %v2095, 111
      %v2101 = vpop.permute.xlu0 %2100
      %v2102 = vsel %vm891, %v2097, %v2099
      %v2103 = vsel %vm891, %v2099, %v2101
      %2106 = vst [vmem:[#allocation3 + $0x40] sm:$0xf] %v2102
      %2107 = vst [vmem:[#allocation3 + $0x48] sm:$0xf] %v2103
      %v2108 = vld [vmem:[#allocation3] sm:$0xff]
      %v2109 = vld [vmem:[#allocation3 + $0x8] sm:$0xff]
      %v2110 = vld [vmem:[#allocation3 + $0x10] sm:$0xff]
      %v2111 = vld [vmem:[#allocation3 + $0x18] sm:$0xff]
      %v2112 = vld [vmem:[#allocation3 + $0x20] sm:$0xff]
      %v2113 = vld [vmem:[#allocation3 + $0x28] sm:$0xff]
      %v2114 = vld [vmem:[#allocation3 + $0x30] sm:$0xff]
      %v2115 = vld [vmem:[#allocation3 + $0x38] sm:$0xff]
      %v2116 = vld [vmem:[#allocation3 + $0x40] sm:$0xf]
      %v2117 = vld [vmem:[#allocation3 + $0x48] sm:$0xf]
      %2119 = vset.pattern.permute.xlu0 0
      %2120 = vperm.xlu0 %2119, %v1900
      %v2121 = vpop.permute.xlu0 %2120
      %v2124 = vsel %vm1151, %v1899, 0
      %v2127 = vsel %vm869, %v2116, 0
      %v2130 = vsel %vm869, %v2117, 0
      %2132 = vmatpush.msra.mxu0 0.0
      %2133 = vmatpush.msra.mxu0 0.0
      %2134 = vmatpush.msra.mxu0 0.0
      %2135 = vmatpush.msra.mxu0 0.0
      %2136 = vmatpush.msra.mxu0 0.0
      %2137 = vmatpush.msra.mxu0 0.0
      %2138 = vmatpush.msra.mxu0 0.0
      %2139 = vmatpush.msra.mxu0 0.0
      %2140 = vmatpush.msra.mxu0 0.0
      %2141 = vmatpush.msra.mxu0 0.0
      %2142 = vmatpush.msra.mxu0 0.0
      %2143 = vmatpush.msra.mxu0 %v2127
      %2144 = vmatpush.msra.mxu0 %v2114
      %2145 = vmatpush.msra.mxu0 %v2112
      %2146 = vmatpush.msra.mxu0 %v2110
      %2147 = vmatpush.msra.mxu0 %v2108
      %2148 = vmatmul.f32.gmra.mxu0 %v2124
      %v2149 = vpop.f32.mrf.mxu0
      %v2150 = vadd.f32 %v2121, %v2149
      %2151 = vdwg.mxu0
      %2152 = vmatpush.msra.mxu0 0.0
      %2153 = vmatpush.msra.mxu0 0.0
      %2154 = vmatpush.msra.mxu0 0.0
      %2155 = vmatpush.msra.mxu0 0.0
      %2156 = vmatpush.msra.mxu0 0.0
      %2157 = vmatpush.msra.mxu0 0.0
      %2158 = vmatpush.msra.mxu0 0.0
      %2159 = vmatpush.msra.mxu0 0.0
      %2160 = vmatpush.msra.mxu0 0.0
      %2161 = vmatpush.msra.mxu0 0.0
      %2162 = vmatpush.msra.mxu0 0.0
      %2163 = vmatpush.msra.mxu0 %v2130
      %2164 = vmatpush.msra.mxu0 %v2115
      %2165 = vmatpush.msra.mxu0 %v2113
      %2166 = vmatpush.msra.mxu0 %v2111
      %2167 = vmatpush.msra.mxu0 %v2109
      %2168 = vmatmul.f32.gmra.mxu0 %v2124
      %v2169 = vpop.f32.mrf.mxu0
      %v2170 = vadd.f32 %v2121, %v2169
      %2171 = vdwg.mxu0
      %vm2172 = vcmp.gt.f32.partialorder %v2150, 0.0
      %vm2173 = vcmp.gt.f32.partialorder %v2170, 0.0
      %v2174 = vmul.f32 %v2150, 0.2
      %v2175 = vmul.f32 %v2170, 0.2
      %v2176 = vsel %vm2172, %v2150, %v2174
      %v2177 = vsel %vm2173, %v2170, %v2175
      %v2180 = vrot.slane %v2177, 4
      %v2181 = vsel %vm869, %v2176, %v2180
      %2183 = vst [vmem:[%s857] sm:$0xff] %v2181
      %v2184 = vld [vmem:[%s17] sm:$0xff]
      %v2185 = vld [vmem:[%s17 + $0x8] sm:$0x1]
      %v2186 = vld [vmem:[%s18] sm:$0xff]
      %v2187 = vld [vmem:[%s18 + $0x8] sm:$0x1]
      %2188 = vst [vmem:[#allocation2 + $0x4] sm:$0xff] %v2181
      %v2189 = vld [vmem:[#allocation2] sm:$0xff]
      %v2190 = vld [vmem:[#allocation2 + $0x8] sm:$0xf]
      %v2191 = vmul.f32 %v2189, %v892
      %v2192 = vmul.f32 %v2190, %v890
      %2195 = vst [vmem:[#allocation1] ss:$2 sm:$0xff] %v2191
      %s2196 = scalar_lea.vmem [#allocation1], 16
      %2197 = vst [vmem:[%s2196] ss:$2 sm:$0xff] %v2192
      %v2198 = vld.sshfl [vmem:[#allocation1] sm:$0xff pattern:$0x75316420]
      %v2199 = vld.sshfl [vmem:[#allocation1 + $0x8] sm:$0xff pattern:$0x75316420]
      %v2200 = vld.sshfl [vmem:[#allocation1 + $0x10] sm:$0xff pattern:$0x75316420]
      %2201 = vrot.lane.b32.xlu0 %v2198, 17
      %v2202 = vpop.permute.xlu0 %2201
      %2203 = vrot.lane.b32.xlu0 %v2199, 17
      %v2204 = vpop.permute.xlu0 %2203
      %2205 = vrot.lane.b32.xlu0 %v2200, 17
      %v2206 = vpop.permute.xlu0 %2205
      %v2207 = vsel %vm911, %v2202, %v2204
      %v2208 = vsel %vm911, %v2204, %v2206
      %2211 = vst [vmem:[#allocation3] sm:$0xf] %v2207
      %2212 = vst [vmem:[#allocation3 + $0x8] sm:$0xf] %v2208
      %v2213 = vld [vmem:[#allocation2] sm:$0xff]
      %v2214 = vld [vmem:[#allocation2 + $0x8] sm:$0xf]
      %s2217 = scalar_lea.vmem [#allocation1], 1
      %2218 = vst [vmem:[%s2217] ss:$2 sm:$0xff] %v2213
      %s2219 = scalar_lea.vmem [#allocation1], 17
      %2220 = vst [vmem:[%s2219] ss:$2 sm:$0xff] %v2214
      %v2221 = vld.sshfl [vmem:[#allocation1] sm:$0xff pattern:$0x75316420]
      %v2222 = vld.sshfl [vmem:[#allocation1 + $0x8] sm:$0xff pattern:$0x75316420]
      %v2223 = vld.sshfl [vmem:[#allocation1 + $0x10] sm:$0xff pattern:$0x75316420]
      %2224 = vrot.lane.b32.xlu0 %v2221, 16
      %v2225 = vpop.permute.xlu0 %2224
      %2226 = vrot.lane.b32.xlu0 %v2222, 16
      %v2227 = vpop.permute.xlu0 %2226
      %2228 = vrot.lane.b32.xlu0 %v2223, 16
      %v2229 = vpop.permute.xlu0 %2228
      %v2230 = vsel %vm935, %v2225, %v2227
      %v2231 = vsel %vm935, %v2227, %v2229
      %2234 = vst [vmem:[#allocation3] sm:$0xf0] %v2230
      %2235 = vst [vmem:[#allocation3 + $0x8] sm:$0xf0] %v2231
      %v2236 = vld [vmem:[#allocation2] sm:$0xff]
      %v2237 = vld [vmem:[#allocation2 + $0x8] sm:$0xf]
      %v2238 = vmul.f32 %v2236, %v953
      %v2239 = vmul.f32 %v2237, %v951
      %2242 = vst [vmem:[#allocation1] ss:$2 sm:$0xff] %v2238
      %s2243 = scalar_lea.vmem [#allocation1], 16
      %2244 = vst [vmem:[%s2243] ss:$2 sm:$0xff] %v2239
      %v2245 = vld.sshfl [vmem:[#allocation1] sm:$0xff pattern:$0x75316420]
      %v2246 = vld.sshfl [vmem:[#allocation1 + $0x8] sm:$0xff pattern:$0x75316420]
      %v2247 = vld.sshfl [vmem:[#allocation1 + $0x10] sm:$0xff pattern:$0x75316420]
      %2248 = vrot.lane.b32.xlu0 %v2245, 15
      %v2249 = vpop.permute.xlu0 %2248
      %2250 = vrot.lane.b32.xlu0 %v2246, 15
      %v2251 = vpop.permute.xlu0 %2250
      %2252 = vrot.lane.b32.xlu0 %v2247, 15
      %v2253 = vpop.permute.xlu0 %2252
      %v2254 = vsel %vm972, %v2249, %v2251
      %v2255 = vsel %vm972, %v2251, %v2253
      %2258 = vst [vmem:[#allocation3 + $0x10] sm:$0xf] %v2254
      %2259 = vst [vmem:[#allocation3 + $0x18] sm:$0xf] %v2255
      %v2260 = vld [vmem:[#allocation2] sm:$0xff]
      %v2261 = vld [vmem:[#allocation2 + $0x8] sm:$0xf]
      %v2262 = vmul.f32 %v2260, %v985
      %v2263 = vmul.f32 %v2261, %v983
      %s2266 = scalar_lea.vmem [#allocation1], 1
      %2267 = vst [vmem:[%s2266] ss:$2 sm:$0xff] %v2262
      %s2268 = scalar_lea.vmem [#allocation1], 17
      %2269 = vst [vmem:[%s2268] ss:$2 sm:$0xff] %v2263
      %v2270 = vld.sshfl [vmem:[#allocation1] sm:$0xff pattern:$0x75316420]
      %v2271 = vld.sshfl [vmem:[#allocation1 + $0x8] sm:$0xff pattern:$0x75316420]
      %v2272 = vld.sshfl [vmem:[#allocation1 + $0x10] sm:$0xff pattern:$0x75316420]
      %2273 = vrot.lane.b32.xlu0 %v2270, 1
      %v2274 = vpop.permute.xlu0 %2273
      %2275 = vrot.lane.b32.xlu0 %v2271, 1
      %v2276 = vpop.permute.xlu0 %2275
      %2277 = vrot.lane.b32.xlu0 %v2272, 1
      %v2278 = vpop.permute.xlu0 %2277
      %v2279 = vsel %vm1005, %v2274, %v2276
      %v2280 = vsel %vm1005, %v2276, %v2278
      %2283 = vst [vmem:[#allocation3 + $0x10] sm:$0xf0] %v2279
      %2284 = vst [vmem:[#allocation3 + $0x18] sm:$0xf0] %v2280
      %v2285 = vld [vmem:[#allocation2 + $0x4] sm:$0xff]
      %2287 = vst [vmem:[#allocation1] ss:$2 sm:$0xff] %v2285
      %v2288 = vld.sshfl [vmem:[#allocation1] sm:$0xff pattern:$0x75316420]
      %v2289 = vld.sshfl [vmem:[#allocation1 + $0x8] sm:$0xff pattern:$0x75316420]
      %2292 = vst [vmem:[#allocation3 + $0x20] sm:$0xf] %v2288
      %2293 = vst [vmem:[#allocation3 + $0x28] sm:$0xf] %v2289
      %v2294 = vld [vmem:[#allocation2 + $0x4] sm:$0xff]
      %v2295 = vld [vmem:[#allocation2 + $0xc] sm:$0xf]
      %v2296 = vmul.f32 %v2294, %v1026
      %v2297 = vmul.f32 %v2295, %v1025
      %s2300 = scalar_lea.vmem [#allocation1], 1
      %2301 = vst [vmem:[%s2300] ss:$2 sm:$0xff] %v2296
      %s2302 = scalar_lea.vmem [#allocation1], 17
      %2303 = vst [vmem:[%s2302] ss:$2 sm:$0xff] %v2297
      %v2304 = vld.sshfl [vmem:[#allocation1] sm:$0xff pattern:$0x75316420]
      %v2305 = vld.sshfl [vmem:[#allocation1 + $0x8] sm:$0xff pattern:$0x75316420]
      %v2306 = vld.sshfl [vmem:[#allocation1 + $0x10] sm:$0xff pattern:$0x75316420]
      %2307 = vrot.lane.b32.xlu0 %v2304, 127
      %v2308 = vpop.permute.xlu0 %2307
      %2309 = vrot.lane.b32.xlu0 %v2305, 127
      %v2310 = vpop.permute.xlu0 %2309
      %2311 = vrot.lane.b32.xlu0 %v2306, 127
      %v2312 = vpop.permute.xlu0 %2311
      %v2313 = vsel %vm984, %v2308, %v2310
      %v2314 = vsel %vm984, %v2310, %v2312
      %2317 = vst [vmem:[#allocation3 + $0x20] sm:$0xf0] %v2313
      %2318 = vst [vmem:[#allocation3 + $0x28] sm:$0xf0] %v2314
      %v2319 = vld [vmem:[#allocation2 + $0x4] sm:$0xff]
      %v2320 = vld [vmem:[#allocation2 + $0xc] sm:$0xf]
      %v2321 = vmul.f32 %v2319, %v1057
      %v2322 = vmul.f32 %v2320, %v1056
      %2325 = vst [vmem:[#allocation1] ss:$2 sm:$0xff] %v2321
      %s2326 = scalar_lea.vmem [#allocation1], 16
      %2327 = vst [vmem:[%s2326] ss:$2 sm:$0xff] %v2322
      %v2328 = vld.sshfl [vmem:[#allocation1] sm:$0xff pattern:$0x75316420]
      %v2329 = vld.sshfl [vmem:[#allocation1 + $0x8] sm:$0xff pattern:$0x75316420]
      %v2330 = vld.sshfl [vmem:[#allocation1 + $0x10] sm:$0xff pattern:$0x75316420]
      %2331 = vrot.lane.b32.xlu0 %v2328, 113
      %v2332 = vpop.permute.xlu0 %2331
      %2333 = vrot.lane.b32.xlu0 %v2329, 113
      %v2334 = vpop.permute.xlu0 %2333
      %2335 = vrot.lane.b32.xlu0 %v2330, 113
      %v2336 = vpop.permute.xlu0 %2335
      %v2337 = vsel %vm952, %v2332, %v2334
      %v2338 = vsel %vm952, %v2334, %v2336
      %2341 = vst [vmem:[#allocation3 + $0x30] sm:$0xf] %v2337
      %2342 = vst [vmem:[#allocation3 + $0x38] sm:$0xf] %v2338
      %v2343 = vld [vmem:[#allocation2 + $0x4] sm:$0xff]
      %v2344 = vld [vmem:[#allocation2 + $0xc] sm:$0xf]
      %s2347 = scalar_lea.vmem [#allocation1], 1
      %2348 = vst [vmem:[%s2347] ss:$2 sm:$0xff] %v2343
      %s2349 = scalar_lea.vmem [#allocation1], 17
      %2350 = vst [vmem:[%s2349] ss:$2 sm:$0xff] %v2344
      %v2351 = vld.sshfl [vmem:[#allocation1] sm:$0xff pattern:$0x75316420]
      %v2352 = vld.sshfl [vmem:[#allocation1 + $0x8] sm:$0xff pattern:$0x75316420]
      %v2353 = vld.sshfl [vmem:[#allocation1 + $0x10] sm:$0xff pattern:$0x75316420]
      %2354 = vrot.lane.b32.xlu0 %v2351, 112
      %v2355 = vpop.permute.xlu0 %2354
      %2356 = vrot.lane.b32.xlu0 %v2352, 112
      %v2357 = vpop.permute.xlu0 %2356
      %2358 = vrot.lane.b32.xlu0 %v2353, 112
      %v2359 = vpop.permute.xlu0 %2358
      %v2360 = vsel %vm1099, %v2355, %v2357
      %v2361 = vsel %vm1099, %v2357, %v2359
      %2364 = vst [vmem:[#allocation3 + $0x30] sm:$0xf0] %v2360
      %2365 = vst [vmem:[#allocation3 + $0x38] sm:$0xf0] %v2361
      %v2366 = vld [vmem:[#allocation2 + $0x4] sm:$0xff]
      %v2367 = vld [vmem:[#allocation2 + $0xc] sm:$0xf]
      %v2368 = vmul.f32 %v2366, %v1111
      %v2369 = vmul.f32 %v2367, %v1110
      %2372 = vst [vmem:[#allocation1] ss:$2 sm:$0xff] %v2368
      %s2373 = scalar_lea.vmem [#allocation1], 16
      %2374 = vst [vmem:[%s2373] ss:$2 sm:$0xff] %v2369
      %v2375 = vld.sshfl [vmem:[#allocation1] sm:$0xff pattern:$0x75316420]
      %v2376 = vld.sshfl [vmem:[#allocation1 + $0x8] sm:$0xff pattern:$0x75316420]
      %v2377 = vld.sshfl [vmem:[#allocation1 + $0x10] sm:$0xff pattern:$0x75316420]
      %2378 = vrot.lane.b32.xlu0 %v2375, 111
      %v2379 = vpop.permute.xlu0 %2378
      %2380 = vrot.lane.b32.xlu0 %v2376, 111
      %v2381 = vpop.permute.xlu0 %2380
      %2382 = vrot.lane.b32.xlu0 %v2377, 111
      %v2383 = vpop.permute.xlu0 %2382
      %v2384 = vsel %vm891, %v2379, %v2381
      %v2385 = vsel %vm891, %v2381, %v2383
      %2388 = vst [vmem:[#allocation3 + $0x40] sm:$0xf] %v2384
      %2389 = vst [vmem:[#allocation3 + $0x48] sm:$0xf] %v2385
      %v2390 = vld [vmem:[#allocation3] sm:$0xff]
      %v2391 = vld [vmem:[#allocation3 + $0x8] sm:$0xff]
      %v2392 = vld [vmem:[#allocation3 + $0x10] sm:$0xff]
      %v2393 = vld [vmem:[#allocation3 + $0x18] sm:$0xff]
      %v2394 = vld [vmem:[#allocation3 + $0x20] sm:$0xff]
      %v2395 = vld [vmem:[#allocation3 + $0x28] sm:$0xff]
      %v2396 = vld [vmem:[#allocation3 + $0x30] sm:$0xff]
      %v2397 = vld [vmem:[#allocation3 + $0x38] sm:$0xff]
      %v2398 = vld [vmem:[#allocation3 + $0x40] sm:$0xf]
      %v2399 = vld [vmem:[#allocation3 + $0x48] sm:$0xf]
      %2401 = vset.pattern.permute.xlu0 0
      %2402 = vperm.xlu0 %2401, %v2186
      %v2403 = vpop.permute.xlu0 %2402
      %2406 = vset.pattern.permute.xlu0 0
      %2407 = vperm.xlu0 %2406, %v2187
      %v2408 = vpop.permute.xlu0 %2407
      %v2411 = vsel %vm1151, %v2184, 0
      %v2414 = vsel %vm1151, %v2185, 0
      %v2417 = vsel %vm869, %v2398, 0
      %v2420 = vsel %vm869, %v2399, 0
      %2422 = vmatpush.msra.mxu0 0.0
      %2423 = vmatpush.msra.mxu0 0.0
      %2424 = vmatpush.msra.mxu0 0.0
      %2425 = vmatpush.msra.mxu0 0.0
      %2426 = vmatpush.msra.mxu0 0.0
      %2427 = vmatpush.msra.mxu0 0.0
      %2428 = vmatpush.msra.mxu0 0.0
      %2429 = vmatpush.msra.mxu0 0.0
      %2430 = vmatpush.msra.mxu0 0.0
      %2431 = vmatpush.msra.mxu0 0.0
      %2432 = vmatpush.msra.mxu0 0.0
      %2433 = vmatpush.msra.mxu0 %v2417
      %2434 = vmatpush.msra.mxu0 %v2396
      %2435 = vmatpush.msra.mxu0 %v2394
      %2436 = vmatpush.msra.mxu0 %v2392
      %2437 = vmatpush.msra.mxu0 %v2390
      %2438 = vmatmul.f32.gmra.mxu0 %v2411
      %v2439 = vpop.f32.mrf.mxu0
      %v2440 = vadd.f32 %v2403, %v2439
      %2441 = vmatmul.f32.gmra.mxu0 %v2414
      %v2442 = vpop.f32.mrf.mxu0
      %v2443 = vadd.f32 %v2408, %v2442
      %2444 = vdwg.mxu0
      %2445 = vmatpush.msra.mxu0 0.0
      %2446 = vmatpush.msra.mxu0 0.0
      %2447 = vmatpush.msra.mxu0 0.0
      %2448 = vmatpush.msra.mxu0 0.0
      %2449 = vmatpush.msra.mxu0 0.0
      %2450 = vmatpush.msra.mxu0 0.0
      %2451 = vmatpush.msra.mxu0 0.0
      %2452 = vmatpush.msra.mxu0 0.0
      %2453 = vmatpush.msra.mxu0 0.0
      %2454 = vmatpush.msra.mxu0 0.0
      %2455 = vmatpush.msra.mxu0 0.0
      %2456 = vmatpush.msra.mxu0 %v2420
      %2457 = vmatpush.msra.mxu0 %v2397
      %2458 = vmatpush.msra.mxu0 %v2395
      %2459 = vmatpush.msra.mxu0 %v2393
      %2460 = vmatpush.msra.mxu0 %v2391
      %2461 = vmatmul.f32.gmra.mxu0 %v2411
      %v2462 = vpop.f32.mrf.mxu0
      %v2463 = vadd.f32 %v2403, %v2462
      %2464 = vmatmul.f32.gmra.mxu0 %v2414
      %v2465 = vpop.f32.mrf.mxu0
      %v2466 = vadd.f32 %v2408, %v2465
      %2467 = vdwg.mxu0
      %vm2468 = vcmp.gt.f32.partialorder %v2440, 0.0
      %vm2469 = vcmp.gt.f32.partialorder %v2463, 0.0
      %vm2470 = vcmp.gt.f32.partialorder %v2443, 0.0
      %vm2471 = vcmp.gt.f32.partialorder %v2466, 0.0
      %v2472 = vmul.f32 %v2440, 0.2
      %v2473 = vmul.f32 %v2463, 0.2
      %v2474 = vmul.f32 %v2443, 0.2
      %v2475 = vmul.f32 %v2466, 0.2
      %v2476 = vsel %vm2468, %v2440, %v2472
      %v2477 = vsel %vm2469, %v2463, %v2473
      %v2478 = vsel %vm2470, %v2443, %v2474
      %v2479 = vsel %vm2471, %v2466, %v2475
      %2480 = vst [vmem:[%s852] sm:$0xff] %v2476
      %2481 = vst [vmem:[%s852 + $0x8] sm:$0xff] %v2477
      %2482 = vst [vmem:[%s852 + $0x10] sm:$0x1] %v2478
      %2483 = vst [vmem:[%s852 + $0x18] sm:$0x1] %v2479
      %v2484 = vsub.f32 %v1482, %v2176
      %v2485 = vsub.f32 %v1483, %v2177
      %v2488 = vrot.slane %v2485, 4
      %v2489 = vsel %vm869, %v2484, %v2488
      %2491 = vst [vmem:[%s867] sm:$0xff] %v2489
      %v2492 = vld [vmem:[%s19] sm:$0xf]
      %v2493 = vld [vmem:[%s20] sm:$0xf]
      %2494 = vst [vmem:[#allocation2 + $0x4] sm:$0xff] %v2489
      %v2495 = vld [vmem:[#allocation2] sm:$0xff]
      %v2496 = vld [vmem:[#allocation2 + $0x8] sm:$0xf]
      %v2497 = vmul.f32 %v2495, %v892
      %v2498 = vmul.f32 %v2496, %v890
      %2501 = vst [vmem:[#allocation1] ss:$2 sm:$0xff] %v2497
      %s2502 = scalar_lea.vmem [#allocation1], 16
      %2503 = vst [vmem:[%s2502] ss:$2 sm:$0xff] %v2498
      %v2504 = vld.sshfl [vmem:[#allocation1] sm:$0xff pattern:$0x75316420]
      %v2505 = vld.sshfl [vmem:[#allocation1 + $0x8] sm:$0xff pattern:$0x75316420]
      %v2506 = vld.sshfl [vmem:[#allocation1 + $0x10] sm:$0xff pattern:$0x75316420]
      %2507 = vrot.lane.b32.xlu0 %v2504, 17
      %v2508 = vpop.permute.xlu0 %2507
      %2509 = vrot.lane.b32.xlu0 %v2505, 17
      %v2510 = vpop.permute.xlu0 %2509
      %2511 = vrot.lane.b32.xlu0 %v2506, 17
      %v2512 = vpop.permute.xlu0 %2511
      %v2513 = vsel %vm911, %v2508, %v2510
      %v2514 = vsel %vm911, %v2510, %v2512
      %2517 = vst [vmem:[#allocation3] sm:$0xf] %v2513
      %2518 = vst [vmem:[#allocation3 + $0x8] sm:$0xf] %v2514
      %v2519 = vld [vmem:[#allocation2] sm:$0xff]
      %v2520 = vld [vmem:[#allocation2 + $0x8] sm:$0xf]
      %s2523 = scalar_lea.vmem [#allocation1], 1
      %2524 = vst [vmem:[%s2523] ss:$2 sm:$0xff] %v2519
      %s2525 = scalar_lea.vmem [#allocation1], 17
      %2526 = vst [vmem:[%s2525] ss:$2 sm:$0xff] %v2520
      %v2527 = vld.sshfl [vmem:[#allocation1] sm:$0xff pattern:$0x75316420]
      %v2528 = vld.sshfl [vmem:[#allocation1 + $0x8] sm:$0xff pattern:$0x75316420]
      %v2529 = vld.sshfl [vmem:[#allocation1 + $0x10] sm:$0xff pattern:$0x75316420]
      %2530 = vrot.lane.b32.xlu0 %v2527, 16
      %v2531 = vpop.permute.xlu0 %2530
      %2532 = vrot.lane.b32.xlu0 %v2528, 16
      %v2533 = vpop.permute.xlu0 %2532
      %2534 = vrot.lane.b32.xlu0 %v2529, 16
      %v2535 = vpop.permute.xlu0 %2534
      %v2536 = vsel %vm935, %v2531, %v2533
      %v2537 = vsel %vm935, %v2533, %v2535
      %2540 = vst [vmem:[#allocation3] sm:$0xf0] %v2536
      %2541 = vst [vmem:[#allocation3 + $0x8] sm:$0xf0] %v2537
      %v2542 = vld [vmem:[#allocation2] sm:$0xff]
      %v2543 = vld [vmem:[#allocation2 + $0x8] sm:$0xf]
      %v2544 = vmul.f32 %v2542, %v953
      %v2545 = vmul.f32 %v2543, %v951
      %2548 = vst [vmem:[#allocation1] ss:$2 sm:$0xff] %v2544
      %s2549 = scalar_lea.vmem [#allocation1], 16
      %2550 = vst [vmem:[%s2549] ss:$2 sm:$0xff] %v2545
      %v2551 = vld.sshfl [vmem:[#allocation1] sm:$0xff pattern:$0x75316420]
      %v2552 = vld.sshfl [vmem:[#allocation1 + $0x8] sm:$0xff pattern:$0x75316420]
      %v2553 = vld.sshfl [vmem:[#allocation1 + $0x10] sm:$0xff pattern:$0x75316420]
      %2554 = vrot.lane.b32.xlu0 %v2551, 15
      %v2555 = vpop.permute.xlu0 %2554
      %2556 = vrot.lane.b32.xlu0 %v2552, 15
      %v2557 = vpop.permute.xlu0 %2556
      %2558 = vrot.lane.b32.xlu0 %v2553, 15
      %v2559 = vpop.permute.xlu0 %2558
      %v2560 = vsel %vm972, %v2555, %v2557
      %v2561 = vsel %vm972, %v2557, %v2559
      %2564 = vst [vmem:[#allocation3 + $0x10] sm:$0xf] %v2560
      %2565 = vst [vmem:[#allocation3 + $0x18] sm:$0xf] %v2561
      %v2566 = vld [vmem:[#allocation2] sm:$0xff]
      %v2567 = vld [vmem:[#allocation2 + $0x8] sm:$0xf]
      %v2568 = vmul.f32 %v2566, %v985
      %v2569 = vmul.f32 %v2567, %v983
      %s2572 = scalar_lea.vmem [#allocation1], 1
      %2573 = vst [vmem:[%s2572] ss:$2 sm:$0xff] %v2568
      %s2574 = scalar_lea.vmem [#allocation1], 17
      %2575 = vst [vmem:[%s2574] ss:$2 sm:$0xff] %v2569
      %v2576 = vld.sshfl [vmem:[#allocation1] sm:$0xff pattern:$0x75316420]
      %v2577 = vld.sshfl [vmem:[#allocation1 + $0x8] sm:$0xff pattern:$0x75316420]
      %v2578 = vld.sshfl [vmem:[#allocation1 + $0x10] sm:$0xff pattern:$0x75316420]
      %2579 = vrot.lane.b32.xlu0 %v2576, 1
      %v2580 = vpop.permute.xlu0 %2579
      %2581 = vrot.lane.b32.xlu0 %v2577, 1
      %v2582 = vpop.permute.xlu0 %2581
      %2583 = vrot.lane.b32.xlu0 %v2578, 1
      %v2584 = vpop.permute.xlu0 %2583
      %v2585 = vsel %vm1005, %v2580, %v2582
      %v2586 = vsel %vm1005, %v2582, %v2584
      %2589 = vst [vmem:[#allocation3 + $0x10] sm:$0xf0] %v2585
      %2590 = vst [vmem:[#allocation3 + $0x18] sm:$0xf0] %v2586
      %v2591 = vld [vmem:[#allocation2 + $0x4] sm:$0xff]
      %2593 = vst [vmem:[#allocation1] ss:$2 sm:$0xff] %v2591
      %v2594 = vld.sshfl [vmem:[#allocation1] sm:$0xff pattern:$0x75316420]
      %v2595 = vld.sshfl [vmem:[#allocation1 + $0x8] sm:$0xff pattern:$0x75316420]
      %2598 = vst [vmem:[#allocation3 + $0x20] sm:$0xf] %v2594
      %2599 = vst [vmem:[#allocation3 + $0x28] sm:$0xf] %v2595
      %v2600 = vld [vmem:[#allocation2 + $0x4] sm:$0xff]
      %v2601 = vld [vmem:[#allocation2 + $0xc] sm:$0xf]
      %v2602 = vmul.f32 %v2600, %v1026
      %v2603 = vmul.f32 %v2601, %v1025
      %s2606 = scalar_lea.vmem [#allocation1], 1
      %2607 = vst [vmem:[%s2606] ss:$2 sm:$0xff] %v2602
      %s2608 = scalar_lea.vmem [#allocation1], 17
      %2609 = vst [vmem:[%s2608] ss:$2 sm:$0xff] %v2603
      %v2610 = vld.sshfl [vmem:[#allocation1] sm:$0xff pattern:$0x75316420]
      %v2611 = vld.sshfl [vmem:[#allocation1 + $0x8] sm:$0xff pattern:$0x75316420]
      %v2612 = vld.sshfl [vmem:[#allocation1 + $0x10] sm:$0xff pattern:$0x75316420]
      %2613 = vrot.lane.b32.xlu0 %v2610, 127
      %v2614 = vpop.permute.xlu0 %2613
      %2615 = vrot.lane.b32.xlu0 %v2611, 127
      %v2616 = vpop.permute.xlu0 %2615
      %2617 = vrot.lane.b32.xlu0 %v2612, 127
      %v2618 = vpop.permute.xlu0 %2617
      %v2619 = vsel %vm984, %v2614, %v2616
      %v2620 = vsel %vm984, %v2616, %v2618
      %2623 = vst [vmem:[#allocation3 + $0x20] sm:$0xf0] %v2619
      %2624 = vst [vmem:[#allocation3 + $0x28] sm:$0xf0] %v2620
      %v2625 = vld [vmem:[#allocation2 + $0x4] sm:$0xff]
      %v2626 = vld [vmem:[#allocation2 + $0xc] sm:$0xf]
      %v2627 = vmul.f32 %v2625, %v1057
      %v2628 = vmul.f32 %v2626, %v1056
      %2631 = vst [vmem:[#allocation1] ss:$2 sm:$0xff] %v2627
      %s2632 = scalar_lea.vmem [#allocation1], 16
      %2633 = vst [vmem:[%s2632] ss:$2 sm:$0xff] %v2628
      %v2634 = vld.sshfl [vmem:[#allocation1] sm:$0xff pattern:$0x75316420]
      %v2635 = vld.sshfl [vmem:[#allocation1 + $0x8] sm:$0xff pattern:$0x75316420]
      %v2636 = vld.sshfl [vmem:[#allocation1 + $0x10] sm:$0xff pattern:$0x75316420]
      %2637 = vrot.lane.b32.xlu0 %v2634, 113
      %v2638 = vpop.permute.xlu0 %2637
      %2639 = vrot.lane.b32.xlu0 %v2635, 113
      %v2640 = vpop.permute.xlu0 %2639
      %2641 = vrot.lane.b32.xlu0 %v2636, 113
      %v2642 = vpop.permute.xlu0 %2641
      %v2643 = vsel %vm952, %v2638, %v2640
      %v2644 = vsel %vm952, %v2640, %v2642
      %2647 = vst [vmem:[#allocation3 + $0x30] sm:$0xf] %v2643
      %2648 = vst [vmem:[#allocation3 + $0x38] sm:$0xf] %v2644
      %v2649 = vld [vmem:[#allocation2 + $0x4] sm:$0xff]
      %v2650 = vld [vmem:[#allocation2 + $0xc] sm:$0xf]
      %s2653 = scalar_lea.vmem [#allocation1], 1
      %2654 = vst [vmem:[%s2653] ss:$2 sm:$0xff] %v2649
      %s2655 = scalar_lea.vmem [#allocation1], 17
      %2656 = vst [vmem:[%s2655] ss:$2 sm:$0xff] %v2650
      %v2657 = vld.sshfl [vmem:[#allocation1] sm:$0xff pattern:$0x75316420]
      %v2658 = vld.sshfl [vmem:[#allocation1 + $0x8] sm:$0xff pattern:$0x75316420]
      %v2659 = vld.sshfl [vmem:[#allocation1 + $0x10] sm:$0xff pattern:$0x75316420]
      %2660 = vrot.lane.b32.xlu0 %v2657, 112
      %v2661 = vpop.permute.xlu0 %2660
      %2662 = vrot.lane.b32.xlu0 %v2658, 112
      %v2663 = vpop.permute.xlu0 %2662
      %2664 = vrot.lane.b32.xlu0 %v2659, 112
      %v2665 = vpop.permute.xlu0 %2664
      %v2666 = vsel %vm1099, %v2661, %v2663
      %v2667 = vsel %vm1099, %v2663, %v2665
      %2670 = vst [vmem:[#allocation3 + $0x30] sm:$0xf0] %v2666
      %2671 = vst [vmem:[#allocation3 + $0x38] sm:$0xf0] %v2667
      %v2672 = vld [vmem:[#allocation2 + $0x4] sm:$0xff]
      %v2673 = vld [vmem:[#allocation2 + $0xc] sm:$0xf]
      %v2674 = vmul.f32 %v2672, %v1111
      %v2675 = vmul.f32 %v2673, %v1110
      %2678 = vst [vmem:[#allocation1] ss:$2 sm:$0xff] %v2674
      %s2679 = scalar_lea.vmem [#allocation1], 16
      %2680 = vst [vmem:[%s2679] ss:$2 sm:$0xff] %v2675
      %v2681 = vld.sshfl [vmem:[#allocation1] sm:$0xff pattern:$0x75316420]
      %v2682 = vld.sshfl [vmem:[#allocation1 + $0x8] sm:$0xff pattern:$0x75316420]
      %v2683 = vld.sshfl [vmem:[#allocation1 + $0x10] sm:$0xff pattern:$0x75316420]
      %2684 = vrot.lane.b32.xlu0 %v2681, 111
      %v2685 = vpop.permute.xlu0 %2684
      %2686 = vrot.lane.b32.xlu0 %v2682, 111
      %v2687 = vpop.permute.xlu0 %2686
      %2688 = vrot.lane.b32.xlu0 %v2683, 111
      %v2689 = vpop.permute.xlu0 %2688
      %v2690 = vsel %vm891, %v2685, %v2687
      %v2691 = vsel %vm891, %v2687, %v2689
      %2694 = vst [vmem:[#allocation3 + $0x40] sm:$0xf] %v2690
      %2695 = vst [vmem:[#allocation3 + $0x48] sm:$0xf] %v2691
      %v2696 = vld [vmem:[#allocation3] sm:$0xff]
      %v2697 = vld [vmem:[#allocation3 + $0x8] sm:$0xff]
      %v2698 = vld [vmem:[#allocation3 + $0x10] sm:$0xff]
      %v2699 = vld [vmem:[#allocation3 + $0x18] sm:$0xff]
      %v2700 = vld [vmem:[#allocation3 + $0x20] sm:$0xff]
      %v2701 = vld [vmem:[#allocation3 + $0x28] sm:$0xff]
      %v2702 = vld [vmem:[#allocation3 + $0x30] sm:$0xff]
      %v2703 = vld [vmem:[#allocation3 + $0x38] sm:$0xff]
      %v2704 = vld [vmem:[#allocation3 + $0x40] sm:$0xf]
      %v2705 = vld [vmem:[#allocation3 + $0x48] sm:$0xf]
      %2707 = vset.pattern.permute.xlu0 0
      %2708 = vperm.xlu0 %2707, %v2493
      %v2709 = vpop.permute.xlu0 %2708
      %v2712 = vsel %vm1151, %v2492, 0
      %v2715 = vsel %vm869, %v2704, 0
      %v2718 = vsel %vm869, %v2705, 0
      %2720 = vmatpush.msra.mxu0 0.0
      %2721 = vmatpush.msra.mxu0 0.0
      %2722 = vmatpush.msra.mxu0 0.0
      %2723 = vmatpush.msra.mxu0 0.0
      %2724 = vmatpush.msra.mxu0 0.0
      %2725 = vmatpush.msra.mxu0 0.0
      %2726 = vmatpush.msra.mxu0 0.0
      %2727 = vmatpush.msra.mxu0 0.0
      %2728 = vmatpush.msra.mxu0 0.0
      %2729 = vmatpush.msra.mxu0 0.0
      %2730 = vmatpush.msra.mxu0 0.0
      %2731 = vmatpush.msra.mxu0 %v2715
      %2732 = vmatpush.msra.mxu0 %v2702
      %2733 = vmatpush.msra.mxu0 %v2700
      %2734 = vmatpush.msra.mxu0 %v2698
      %2735 = vmatpush.msra.mxu0 %v2696
      %2736 = vmatmul.f32.gmra.mxu0 %v2712
      %v2737 = vpop.f32.mrf.mxu0
      %v2738 = vadd.f32 %v2709, %v2737
      %2739 = vdwg.mxu0
      %2740 = vmatpush.msra.mxu0 0.0
      %2741 = vmatpush.msra.mxu0 0.0
      %2742 = vmatpush.msra.mxu0 0.0
      %2743 = vmatpush.msra.mxu0 0.0
      %2744 = vmatpush.msra.mxu0 0.0
      %2745 = vmatpush.msra.mxu0 0.0
      %2746 = vmatpush.msra.mxu0 0.0
      %2747 = vmatpush.msra.mxu0 0.0
      %2748 = vmatpush.msra.mxu0 0.0
      %2749 = vmatpush.msra.mxu0 0.0
      %2750 = vmatpush.msra.mxu0 0.0
      %2751 = vmatpush.msra.mxu0 %v2718
      %2752 = vmatpush.msra.mxu0 %v2703
      %2753 = vmatpush.msra.mxu0 %v2701
      %2754 = vmatpush.msra.mxu0 %v2699
      %2755 = vmatpush.msra.mxu0 %v2697
      %2756 = vmatmul.f32.gmra.mxu0 %v2712
      %v2757 = vpop.f32.mrf.mxu0
      %v2758 = vadd.f32 %v2709, %v2757
      %2759 = vdwg.mxu0
      %v2760 = vmax.f32 %v2738, 0.0
      %v2761 = vmax.f32 %v2758, 0.0
      %v2762 = vld [vmem:[%s21] sm:$0xf]
      %v2763 = vld [vmem:[%s22] sm:$0xf]
      %v2766 = vrot.slane %v2761, 4
      %v2767 = vsel %vm869, %v2760, %v2766
      %2769 = vst [vmem:[#allocation2 + $0x4] sm:$0xff] %v2767
      %v2770 = vld [vmem:[#allocation2] sm:$0xff]
      %v2771 = vld [vmem:[#allocation2 + $0x8] sm:$0xf]
      %v2772 = vmul.f32 %v2770, %v892
      %v2773 = vmul.f32 %v2771, %v890
      %2776 = vst [vmem:[#allocation1] ss:$2 sm:$0xff] %v2772
      %s2777 = scalar_lea.vmem [#allocation1], 16
      %2778 = vst [vmem:[%s2777] ss:$2 sm:$0xff] %v2773
      %v2779 = vld.sshfl [vmem:[#allocation1] sm:$0xff pattern:$0x75316420]
      %v2780 = vld.sshfl [vmem:[#allocation1 + $0x8] sm:$0xff pattern:$0x75316420]
      %v2781 = vld.sshfl [vmem:[#allocation1 + $0x10] sm:$0xff pattern:$0x75316420]
      %2782 = vrot.lane.b32.xlu0 %v2779, 17
      %v2783 = vpop.permute.xlu0 %2782
      %2784 = vrot.lane.b32.xlu0 %v2780, 17
      %v2785 = vpop.permute.xlu0 %2784
      %2786 = vrot.lane.b32.xlu0 %v2781, 17
      %v2787 = vpop.permute.xlu0 %2786
      %v2788 = vsel %vm911, %v2783, %v2785
      %v2789 = vsel %vm911, %v2785, %v2787
      %2792 = vst [vmem:[#allocation3] sm:$0xf] %v2788
      %2793 = vst [vmem:[#allocation3 + $0x8] sm:$0xf] %v2789
      %v2794 = vld [vmem:[#allocation2] sm:$0xff]
      %v2795 = vld [vmem:[#allocation2 + $0x8] sm:$0xf]
      %s2798 = scalar_lea.vmem [#allocation1], 1
      %2799 = vst [vmem:[%s2798] ss:$2 sm:$0xff] %v2794
      %s2800 = scalar_lea.vmem [#allocation1], 17
      %2801 = vst [vmem:[%s2800] ss:$2 sm:$0xff] %v2795
      %v2802 = vld.sshfl [vmem:[#allocation1] sm:$0xff pattern:$0x75316420]
      %v2803 = vld.sshfl [vmem:[#allocation1 + $0x8] sm:$0xff pattern:$0x75316420]
      %v2804 = vld.sshfl [vmem:[#allocation1 + $0x10] sm:$0xff pattern:$0x75316420]
      %2805 = vrot.lane.b32.xlu0 %v2802, 16
      %v2806 = vpop.permute.xlu0 %2805
      %2807 = vrot.lane.b32.xlu0 %v2803, 16
      %v2808 = vpop.permute.xlu0 %2807
      %2809 = vrot.lane.b32.xlu0 %v2804, 16
      %v2810 = vpop.permute.xlu0 %2809
      %v2811 = vsel %vm935, %v2806, %v2808
      %v2812 = vsel %vm935, %v2808, %v2810
      %2815 = vst [vmem:[#allocation3] sm:$0xf0] %v2811
      %2816 = vst [vmem:[#allocation3 + $0x8] sm:$0xf0] %v2812
      %v2817 = vld [vmem:[#allocation2] sm:$0xff]
      %v2818 = vld [vmem:[#allocation2 + $0x8] sm:$0xf]
      %v2819 = vmul.f32 %v2817, %v953
      %v2820 = vmul.f32 %v2818, %v951
      %2823 = vst [vmem:[#allocation1] ss:$2 sm:$0xff] %v2819
      %s2824 = scalar_lea.vmem [#allocation1], 16
      %2825 = vst [vmem:[%s2824] ss:$2 sm:$0xff] %v2820
      %v2826 = vld.sshfl [vmem:[#allocation1] sm:$0xff pattern:$0x75316420]
      %v2827 = vld.sshfl [vmem:[#allocation1 + $0x8] sm:$0xff pattern:$0x75316420]
      %v2828 = vld.sshfl [vmem:[#allocation1 + $0x10] sm:$0xff pattern:$0x75316420]
      %2829 = vrot.lane.b32.xlu0 %v2826, 15
      %v2830 = vpop.permute.xlu0 %2829
      %2831 = vrot.lane.b32.xlu0 %v2827, 15
      %v2832 = vpop.permute.xlu0 %2831
      %2833 = vrot.lane.b32.xlu0 %v2828, 15
      %v2834 = vpop.permute.xlu0 %2833
      %v2835 = vsel %vm972, %v2830, %v2832
      %v2836 = vsel %vm972, %v2832, %v2834
      %2839 = vst [vmem:[#allocation3 + $0x10] sm:$0xf] %v2835
      %2840 = vst [vmem:[#allocation3 + $0x18] sm:$0xf] %v2836
      %v2841 = vld [vmem:[#allocation2] sm:$0xff]
      %v2842 = vld [vmem:[#allocation2 + $0x8] sm:$0xf]
      %v2843 = vmul.f32 %v2841, %v985
      %v2844 = vmul.f32 %v2842, %v983
      %s2847 = scalar_lea.vmem [#allocation1], 1
      %2848 = vst [vmem:[%s2847] ss:$2 sm:$0xff] %v2843
      %s2849 = scalar_lea.vmem [#allocation1], 17
      %2850 = vst [vmem:[%s2849] ss:$2 sm:$0xff] %v2844
      %v2851 = vld.sshfl [vmem:[#allocation1] sm:$0xff pattern:$0x75316420]
      %v2852 = vld.sshfl [vmem:[#allocation1 + $0x8] sm:$0xff pattern:$0x75316420]
      %v2853 = vld.sshfl [vmem:[#allocation1 + $0x10] sm:$0xff pattern:$0x75316420]
      %2854 = vrot.lane.b32.xlu0 %v2851, 1
      %v2855 = vpop.permute.xlu0 %2854
      %2856 = vrot.lane.b32.xlu0 %v2852, 1
      %v2857 = vpop.permute.xlu0 %2856
      %2858 = vrot.lane.b32.xlu0 %v2853, 1
      %v2859 = vpop.permute.xlu0 %2858
      %v2860 = vsel %vm1005, %v2855, %v2857
      %v2861 = vsel %vm1005, %v2857, %v2859
      %2864 = vst [vmem:[#allocation3 + $0x10] sm:$0xf0] %v2860
      %2865 = vst [vmem:[#allocation3 + $0x18] sm:$0xf0] %v2861
      %v2866 = vld [vmem:[#allocation2 + $0x4] sm:$0xff]
      %2868 = vst [vmem:[#allocation1] ss:$2 sm:$0xff] %v2866
      %v2869 = vld.sshfl [vmem:[#allocation1] sm:$0xff pattern:$0x75316420]
      %v2870 = vld.sshfl [vmem:[#allocation1 + $0x8] sm:$0xff pattern:$0x75316420]
      %2873 = vst [vmem:[#allocation3 + $0x20] sm:$0xf] %v2869
      %2874 = vst [vmem:[#allocation3 + $0x28] sm:$0xf] %v2870
      %v2875 = vld [vmem:[#allocation2 + $0x4] sm:$0xff]
      %v2876 = vld [vmem:[#allocation2 + $0xc] sm:$0xf]
      %v2877 = vmul.f32 %v2875, %v1026
      %v2878 = vmul.f32 %v2876, %v1025
      %s2881 = scalar_lea.vmem [#allocation1], 1
      %2882 = vst [vmem:[%s2881] ss:$2 sm:$0xff] %v2877
      %s2883 = scalar_lea.vmem [#allocation1], 17
      %2884 = vst [vmem:[%s2883] ss:$2 sm:$0xff] %v2878
      %v2885 = vld.sshfl [vmem:[#allocation1] sm:$0xff pattern:$0x75316420]
      %v2886 = vld.sshfl [vmem:[#allocation1 + $0x8] sm:$0xff pattern:$0x75316420]
      %v2887 = vld.sshfl [vmem:[#allocation1 + $0x10] sm:$0xff pattern:$0x75316420]
      %2888 = vrot.lane.b32.xlu0 %v2885, 127
      %v2889 = vpop.permute.xlu0 %2888
      %2890 = vrot.lane.b32.xlu0 %v2886, 127
      %v2891 = vpop.permute.xlu0 %2890
      %2892 = vrot.lane.b32.xlu0 %v2887, 127
      %v2893 = vpop.permute.xlu0 %2892
      %v2894 = vsel %vm984, %v2889, %v2891
      %v2895 = vsel %vm984, %v2891, %v2893
      %2898 = vst [vmem:[#allocation3 + $0x20] sm:$0xf0] %v2894
      %2899 = vst [vmem:[#allocation3 + $0x28] sm:$0xf0] %v2895
      %v2900 = vld [vmem:[#allocation2 + $0x4] sm:$0xff]
      %v2901 = vld [vmem:[#allocation2 + $0xc] sm:$0xf]
      %v2902 = vmul.f32 %v2900, %v1057
      %v2903 = vmul.f32 %v2901, %v1056
      %2906 = vst [vmem:[#allocation1] ss:$2 sm:$0xff] %v2902
      %s2907 = scalar_lea.vmem [#allocation1], 16
      %2908 = vst [vmem:[%s2907] ss:$2 sm:$0xff] %v2903
      %v2909 = vld.sshfl [vmem:[#allocation1] sm:$0xff pattern:$0x75316420]
      %v2910 = vld.sshfl [vmem:[#allocation1 + $0x8] sm:$0xff pattern:$0x75316420]
      %v2911 = vld.sshfl [vmem:[#allocation1 + $0x10] sm:$0xff pattern:$0x75316420]
      %2912 = vrot.lane.b32.xlu0 %v2909, 113
      %v2913 = vpop.permute.xlu0 %2912
      %2914 = vrot.lane.b32.xlu0 %v2910, 113
      %v2915 = vpop.permute.xlu0 %2914
      %2916 = vrot.lane.b32.xlu0 %v2911, 113
      %v2917 = vpop.permute.xlu0 %2916
      %v2918 = vsel %vm952, %v2913, %v2915
      %v2919 = vsel %vm952, %v2915, %v2917
      %2922 = vst [vmem:[#allocation3 + $0x30] sm:$0xf] %v2918
      %2923 = vst [vmem:[#allocation3 + $0x38] sm:$0xf] %v2919
      %v2924 = vld [vmem:[#allocation2 + $0x4] sm:$0xff]
      %v2925 = vld [vmem:[#allocation2 + $0xc] sm:$0xf]
      %s2928 = scalar_lea.vmem [#allocation1], 1
      %2929 = vst [vmem:[%s2928] ss:$2 sm:$0xff] %v2924
      %s2930 = scalar_lea.vmem [#allocation1], 17
      %2931 = vst [vmem:[%s2930] ss:$2 sm:$0xff] %v2925
      %v2932 = vld.sshfl [vmem:[#allocation1] sm:$0xff pattern:$0x75316420]
      %v2933 = vld.sshfl [vmem:[#allocation1 + $0x8] sm:$0xff pattern:$0x75316420]
      %v2934 = vld.sshfl [vmem:[#allocation1 + $0x10] sm:$0xff pattern:$0x75316420]
      %2935 = vrot.lane.b32.xlu0 %v2932, 112
      %v2936 = vpop.permute.xlu0 %2935
      %2937 = vrot.lane.b32.xlu0 %v2933, 112
      %v2938 = vpop.permute.xlu0 %2937
      %2939 = vrot.lane.b32.xlu0 %v2934, 112
      %v2940 = vpop.permute.xlu0 %2939
      %v2941 = vsel %vm1099, %v2936, %v2938
      %v2942 = vsel %vm1099, %v2938, %v2940
      %2945 = vst [vmem:[#allocation3 + $0x30] sm:$0xf0] %v2941
      %2946 = vst [vmem:[#allocation3 + $0x38] sm:$0xf0] %v2942
      %v2947 = vld [vmem:[#allocation2 + $0x4] sm:$0xff]
      %v2948 = vld [vmem:[#allocation2 + $0xc] sm:$0xf]
      %v2949 = vmul.f32 %v2947, %v1111
      %v2950 = vmul.f32 %v2948, %v1110
      %2953 = vst [vmem:[#allocation1] ss:$2 sm:$0xff] %v2949
      %s2954 = scalar_lea.vmem [#allocation1], 16
      %2955 = vst [vmem:[%s2954] ss:$2 sm:$0xff] %v2950
      %v2956 = vld.sshfl [vmem:[#allocation1] sm:$0xff pattern:$0x75316420]
      %v2957 = vld.sshfl [vmem:[#allocation1 + $0x8] sm:$0xff pattern:$0x75316420]
      %v2958 = vld.sshfl [vmem:[#allocation1 + $0x10] sm:$0xff pattern:$0x75316420]
      %2959 = vrot.lane.b32.xlu0 %v2956, 111
      %v2960 = vpop.permute.xlu0 %2959
      %2961 = vrot.lane.b32.xlu0 %v2957, 111
      %v2962 = vpop.permute.xlu0 %2961
      %2963 = vrot.lane.b32.xlu0 %v2958, 111
      %v2964 = vpop.permute.xlu0 %2963
      %v2965 = vsel %vm891, %v2960, %v2962
      %v2966 = vsel %vm891, %v2962, %v2964
      %2969 = vst [vmem:[#allocation3 + $0x40] sm:$0xf] %v2965
      %2970 = vst [vmem:[#allocation3 + $0x48] sm:$0xf] %v2966
      %v2971 = vld [vmem:[#allocation3] sm:$0xff]
      %v2972 = vld [vmem:[#allocation3 + $0x8] sm:$0xff]
      %v2973 = vld [vmem:[#allocation3 + $0x10] sm:$0xff]
      %v2974 = vld [vmem:[#allocation3 + $0x18] sm:$0xff]
      %v2975 = vld [vmem:[#allocation3 + $0x20] sm:$0xff]
      %v2976 = vld [vmem:[#allocation3 + $0x28] sm:$0xff]
      %v2977 = vld [vmem:[#allocation3 + $0x30] sm:$0xff]
      %v2978 = vld [vmem:[#allocation3 + $0x38] sm:$0xff]
      %v2979 = vld [vmem:[#allocation3 + $0x40] sm:$0xf]
      %v2980 = vld [vmem:[#allocation3 + $0x48] sm:$0xf]
      %2982 = vset.pattern.permute.xlu0 0
      %2983 = vperm.xlu0 %2982, %v2763
      %v2984 = vpop.permute.xlu0 %2983
      %v2987 = vsel %vm1151, %v2762, 0
      %v2990 = vsel %vm869, %v2979, 0
      %v2993 = vsel %vm869, %v2980, 0
      %2995 = vmatpush.msra.mxu0 0.0
      %2996 = vmatpush.msra.mxu0 0.0
      %2997 = vmatpush.msra.mxu0 0.0
      %2998 = vmatpush.msra.mxu0 0.0
      %2999 = vmatpush.msra.mxu0 0.0
      %3000 = vmatpush.msra.mxu0 0.0
      %3001 = vmatpush.msra.mxu0 0.0
      %3002 = vmatpush.msra.mxu0 0.0
      %3003 = vmatpush.msra.mxu0 0.0
      %3004 = vmatpush.msra.mxu0 0.0
      %3005 = vmatpush.msra.mxu0 0.0
      %3006 = vmatpush.msra.mxu0 %v2990
      %3007 = vmatpush.msra.mxu0 %v2977
      %3008 = vmatpush.msra.mxu0 %v2975
      %3009 = vmatpush.msra.mxu0 %v2973
      %3010 = vmatpush.msra.mxu0 %v2971
      %3011 = vmatmul.f32.gmra.mxu0 %v2987
      %v3012 = vpop.f32.mrf.mxu0
      %v3013 = vadd.f32 %v2984, %v3012
      %3014 = vdwg.mxu0
      %3015 = vmatpush.msra.mxu0 0.0
      %3016 = vmatpush.msra.mxu0 0.0
      %3017 = vmatpush.msra.mxu0 0.0
      %3018 = vmatpush.msra.mxu0 0.0
      %3019 = vmatpush.msra.mxu0 0.0
      %3020 = vmatpush.msra.mxu0 0.0
      %3021 = vmatpush.msra.mxu0 0.0
      %3022 = vmatpush.msra.mxu0 0.0
      %3023 = vmatpush.msra.mxu0 0.0
      %3024 = vmatpush.msra.mxu0 0.0
      %3025 = vmatpush.msra.mxu0 0.0
      %3026 = vmatpush.msra.mxu0 %v2993
      %3027 = vmatpush.msra.mxu0 %v2978
      %3028 = vmatpush.msra.mxu0 %v2976
      %3029 = vmatpush.msra.mxu0 %v2974
      %3030 = vmatpush.msra.mxu0 %v2972
      %3031 = vmatmul.f32.gmra.mxu0 %v2987
      %v3032 = vpop.f32.mrf.mxu0
      %v3033 = vadd.f32 %v2984, %v3032
      %3034 = vdwg.mxu0
      %v3035 = vadd.f32 %v3013, %v2484
      %v3036 = vadd.f32 %v3033, %v2485
      %v3039 = vrot.slane %v3036, 4
      %v3040 = vsel %vm869, %v3035, %v3039
      %3042 = vst [vmem:[%s847] sm:$0xff] %v3040
      %p3043 = scmp.lt.s32.totalorder %s39, 1
      %s3044 = scalar_select %p3043, %s39, 1
      %s3045 = smul.addr %s3044, 2
      %s3046 = smul.addr %s3045, 4
      %s3047 = scalar_lea.vmem %s23, %s3046
      %p3048 = scmp.lt.s32.totalorder %s39, 1
      %s3049 = scalar_select %p3048, %s39, 1
      %s3050 = smul.addr %s3049, 4
      %s3051 = smul.addr %s3050, 8
      %s3052 = scalar_lea.vmem %s24, %s3051
      %p3053 = scmp.lt.s32.totalorder %s39, 1
      %s3054 = scalar_select %p3053, %s39, 1
      %s3055 = smul.addr %s3054, 2
      %s3056 = smul.addr %s3055, 4
      %s3057 = scalar_lea.vmem %s25, %s3056
      %p3058 = scmp.lt.s32.totalorder %s39, 1
      %s3059 = scalar_select %p3058, %s39, 1
      %s3060 = smul.addr %s3059, 2
      %s3061 = smul.addr %s3060, 4
      %s3062 = scalar_lea.vmem %s26, %s3061
      %p3063 = scmp.lt.s32.totalorder %s39, 1
      %s3064 = scalar_select %p3063, %s39, 1
      %s3065 = smul.addr %s3064, 2
      %s3066 = smul.addr %s3065, 4
      %s3067 = scalar_lea.vmem %s27, %s3066
      // Predicated region
      $region113: #{bcm_block.1} parent=111 // pred_check
        %p3068 = pneg %p545
      $region114: #{bcm_block.1} parent=111 // pred_check_branch
        %3070 = sbr.rel (%p3068) target = $region116
      $region115: #{bcm_block.1} parent=111 // pred_region
        _
      $region116: #{bcm_block.1} parent=111 // pred_fallthru
        _
      // Predicated region
      $region117: #{bcm_block.1} parent=111 // pred_check
        %p3071 = pneg %p571
      $region118: #{bcm_block.1} parent=111 // pred_check_branch
        %3073 = sbr.rel (%p3071) target = $region120
      $region119: #{bcm_block.1} parent=111 // pred_region
        _
      $region120: #{bcm_block.1} parent=111 // pred_fallthru
        _
      // Predicated region
      $region121: #{bcm_block.1} parent=111 // pred_check
        %p3074 = pneg %p597
      $region122: #{bcm_block.1} parent=111 // pred_check_branch
        %3076 = sbr.rel (%p3074) target = $region124
      $region123: #{bcm_block.1} parent=111 // pred_region
        _
      $region124: #{bcm_block.1} parent=111 // pred_fallthru
        _
      // Predicated region
      $region125: #{bcm_block.1} parent=111 // pred_check
        %p3077 = pneg %p623
      $region126: #{bcm_block.1} parent=111 // pred_check_branch
        %3079 = sbr.rel (%p3077) target = $region128
      $region127: #{bcm_block.1} parent=111 // pred_region
        _
      $region128: #{bcm_block.1} parent=111 // pred_fallthru
        _
      // Predicated region
      $region129: #{bcm_block.1} parent=111 // pred_check
        %p3080 = pneg %p649
      $region130: #{bcm_block.1} parent=111 // pred_check_branch
        %3082 = sbr.rel (%p3080) target = $region132
      $region131: #{bcm_block.1} parent=111 // pred_region
        _
      $region132: #{bcm_block.1} parent=111 // pred_fallthru
        _
    $region112: #{bcm_block.1} parent=5 // pred_fallthru
      _
    %p3083 = scmp.le.s32.totalorder 2, %s34
    // Predicated region
    $region133: #{bcm_block.1} parent=5 // pred_check
      %p3084 = pneg %p3083
    $region134: #{bcm_block.1} parent=5 // pred_check_branch
      %3086 = sbr.rel (%p3084) target = $region136
    $region135: #{bcm_block.1} parent=5 // pred_region
      %s3087 = ssub.s32 %s34, 2
      // Predicated region
      $region137: #{bcm_block.1} parent=135 // pred_check
        %p3088 = pneg %p551
      $region138: #{bcm_block.1} parent=135 // pred_check_branch
        %3090 = sbr.rel (%p3088) target = $region140
      $region139: #{bcm_block.1} parent=135 // pred_region
        %p3091 = scmp.lt.s32.totalorder %s40, 1
        %s3092 = scalar_select %p3091, %s40, 1
        %s3093 = smul.addr %s3092, 2
        %s3094 = smul.addr %s3093, 4
        %s3095 = scalar_lea.vmem %s23, %s3094
      $region140: #{bcm_block.1} parent=135 // pred_fallthru
        _
      // Predicated region
      $region141: #{bcm_block.1} parent=135 // pred_check
        %p3096 = pneg %p577
      $region142: #{bcm_block.1} parent=135 // pred_check_branch
        %3098 = sbr.rel (%p3096) target = $region144
      $region143: #{bcm_block.1} parent=135 // pred_region
        %p3099 = scmp.lt.s32.totalorder %s40, 1
        %s3100 = scalar_select %p3099, %s40, 1
        %s3101 = smul.addr %s3100, 4
        %s3102 = smul.addr %s3101, 8
        %s3103 = scalar_lea.vmem %s24, %s3102
      $region144: #{bcm_block.1} parent=135 // pred_fallthru
        _
      // Predicated region
      $region145: #{bcm_block.1} parent=135 // pred_check
        %p3104 = pneg %p603
      $region146: #{bcm_block.1} parent=135 // pred_check_branch
        %3106 = sbr.rel (%p3104) target = $region148
      $region147: #{bcm_block.1} parent=135 // pred_region
        %p3107 = scmp.lt.s32.totalorder %s40, 1
        %s3108 = scalar_select %p3107, %s40, 1
        %s3109 = smul.addr %s3108, 2
        %s3110 = smul.addr %s3109, 4
        %s3111 = scalar_lea.vmem %s25, %s3110
      $region148: #{bcm_block.1} parent=135 // pred_fallthru
        _
      // Predicated region
      $region149: #{bcm_block.1} parent=135 // pred_check
        %p3112 = pneg %p629
      $region150: #{bcm_block.1} parent=135 // pred_check_branch
        %3114 = sbr.rel (%p3112) target = $region152
      $region151: #{bcm_block.1} parent=135 // pred_region
        %p3115 = scmp.lt.s32.totalorder %s40, 1
        %s3116 = scalar_select %p3115, %s40, 1
        %s3117 = smul.addr %s3116, 2
        %s3118 = smul.addr %s3117, 4
        %s3119 = scalar_lea.vmem %s26, %s3118
      $region152: #{bcm_block.1} parent=135 // pred_fallthru
        _
      // Predicated region
      $region153: #{bcm_block.1} parent=135 // pred_check
        %p3120 = pneg %p655
      $region154: #{bcm_block.1} parent=135 // pred_check_branch
        %3122 = sbr.rel (%p3120) target = $region156
      $region155: #{bcm_block.1} parent=135 // pred_region
        %p3123 = scmp.lt.s32.totalorder %s40, 1
        %s3124 = scalar_select %p3123, %s40, 1
        %s3125 = smul.addr %s3124, 2
        %s3126 = smul.addr %s3125, 4
        %s3127 = scalar_lea.vmem %s27, %s3126
      $region156: #{bcm_block.1} parent=135 // pred_fallthru
        _
    $region136: #{bcm_block.1} parent=5 // pred_fallthru
      _
  $region6: #{bcm_block.1} parent=0 // loop_footer
    %s38 = sadd.s32 1, %s34
  $region7: #{bcm_block.1} parent=0 // loop_footer_branch
    %33 = sbr.rel target = $region3
  $region8: #{bcm_block.1} parent=0 // loop_exit
    _

</llo_original>
